<compile_context>
chip_gen: v5e
topology: v5e:2x2
jax: 0.10.0
libtpu: 0.0.40
codegen_flags: <defaults>
</compile_context>

<pallas_src>
import functools
from typing import NamedTuple

import jax
import jax.numpy as jnp
import numpy as np
from jax.experimental import pallas as pl
from jax.experimental.pallas import tpu as pltpu


def _round_up(x, m):
    return (x + m - 1) // m * m


def _tpu_vmem_capacity_bytes():
    try:
        info = pltpu.get_tpu_info()
        cap = int(getattr(info, "vmem_capacity_bytes", 0) or 0)
        if cap > 0:
            return cap
    except Exception:
        pass
    return 64 * 1024 * 1024  # conservative (v7x-sized) fallback


def _pick_tile(dim, cap, quantum):
    """Largest multiple-of-`quantum` divisor of `dim` that is <= cap."""
    cap = min(cap, dim)
    t = cap - cap % quantum
    while t >= quantum:
        if dim % t == 0:
            return t
        t -= quantum
    return dim


# --------------------------------------------------------------------------
# Fused matmul + bias, single K step (tk = full K):  out = x @ w + b
# bf16 MXU inputs, f32 accumulation inside the dot; no accumulator scratch.
# --------------------------------------------------------------------------
def _matmul_bias_kernel(x_ref, w_ref, b_ref, o_ref):
    acc = jnp.dot(x_ref[...], w_ref[...], preferred_element_type=jnp.float32)
    o_ref[...] = (acc + b_ref[...]).astype(o_ref.dtype)


def matmul_bias(x, w_p, b_p, *, out_dtype, vmem_limit, tm_max=256, tn_max=512):
    """x: (M, K) float; w_p: (Kp, Np) bf16 pre-padded (Np % 128 == 0);
    b_p: (1, Np) f32.  Returns (M, Np) in out_dtype."""
    M, K = x.shape
    Kp, Np = w_p.shape
    tn = _pick_tile(Np, tn_max, 128)
    tm = min(tm_max, _round_up(M, 8))
    Mp = _round_up(M, tm)
    xp = x
    if (Mp, Kp) != (M, K):
        xp = jnp.pad(x, ((0, Mp - M), (0, Kp - K)))
    xp = xp.astype(jnp.bfloat16)

    out = pl.pallas_call(
        _matmul_bias_kernel,
        out_shape=jax.ShapeDtypeStruct((Mp, Np), out_dtype),
        grid_spec=pltpu.PrefetchScalarGridSpec(
            num_scalar_prefetch=0,
            grid=(Mp // tm, Np // tn),
            in_specs=[
                pl.BlockSpec((tm, Kp), lambda i, j: (i, 0)),
                pl.BlockSpec((Kp, tn), lambda i, j: (0, j)),
                pl.BlockSpec((1, tn), lambda i, j: (0, j)),
            ],
            out_specs=pl.BlockSpec((tm, tn), lambda i, j: (i, j)),
        ),
        compiler_params=pltpu.CompilerParams(
            dimension_semantics=("parallel", "parallel"),
            vmem_limit_bytes=vmem_limit,
        ),
    )(xp, w_p, b_p)
    return out[:M]


# --------------------------------------------------------------------------
# LSTM recurrence: one pallas_call, grid over batch chunks, fori_loop over T.
# gx_ref already holds x @ W_ih^T + (b_ih + b_hh) (bf16, time-major).
# h is emitted batch-major (Bc, T, Hp) in bf16 so downstream needs no transpose.
# --------------------------------------------------------------------------
def _lstm_recurrence_kernel(gx_ref, whh_ref, h_out_ref, *, unroll):
    seq_len, bc, _ = gx_ref.shape
    hp = whh_ref.shape[0]

    def _sigmoid(x):
        # tanh identity: a single EUP op instead of exp + divide.
        return 0.5 * (jnp.tanh(0.5 * x) + 1.0)

    def step(t, carry):
        h_prev, c_prev = carry                       # bf16 (bc,hp), f32 (bc,hp)
        gates = gx_ref[t].astype(jnp.float32) + jnp.dot(
            h_prev, whh_ref[...], preferred_element_type=jnp.float32)  # (bc, 4hp)
        i_g = _sigmoid(gates[:, 0 * hp:1 * hp])
        f_g = _sigmoid(gates[:, 1 * hp:2 * hp])
        g_g = jnp.tanh(gates[:, 2 * hp:3 * hp])
        o_g = _sigmoid(gates[:, 3 * hp:4 * hp])
        c_new = f_g * c_prev + i_g * g_g
        h_new = o_g * jnp.tanh(c_new)
        # Batch-major, lane-dense store: one (bc, 1, hp) sublane-strided write
        # per step; the vocab projection then reads (Bp*T, Hp) contiguously.
        h_out_ref[:, pl.ds(t, 1), :] = (
            h_new.astype(h_out_ref.dtype).reshape(bc, 1, hp))
        return (h_new.astype(jnp.bfloat16), c_new)

    init = (jnp.zeros((bc, hp), jnp.bfloat16), jnp.zeros((bc, hp), jnp.float32))
    jax.lax.fori_loop(0, seq_len, step, init, unroll=unroll)


def lstm_recurrence(gx_tbg, whh_t, *, batch_chunk, vmem_limit,
                    out_dtype=jnp.bfloat16):
    """gx_tbg: (T, Bp, 4Hp) bf16; whh_t: (Hp, 4Hp) bf16 -> h (Bp, T, Hp)."""
    T, Bp, G = gx_tbg.shape
    Hp = whh_t.shape[0]
    n_chunks = Bp // batch_chunk
    # Full unroll only for tiny gate tiles; otherwise cap it to bound vreg
    # pressure / code size on the serial critical path.
    unroll = T if batch_chunk * G <= 16 * 1024 else min(T, 4)
    kernel = functools.partial(_lstm_recurrence_kernel, unroll=max(1, unroll))
    # TODO(synk): weight-stationary MXU driving (matmul_push_rhs/acc_lhs/pop)
    # for W_hh would help v5e further; left as a follow-up.
    return pl.pallas_call(
        kernel,
        out_shape=jax.ShapeDtypeStruct((Bp, T, Hp), out_dtype),
        grid_spec=pltpu.PrefetchScalarGridSpec(
            num_scalar_prefetch=0,
            grid=(n_chunks,),
            in_specs=[
                pl.BlockSpec((T, batch_chunk, G), lambda b: (0, b, 0)),
                pl.BlockSpec((Hp, G), lambda b: (0, 0)),
            ],
            out_specs=pl.BlockSpec((batch_chunk, T, Hp), lambda b: (b, 0, 0)),
        ),
        compiler_params=pltpu.CompilerParams(
            dimension_semantics=("parallel",),   # batch chunks -> both TCs on v7x
            vmem_limit_bytes=vmem_limit,
        ),
    )(gx_tbg, whh_t)


# --------------------------------------------------------------------------
# Forward (jitted, params passed as a pytree; static config via partial).
# --------------------------------------------------------------------------
class _Cfg(NamedTuple):
    E: int
    H: int
    V: int
    Ep: int
    Hp: int
    Vp: int
    vmem_limit: int
    vmem_capacity: int


def _plan_batch(B, T, Hp, vmem_capacity):
    """Pick (Bp, batch_chunk) so the recurrence's double-buffered blocks fit
    ~45% of VMEM, and both TensorCores get a chunk when the batch allows."""
    budget = int(0.45 * vmem_capacity)
    fixed = 2 * (Hp * 4 * Hp) * 2                       # whh, dbl-buffered, bf16
    per_row = 2 * (T * 4 * Hp + T * Hp) * 2             # gx + h blocks, dbl-buf, bf16
    bc_cap = max(8, ((budget - fixed) // max(per_row, 1)) // 8 * 8)
    Bp8 = _round_up(B, 8)
    n_chunks = max(1, -(-Bp8 // bc_cap))
    if Bp8 >= 16:
        n_chunks = max(n_chunks, 2)                      # occupy both v7x TCs
    Bp = _round_up(B, 8 * n_chunks)
    return Bp, Bp // n_chunks


def _decoder_forward(params, features, captions, *, cfg):
    B, E = features.shape
    T = captions.shape[1]      # features step + (L-1) embedded tokens = L steps
    Ep, Hp, Vp = cfg.Ep, cfg.Hp, cfg.Vp
    Bp, bc = _plan_batch(B, T, Hp, cfg.vmem_capacity)

    # Embedding gather straight to bf16, assembled time-major.
    emb_t = jnp.take(params["embed_bf16"], jnp.transpose(captions[:, :-1]),
                     axis=0)                                        # (T-1, B, E)
    x_t = jnp.concatenate(
        [features[None, :, :].astype(jnp.bfloat16), emb_t], axis=0)  # (T, B, E)
    x_t = jnp.pad(x_t, ((0, 0), (0, Bp - B), (0, Ep - E)))           # (T, Bp, Ep)

    # 1) Hoisted input projection + bias: one big MXU matmul, bf16 output.
    gx = matmul_bias(x_t.reshape(T * Bp, Ep), params["wih_t"], params["bias"],
                     out_dtype=jnp.bfloat16, vmem_limit=cfg.vmem_limit)
    gx = gx.reshape(T, Bp, 4 * Hp)

    # 2) Serial LSTM recurrence; emits h batch-major (Bp, T, Hp) in bf16.
    h = lstm_recurrence(gx, params["whh_t"], batch_chunk=bc,
                        vmem_limit=cfg.vmem_limit)

    # 3) Hoisted vocab projection -> batch-first logits (no transpose needed).
    logits = matmul_bias(h.reshape(Bp * T, Hp), params["wout_t"], params["bout"],
                         out_dtype=jnp.float32, vmem_limit=cfg.vmem_limit)
    return logits.reshape(Bp, T, Vp)[:B, :, :cfg.V]


class DecoderRNNPallas:
    def __init__(self, embed_size, hidden_size, vocab_size, num_layers=1, key=None):
        # TODO(synk): only num_layers=1 implemented (matches the module default).
        assert num_layers == 1
        self.embed_size, self.hidden_size, self.vocab_size = (
            embed_size, hidden_size, vocab_size)
        key = jax.random.PRNGKey(42) if key is None else key
        ks = jax.random.split(key, 7)
        s = 0.1
        self.embed_w = s * jax.random.normal(ks[0], (vocab_size, embed_size), jnp.float32)
        self.w_ih = s * jax.random.normal(ks[1], (4 * hidden_size, embed_size), jnp.float32)
        self.w_hh = s * jax.random.normal(ks[2], (4 * hidden_size, hidden_size), jnp.float32)
        self.b_ih = s * jax.random.normal(ks[3], (4 * hidden_size,), jnp.float32)
        self.b_hh = s * jax.random.normal(ks[4], (4 * hidden_size,), jnp.float32)
        self.w_out = s * jax.random.normal(ks[5], (vocab_size, hidden_size), jnp.float32)
        self.b_out = s * jax.random.normal(ks[6], (vocab_size,), jnp.float32)

        E, H, V = embed_size, hidden_size, vocab_size
        Ep, Hp, Vp = _round_up(E, 128), _round_up(H, 128), _round_up(V, 128)
        cap = _tpu_vmem_capacity_bytes()
        self._cfg = _Cfg(E=E, H=H, V=V, Ep=Ep, Hp=Hp, Vp=Vp,
                         vmem_limit=int(0.75 * cap), vmem_capacity=cap)

        # ---- one-time weight prep: per-gate zero padding, transpose, bf16 ----
        # Padded gate rows / bias lanes are zero -> padded hidden units stay 0.
        def pad_gate_rows(w):                              # (4H, C) -> (4Hp, C)
            blocks = [jnp.pad(w[g * H:(g + 1) * H], ((0, Hp - H), (0, 0)))
                      for g in range(4)]
            return jnp.concatenate(blocks, axis=0)

        wih = jnp.pad(pad_gate_rows(self.w_ih), ((0, 0), (0, Ep - E)))      # (4Hp, Ep)
        whh = pad_gate_rows(jnp.pad(self.w_hh, ((0, 0), (0, Hp - H))))      # (4Hp, Hp)
        b = self.b_ih + self.b_hh
        bias = jnp.concatenate([jnp.pad(b[g * H:(g + 1) * H], (0, Hp - H))
                                for g in range(4)])                          # (4Hp,)
        self._params = {
            "embed_bf16": self.embed_w.astype(jnp.bfloat16),                 # (V, E)
            "wih_t": jnp.transpose(wih).astype(jnp.bfloat16),                # (Ep, 4Hp)
            "whh_t": jnp.transpose(whh).astype(jnp.bfloat16),                # (Hp, 4Hp)
            "bias": bias.reshape(1, 4 * Hp).astype(jnp.float32),
            "wout_t": jnp.transpose(
                jnp.pad(self.w_out, ((0, Vp - V), (0, Hp - H)))
            ).astype(jnp.bfloat16),                                          # (Hp, Vp)
            "bout": jnp.pad(self.b_out, (0, Vp - V)).reshape(1, Vp).astype(jnp.float32),
        }
        self._jit_forward = jax.jit(functools.partial(_decoder_forward, cfg=self._cfg))

    def forward(self, features, captions):
        """features: (B, E) f32; captions: (B, L) int32 -> (B, L, V) logits."""
        return self._jit_forward(self._params, features, captions)

    # TODO(synk): greedy `sample()` (host-side argmax loop) not implemented.


# --------------------------------------------------------------------------
# Pure-JAX f32 reference (lax.scan LSTM) for correctness check.
# --------------------------------------------------------------------------
def _reference_forward(model, features, captions):
    H = model.hidden_size
    embedded = jnp.take(model.embed_w, captions[:, :-1], axis=0)
    inp = jnp.concatenate([features[:, None, :], embedded], axis=1)   # (B, T, E)
    x_tbe = jnp.transpose(inp, (1, 0, 2))
    b = model.b_ih + model.b_hh

    def step(carry, x_t):
        h, c = carry
        gates = x_t @ model.w_ih.T + h @ model.w_hh.T + b
        i = jax.nn.sigmoid(gates[:, 0 * H:1 * H])
        f = jax.nn.sigmoid(gates[:, 1 * H:2 * H])
        g = jnp.tanh(gates[:, 2 * H:3 * H])
        o = jax.nn.sigmoid(gates[:, 3 * H:4 * H])
        c = f * c + i * g
        h = o * jnp.tanh(c)
        return (h, c), h

    B = features.shape[0]
    init = (jnp.zeros((B, H), jnp.float32), jnp.zeros((B, H), jnp.float32))
    _, hs = jax.lax.scan(step, init, x_tbe)                 # (T, B, H)
    logits = hs @ model.w_out.T + model.b_out               # (T, B, V)
    return jnp.transpose(logits, (1, 0, 2))


if __name__ == "__main__":
    batch = 2
    embed_size = 16
    hidden_size = 32
    vocab_size = 32
    cap_len = 8        # LSTM runs T = cap_len steps (features + cap_len-1 tokens)

    key = jax.random.PRNGKey(0)
    k_feat, k_cap = jax.random.split(key)
    features = jax.random.normal(k_feat, (batch, embed_size), jnp.float32)
    captions = jax.random.randint(k_cap, (batch, cap_len), 0, vocab_size, jnp.int32)

    model = DecoderRNNPallas(embed_size, hidden_size, vocab_size, num_layers=1)

    out = jax.block_until_ready(model.forward(features, captions))
    assert out.shape == (batch, cap_len, vocab_size), out.shape

    ref = jax.block_until_ready(_reference_forward(model, features, captions))
    # bf16 MXU inputs / bf16 gx+h intermediates vs f32 reference.
    np.testing.assert_allclose(np.asarray(out), np.asarray(ref), rtol=2e-2, atol=2e-2)

    print("KERNEL_OK")
</pallas_src>

<mosaic_0001>
module attributes {stable_mosaic.version = 11 : i64} {
  func.func @_matmul_bias_kernel(%arg0: i32, %arg1: i32, %arg2: memref<64x128xbf16, #tpu.memory_space<vmem>>, %arg3: memref<128x128xbf16, #tpu.memory_space<vmem>>, %arg4: memref<1x128xf32, #tpu.memory_space<vmem>>, %arg5: memref<64x128xf32, #tpu.memory_space<vmem>>) attributes {dimension_semantics = [#tpu.dimension_semantics<parallel>, #tpu.dimension_semantics<parallel>], iteration_bounds = array<i64: 1, 1>, scalar_prefetch = 0 : i64, scratch_operands = 0 : i64, tpu.core_type = #tpu.core_type<tc>, window_params = [{transform_indices = @transform_0, window_bounds = array<i64: 64, 128>}, {transform_indices = @transform_1, window_bounds = array<i64: 128, 128>}, {transform_indices = @transform_2, window_bounds = array<i64: 1, 128>}, {transform_indices = @transform_3, window_bounds = array<i64: 64, 128>}]} {
    %c0 = arith.constant 0 : index
    %c0_0 = arith.constant 0 : index
    %0 = vector.load %arg2[%c0, %c0_0] : memref<64x128xbf16, #tpu.memory_space<vmem>>, vector<64x128xbf16>
    %c0_1 = arith.constant 0 : index
    %c0_2 = arith.constant 0 : index
    %1 = vector.load %arg3[%c0_1, %c0_2] : memref<128x128xbf16, #tpu.memory_space<vmem>>, vector<128x128xbf16>
    %cst = arith.constant dense<0.000000e+00> : vector<64x128xf32>
    %2 = tpu.matmul %0, %1, %cst {dimension_numbers = #tpu.dot_dimension_numbers<[1], [0], [0], [1], [0, 0, 1, 1], [], []>} : vector<64x128xbf16>, vector<128x128xbf16>, vector<64x128xf32> -> vector<64x128xf32>
    %c0_3 = arith.constant 0 : index
    %c0_4 = arith.constant 0 : index
    %3 = vector.load %arg4[%c0_3, %c0_4] : memref<1x128xf32, #tpu.memory_space<vmem>>, vector<1x128xf32>
    %4 = vector.broadcast %3 : vector<1x128xf32> to vector<64x128xf32>
    %5 = arith.addf %2, %4 : vector<64x128xf32>
    %c0_5 = arith.constant 0 : index
    %c0_6 = arith.constant 0 : index
    %6 = vector.load %arg5[%c0_5, %c0_6] : memref<64x128xf32, #tpu.memory_space<vmem>>, vector<64x128xf32>
    tpu.vector_store %arg5[%c0_5, %c0_6], %5 {strides = array<i32>} : memref<64x128xf32, #tpu.memory_space<vmem>>, vector<64x128xf32>,
    return
  }
  func.func @transform_0(%arg0: i32, %arg1: i32) -> (i32, i32) {
    %c0_i32 = arith.constant 0 : i32
    %c0_i32_0 = arith.constant 0 : i32
    return %arg0, %c0_i32 : i32, i32
  }
  func.func @transform_1(%arg0: i32, %arg1: i32) -> (i32, i32) {
    %c0_i32 = arith.constant 0 : i32
    %c0_i32_0 = arith.constant 0 : i32
    return %c0_i32, %arg1 : i32, i32
  }
  func.func @transform_2(%arg0: i32, %arg1: i32) -> (i32, i32) {
    %c0_i32 = arith.constant 0 : i32
    %c0_i32_0 = arith.constant 0 : i32
    return %c0_i32, %arg1 : i32, i32
  }
  func.func @transform_3(%arg0: i32, %arg1: i32) -> (i32, i32) {
    %c0_i32 = arith.constant 0 : i32
    return %arg0, %arg1 : i32, i32
  }
}

module attributes {stable_mosaic.version = 11 : i64} {
  func.func @_matmul_bias_kernel(%arg0: i32, %arg1: i32, %arg2: memref<64x128xbf16, #tpu.memory_space<vmem>>, %arg3: memref<128x512xbf16, #tpu.memory_space<vmem>>, %arg4: memref<1x512xf32, #tpu.memory_space<vmem>>, %arg5: memref<64x512xbf16, #tpu.memory_space<vmem>>) attributes {dimension_semantics = [#tpu.dimension_semantics<parallel>, #tpu.dimension_semantics<parallel>], iteration_bounds = array<i64: 1, 1>, scalar_prefetch = 0 : i64, scratch_operands = 0 : i64, tpu.core_type = #tpu.core_type<tc>, window_params = [{transform_indices = @transform_0, window_bounds = array<i64: 64, 128>}, {transform_indices = @transform_1, window_bounds = array<i64: 128, 512>}, {transform_indices = @transform_2, window_bounds = array<i64: 1, 512>}, {transform_indices = @transform_3, window_bounds = array<i64: 64, 512>}]} {
    %c0 = arith.constant 0 : index
    %c0_0 = arith.constant 0 : index
    %0 = vector.load %arg2[%c0, %c0_0] : memref<64x128xbf16, #tpu.memory_space<vmem>>, vector<64x128xbf16>
    %c0_1 = arith.constant 0 : index
    %c0_2 = arith.constant 0 : index
    %1 = vector.load %arg3[%c0_1, %c0_2] : memref<128x512xbf16, #tpu.memory_space<vmem>>, vector<128x512xbf16>
    %cst = arith.constant dense<0.000000e+00> : vector<64x512xf32>
    %2 = tpu.matmul %0, %1, %cst {dimension_numbers = #tpu.dot_dimension_numbers<[1], [0], [0], [1], [0, 0, 1, 1], [], []>} : vector<64x128xbf16>, vector<128x512xbf16>, vector<64x512xf32> -> vector<64x512xf32>
    %c0_3 = arith.constant 0 : index
    %c0_4 = arith.constant 0 : index
    %3 = vector.load %arg4[%c0_3, %c0_4] : memref<1x512xf32, #tpu.memory_space<vmem>>, vector<1x512xf32>
    %4 = vector.broadcast %3 : vector<1x512xf32> to vector<64x512xf32>
    %5 = arith.addf %2, %4 : vector<64x512xf32>
    %6 = arith.truncf %5 : vector<64x512xf32> to vector<64x512xbf16>
    %c0_5 = arith.constant 0 : index
    %c0_6 = arith.constant 0 : index
    %7 = vector.load %arg5[%c0_5, %c0_6] : memref<64x512xbf16, #tpu.memory_space<vmem>>, vector<64x512xbf16>
    tpu.vector_store %arg5[%c0_5, %c0_6], %6 {strides = array<i32>} : memref<64x512xbf16, #tpu.memory_space<vmem>>, vector<64x512xbf16>,
    return
  }
  func.func @transform_0(%arg0: i32, %arg1: i32) -> (i32, i32) {
    %c0_i32 = arith.constant 0 : i32
    %c0_i32_0 = arith.constant 0 : i32
    return %arg0, %c0_i32 : i32, i32
  }
  func.func @transform_1(%arg0: i32, %arg1: i32) -> (i32, i32) {
    %c0_i32 = arith.constant 0 : i32
    %c0_i32_0 = arith.constant 0 : i32
    return %c0_i32, %arg1 : i32, i32
  }
  func.func @transform_2(%arg0: i32, %arg1: i32) -> (i32, i32) {
    %c0_i32 = arith.constant 0 : i32
    %c0_i32_0 = arith.constant 0 : i32
    return %c0_i32, %arg1 : i32, i32
  }
  func.func @transform_3(%arg0: i32, %arg1: i32) -> (i32, i32) {
    %c0_i32 = arith.constant 0 : i32
    return %arg0, %arg1 : i32, i32
  }
}

module attributes {stable_mosaic.version = 11 : i64} {
  func.func @_lstm_recurrence_kernel(%arg0: i32, %arg1: memref<8x8x512xbf16, #tpu.memory_space<vmem>>, %arg2: memref<128x512xbf16, #tpu.memory_space<vmem>>, %arg3: memref<8x8x128xbf16, #tpu.memory_space<vmem>>) attributes {dimension_semantics = [#tpu.dimension_semantics<parallel>], iteration_bounds = array<i64: 1>, scalar_prefetch = 0 : i64, scratch_operands = 0 : i64, tpu.core_type = #tpu.core_type<tc>, window_params = [{transform_indices = @transform_0, window_bounds = array<i64: 8, 8, 512>}, {pipeline_mode = #tpu.pipeline_mode<synchronous>, transform_indices = @transform_1, window_bounds = array<i64: 128, 512>}, {transform_indices = @transform_2, window_bounds = array<i64: 8, 8, 128>}]} {
    %cst = arith.constant 0.000000e+00 : bf16
    %0 = vector.broadcast %cst : bf16 to vector<8x128xbf16>
    %cst_0 = arith.constant 0.000000e+00 : f32
    %1 = vector.broadcast %cst_0 : f32 to vector<8x128xf32>
    %c0_i32 = arith.constant 0 : i32
    %2 = arith.index_cast %c0_i32 : i32 to index
    %c0 = arith.constant 0 : index
    %c0_1 = arith.constant 0 : index
    %3 = vector.load %arg1[%2, %c0, %c0_1] : memref<8x8x512xbf16, #tpu.memory_space<vmem>>, vector<1x8x512xbf16>
    %4 = vector.shape_cast %3 : vector<1x8x512xbf16> to vector<8x512xbf16>
    %5 = arith.extf %4 : vector<8x512xbf16> to vector<8x512xf32>
    %c0_2 = arith.constant 0 : index
    %c0_3 = arith.constant 0 : index
    %6 = vector.load %arg2[%c0_2, %c0_3] : memref<128x512xbf16, #tpu.memory_space<vmem>>, vector<128x512xbf16>
    %cst_4 = arith.constant dense<0.000000e+00> : vector<8x512xf32>
    %7 = tpu.matmul %0, %6, %cst_4 {dimension_numbers = #tpu.dot_dimension_numbers<[1], [0], [0], [1], [0, 0, 1, 1], [], []>} : vector<8x128xbf16>, vector<128x512xbf16>, vector<8x512xf32> -> vector<8x512xf32>
    %8 = arith.addf %5, %7 : vector<8x512xf32>
    %9 = vector.extract_strided_slice %8 {offsets = [0, 0], sizes = [8, 128], strides = [1, 1]} : vector<8x512xf32> to vector<8x128xf32>
    %cst_5 = arith.constant 5.000000e-01 : f32
    %10 = vector.broadcast %cst_5 : f32 to vector<8x128xf32>
    %11 = arith.mulf %10, %9 : vector<8x128xf32>
    %12 = math.tanh %11 : vector<8x128xf32>
    %cst_6 = arith.constant 1.000000e+00 : f32
    %13 = vector.broadcast %cst_6 : f32 to vector<8x128xf32>
    %14 = arith.addf %12, %13 : vector<8x128xf32>
    %cst_7 = arith.constant 5.000000e-01 : f32
    %15 = vector.broadcast %cst_7 : f32 to vector<8x128xf32>
    %16 = arith.mulf %15, %14 : vector<8x128xf32>
    %17 = vector.extract_strided_slice %8 {offsets = [0, 128], sizes = [8, 128], strides = [1, 1]} : vector<8x512xf32> to vector<8x128xf32>
    %cst_8 = arith.constant 5.000000e-01 : f32
    %18 = vector.broadcast %cst_8 : f32 to vector<8x128xf32>
    %19 = arith.mulf %18, %17 : vector<8x128xf32>
    %20 = math.tanh %19 : vector<8x128xf32>
    %cst_9 = arith.constant 1.000000e+00 : f32
    %21 = vector.broadcast %cst_9 : f32 to vector<8x128xf32>
    %22 = arith.addf %20, %21 : vector<8x128xf32>
    %cst_10 = arith.constant 5.000000e-01 : f32
    %23 = vector.broadcast %cst_10 : f32 to vector<8x128xf32>
    %24 = arith.mulf %23, %22 : vector<8x128xf32>
    %25 = vector.extract_strided_slice %8 {offsets = [0, 256], sizes = [8, 128], strides = [1, 1]} : vector<8x512xf32> to vector<8x128xf32>
    %26 = math.tanh %25 : vector<8x128xf32>
    %27 = vector.extract_strided_slice %8 {offsets = [0, 384], sizes = [8, 128], strides = [1, 1]} : vector<8x512xf32> to vector<8x128xf32>
    %cst_11 = arith.constant 5.000000e-01 : f32
    %28 = vector.broadcast %cst_11 : f32 to vector<8x128xf32>
    %29 = arith.mulf %28, %27 : vector<8x128xf32>
    %30 = math.tanh %29 : vector<8x128xf32>
    %cst_12 = arith.constant 1.000000e+00 : f32
    %31 = vector.broadcast %cst_12 : f32 to vector<8x128xf32>
    %32 = arith.addf %30, %31 : vector<8x128xf32>
    %cst_13 = arith.constant 5.000000e-01 : f32
    %33 = vector.broadcast %cst_13 : f32 to vector<8x128xf32>
    %34 = arith.mulf %33, %32 : vector<8x128xf32>
    %35 = arith.mulf %24, %1 : vector<8x128xf32>
    %36 = arith.mulf %16, %26 : vector<8x128xf32>
    %37 = arith.addf %35, %36 : vector<8x128xf32>
    %38 = math.tanh %37 : vector<8x128xf32>
    %39 = arith.mulf %34, %38 : vector<8x128xf32>
    %40 = arith.truncf %39 : vector<8x128xf32> to vector<8x128xbf16>
    %41 = vector.shape_cast %40 : vector<8x128xbf16> to vector<8x1x128xbf16>
    %c0_14 = arith.constant 0 : index
    %42 = arith.index_cast %c0_i32 : i32 to index
    %c0_15 = arith.constant 0 : index
    %43 = vector.load %arg3[%c0_14, %42, %c0_15] : memref<8x8x128xbf16, #tpu.memory_space<vmem>>, vector<8x1x128xbf16>
    tpu.vector_store %arg3[%c0_14, %42, %c0_15], %41 {strides = array<i32>} : memref<8x8x128xbf16, #tpu.memory_space<vmem>>, vector<8x1x128xbf16>,
    %44 = arith.truncf %39 : vector<8x128xf32> to vector<8x128xbf16>
    %c1_i32 = arith.constant 1 : i32
    %45 = arith.index_cast %c1_i32 : i32 to index
    %c0_16 = arith.constant 0 : index
    %c0_17 = arith.constant 0 : index
    %46 = vector.load %arg1[%45, %c0_16, %c0_17] : memref<8x8x512xbf16, #tpu.memory_space<vmem>>, vector<1x8x512xbf16>
    %47 = vector.shape_cast %46 : vector<1x8x512xbf16> to vector<8x512xbf16>
    %48 = arith.extf %47 : vector<8x512xbf16> to vector<8x512xf32>
    %c0_18 = arith.constant 0 : index
    %c0_19 = arith.constant 0 : index
    %49 = vector.load %arg2[%c0_18, %c0_19] : memref<128x512xbf16, #tpu.memory_space<vmem>>, vector<128x512xbf16>
    %cst_20 = arith.constant dense<0.000000e+00> : vector<8x512xf32>
    %50 = tpu.matmul %44, %49, %cst_20 {dimension_numbers = #tpu.dot_dimension_numbers<[1], [0], [0], [1], [0, 0, 1, 1], [], []>} : vector<8x128xbf16>, vector<128x512xbf16>, vector<8x512xf32> -> vector<8x512xf32>
    %51 = arith.addf %48, %50 : vector<8x512xf32>
    %52 = vector.extract_strided_slice %51 {offsets = [0, 0], sizes = [8, 128], strides = [1, 1]} : vector<8x512xf32> to vector<8x128xf32>
    %cst_21 = arith.constant 5.000000e-01 : f32
    %53 = vector.broadcast %cst_21 : f32 to vector<8x128xf32>
    %54 = arith.mulf %53, %52 : vector<8x128xf32>
    %55 = math.tanh %54 : vector<8x128xf32>
    %cst_22 = arith.constant 1.000000e+00 : f32
    %56 = vector.broadcast %cst_22 : f32 to vector<8x128xf32>
    %57 = arith.addf %55, %56 : vector<8x128xf32>
    %cst_23 = arith.constant 5.000000e-01 : f32
    %58 = vector.broadcast %cst_23 : f32 to vector<8x128xf32>
    %59 = arith.mulf %58, %57 : vector<8x128xf32>
    %60 = vector.extract_strided_slice %51 {offsets = [0, 128], sizes = [8, 128], strides = [1, 1]} : vector<8x512xf32> to vector<8x128xf32>
    %cst_24 = arith.constant 5.000000e-01 : f32
    %61 = vector.broadcast %cst_24 : f32 to vector<8x128xf32>
    %62 = arith.mulf %61, %60 : vector<8x128xf32>
    %63 = math.tanh %62 : vector<8x128xf32>
    %cst_25 = arith.constant 1.000000e+00 : f32
    %64 = vector.broadcast %cst_25 : f32 to vector<8x128xf32>
    %65 = arith.addf %63, %64 : vector<8x128xf32>
    %cst_26 = arith.constant 5.000000e-01 : f32
    %66 = vector.broadcast %cst_26 : f32 to vector<8x128xf32>
    %67 = arith.mulf %66, %65 : vector<8x128xf32>
    %68 = vector.extract_strided_slice %51 {offsets = [0, 256], sizes = [8, 128], strides = [1, 1]} : vector<8x512xf32> to vector<8x128xf32>
    %69 = math.tanh %68 : vector<8x128xf32>
    %70 = vector.extract_strided_slice %51 {offsets = [0, 384], sizes = [8, 128], strides = [1, 1]} : vector<8x512xf32> to vector<8x128xf32>
    %cst_27 = arith.constant 5.000000e-01 : f32
    %71 = vector.broadcast %cst_27 : f32 to vector<8x128xf32>
    %72 = arith.mulf %71, %70 : vector<8x128xf32>
    %73 = math.tanh %72 : vector<8x128xf32>
    %cst_28 = arith.constant 1.000000e+00 : f32
    %74 = vector.broadcast %cst_28 : f32 to vector<8x128xf32>
    %75 = arith.addf %73, %74 : vector<8x128xf32>
    %cst_29 = arith.constant 5.000000e-01 : f32
    %76 = vector.broadcast %cst_29 : f32 to vector<8x128xf32>
    %77 = arith.mulf %76, %75 : vector<8x128xf32>
    %78 = arith.mulf %67, %37 : vector<8x128xf32>
    %79 = arith.mulf %59, %69 : vector<8x128xf32>
    %80 = arith.addf %78, %79 : vector<8x128xf32>
    %81 = math.tanh %80 : vector<8x128xf32>
    %82 = arith.mulf %77, %81 : vector<8x128xf32>
    %83 = arith.truncf %82 : vector<8x128xf32> to vector<8x128xbf16>
    %84 = vector.shape_cast %83 : vector<8x128xbf16> to vector<8x1x128xbf16>
    %c0_30 = arith.constant 0 : index
    %85 = arith.index_cast %c1_i32 : i32 to index
    %c0_31 = arith.constant 0 : index
    %86 = vector.load %arg3[%c0_30, %85, %c0_31] : memref<8x8x128xbf16, #tpu.memory_space<vmem>>, vector<8x1x128xbf16>
    tpu.vector_store %arg3[%c0_30, %85, %c0_31], %84 {strides = array<i32>} : memref<8x8x128xbf16, #tpu.memory_space<vmem>>, vector<8x1x128xbf16>,
    %87 = arith.truncf %82 : vector<8x128xf32> to vector<8x128xbf16>
    %c2_i32 = arith.constant 2 : i32
    %88 = arith.index_cast %c2_i32 : i32 to index
    %c0_32 = arith.constant 0 : index
    %c0_33 = arith.constant 0 : index
    %89 = vector.load %arg1[%88, %c0_32, %c0_33] : memref<8x8x512xbf16, #tpu.memory_space<vmem>>, vector<1x8x512xbf16>
    %90 = vector.shape_cast %89 : vector<1x8x512xbf16> to vector<8x512xbf16>
    %91 = arith.extf %90 : vector<8x512xbf16> to vector<8x512xf32>
    %c0_34 = arith.constant 0 : index
    %c0_35 = arith.constant 0 : index
    %92 = vector.load %arg2[%c0_34, %c0_35] : memref<128x512xbf16, #tpu.memory_space<vmem>>, vector<128x512xbf16>
    %cst_36 = arith.constant dense<0.000000e+00> : vector<8x512xf32>
    %93 = tpu.matmul %87, %92, %cst_36 {dimension_numbers = #tpu.dot_dimension_numbers<[1], [0], [0], [1], [0, 0, 1, 1], [], []>} : vector<8x128xbf16>, vector<128x512xbf16>, vector<8x512xf32> -> vector<8x512xf32>
    %94 = arith.addf %91, %93 : vector<8x512xf32>
    %95 = vector.extract_strided_slice %94 {offsets = [0, 0], sizes = [8, 128], strides = [1, 1]} : vector<8x512xf32> to vector<8x128xf32>
    %cst_37 = arith.constant 5.000000e-01 : f32
    %96 = vector.broadcast %cst_37 : f32 to vector<8x128xf32>
    %97 = arith.mulf %96, %95 : vector<8x128xf32>
    %98 = math.tanh %97 : vector<8x128xf32>
    %cst_38 = arith.constant 1.000000e+00 : f32
    %99 = vector.broadcast %cst_38 : f32 to vector<8x128xf32>
    %100 = arith.addf %98, %99 : vector<8x128xf32>
    %cst_39 = arith.constant 5.000000e-01 : f32
    %101 = vector.broadcast %cst_39 : f32 to vector<8x128xf32>
    %102 = arith.mulf %101, %100 : vector<8x128xf32>
    %103 = vector.extract_strided_slice %94 {offsets = [0, 128], sizes = [8, 128], strides = [1, 1]} : vector<8x512xf32> to vector<8x128xf32>
    %cst_40 = arith.constant 5.000000e-01 : f32
    %104 = vector.broadcast %cst_40 : f32 to vector<8x128xf32>
    %105 = arith.mulf %104, %103 : vector<8x128xf32>
    %106 = math.tanh %105 : vector<8x128xf32>
    %cst_41 = arith.constant 1.000000e+00 : f32
    %107 = vector.broadcast %cst_41 : f32 to vector<8x128xf32>
    %108 = arith.addf %106, %107 : vector<8x128xf32>
    %cst_42 = arith.constant 5.000000e-01 : f32
    %109 = vector.broadcast %cst_42 : f32 to vector<8x128xf32>
    %110 = arith.mulf %109, %108 : vector<8x128xf32>
    %111 = vector.extract_strided_slice %94 {offsets = [0, 256], sizes = [8, 128], strides = [1, 1]} : vector<8x512xf32> to vector<8x128xf32>
    %112 = math.tanh %111 : vector<8x128xf32>
    %113 = vector.extract_strided_slice %94 {offsets = [0, 384], sizes = [8, 128], strides = [1, 1]} : vector<8x512xf32> to vector<8x128xf32>
    %cst_43 = arith.constant 5.000000e-01 : f32
    %114 = vector.broadcast %cst_43 : f32 to vector<8x128xf32>
    %115 = arith.mulf %114, %113 : vector<8x128xf32>
    %116 = math.tanh %115 : vector<8x128xf32>
    %cst_44 = arith.constant 1.000000e+00 : f32
    %117 = vector.broadcast %cst_44 : f32 to vector<8x128xf32>
    %118 = arith.addf %116, %117 : vector<8x128xf32>
    %cst_45 = arith.constant 5.000000e-01 : f32
    %119 = vector.broadcast %cst_45 : f32 to vector<8x128xf32>
    %120 = arith.mulf %119, %118 : vector<8x128xf32>
    %121 = arith.mulf %110, %80 : vector<8x128xf32>
    %122 = arith.mulf %102, %112 : vector<8x128xf32>
    %123 = arith.addf %121, %122 : vector<8x128xf32>
    %124 = math.tanh %123 : vector<8x128xf32>
    %125 = arith.mulf %120, %124 : vector<8x128xf32>
    %126 = arith.truncf %125 : vector<8x128xf32> to vector<8x128xbf16>
    %127 = vector.shape_cast %126 : vector<8x128xbf16> to vector<8x1x128xbf16>
    %c0_46 = arith.constant 0 : index
    %128 = arith.index_cast %c2_i32 : i32 to index
    %c0_47 = arith.constant 0 : index
    %129 = vector.load %arg3[%c0_46, %128, %c0_47] : memref<8x8x128xbf16, #tpu.memory_space<vmem>>, vector<8x1x128xbf16>
    tpu.vector_store %arg3[%c0_46, %128, %c0_47], %127 {strides = array<i32>} : memref<8x8x128xbf16, #tpu.memory_space<vmem>>, vector<8x1x128xbf16>,
    %130 = arith.truncf %125 : vector<8x128xf32> to vector<8x128xbf16>
    %c3_i32 = arith.constant 3 : i32
    %131 = arith.index_cast %c3_i32 : i32 to index
    %c0_48 = arith.constant 0 : index
    %c0_49 = arith.constant 0 : index
    %132 = vector.load %arg1[%131, %c0_48, %c0_49] : memref<8x8x512xbf16, #tpu.memory_space<vmem>>, vector<1x8x512xbf16>
    %133 = vector.shape_cast %132 : vector<1x8x512xbf16> to vector<8x512xbf16>
    %134 = arith.extf %133 : vector<8x512xbf16> to vector<8x512xf32>
    %c0_50 = arith.constant 0 : index
    %c0_51 = arith.constant 0 : index
    %135 = vector.load %arg2[%c0_50, %c0_51] : memref<128x512xbf16, #tpu.memory_space<vmem>>, vector<128x512xbf16>
    %cst_52 = arith.constant dense<0.000000e+00> : vector<8x512xf32>
    %136 = tpu.matmul %130, %135, %cst_52 {dimension_numbers = #tpu.dot_dimension_numbers<[1], [0], [0], [1], [0, 0, 1, 1], [], []>} : vector<8x128xbf16>, vector<128x512xbf16>, vector<8x512xf32> -> vector<8x512xf32>
    %137 = arith.addf %134, %136 : vector<8x512xf32>
    %138 = vector.extract_strided_slice %137 {offsets = [0, 0], sizes = [8, 128], strides = [1, 1]} : vector<8x512xf32> to vector<8x128xf32>
    %cst_53 = arith.constant 5.000000e-01 : f32
    %139 = vector.broadcast %cst_53 : f32 to vector<8x128xf32>
    %140 = arith.mulf %139, %138 : vector<8x128xf32>
    %141 = math.tanh %140 : vector<8x128xf32>
    %cst_54 = arith.constant 1.000000e+00 : f32
    %142 = vector.broadcast %cst_54 : f32 to vector<8x128xf32>
    %143 = arith.addf %141, %142 : vector<8x128xf32>
    %cst_55 = arith.constant 5.000000e-01 : f32
    %144 = vector.broadcast %cst_55 : f32 to vector<8x128xf32>
    %145 = arith.mulf %144, %143 : vector<8x128xf32>
    %146 = vector.extract_strided_slice %137 {offsets = [0, 128], sizes = [8, 128], strides = [1, 1]} : vector<8x512xf32> to vector<8x128xf32>
    %cst_56 = arith.constant 5.000000e-01 : f32
    %147 = vector.broadcast %cst_56 : f32 to vector<8x128xf32>
    %148 = arith.mulf %147, %146 : vector<8x128xf32>
    %149 = math.tanh %148 : vector<8x128xf32>
    %cst_57 = arith.constant 1.000000e+00 : f32
    %150 = vector.broadcast %cst_57 : f32 to vector<8x128xf32>
    %151 = arith.addf %149, %150 : vector<8x128xf32>
    %cst_58 = arith.constant 5.000000e-01 : f32
    %152 = vector.broadcast %cst_58 : f32 to vector<8x128xf32>
    %153 = arith.mulf %152, %151 : vector<8x128xf32>
    %154 = vector.extract_strided_slice %137 {offsets = [0, 256], sizes = [8, 128], strides = [1, 1]} : vector<8x512xf32> to vector<8x128xf32>
    %155 = math.tanh %154 : vector<8x128xf32>
    %156 = vector.extract_strided_slice %137 {offsets = [0, 384], sizes = [8, 128], strides = [1, 1]} : vector<8x512xf32> to vector<8x128xf32>
    %cst_59 = arith.constant 5.000000e-01 : f32
    %157 = vector.broadcast %cst_59 : f32 to vector<8x128xf32>
    %158 = arith.mulf %157, %156 : vector<8x128xf32>
    %159 = math.tanh %158 : vector<8x128xf32>
    %cst_60 = arith.constant 1.000000e+00 : f32
    %160 = vector.broadcast %cst_60 : f32 to vector<8x128xf32>
    %161 = arith.addf %159, %160 : vector<8x128xf32>
    %cst_61 = arith.constant 5.000000e-01 : f32
    %162 = vector.broadcast %cst_61 : f32 to vector<8x128xf32>
    %163 = arith.mulf %162, %161 : vector<8x128xf32>
    %164 = arith.mulf %153, %123 : vector<8x128xf32>
    %165 = arith.mulf %145, %155 : vector<8x128xf32>
    %166 = arith.addf %164, %165 : vector<8x128xf32>
    %167 = math.tanh %166 : vector<8x128xf32>
    %168 = arith.mulf %163, %167 : vector<8x128xf32>
    %169 = arith.truncf %168 : vector<8x128xf32> to vector<8x128xbf16>
    %170 = vector.shape_cast %169 : vector<8x128xbf16> to vector<8x1x128xbf16>
    %c0_62 = arith.constant 0 : index
    %171 = arith.index_cast %c3_i32 : i32 to index
    %c0_63 = arith.constant 0 : index
    %172 = vector.load %arg3[%c0_62, %171, %c0_63] : memref<8x8x128xbf16, #tpu.memory_space<vmem>>, vector<8x1x128xbf16>
    tpu.vector_store %arg3[%c0_62, %171, %c0_63], %170 {strides = array<i32>} : memref<8x8x128xbf16, #tpu.memory_space<vmem>>, vector<8x1x128xbf16>,
    %173 = arith.truncf %168 : vector<8x128xf32> to vector<8x128xbf16>
    %c4_i32 = arith.constant 4 : i32
    %174 = arith.index_cast %c4_i32 : i32 to index
    %c0_64 = arith.constant 0 : index
    %c0_65 = arith.constant 0 : index
    %175 = vector.load %arg1[%174, %c0_64, %c0_65] : memref<8x8x512xbf16, #tpu.memory_space<vmem>>, vector<1x8x512xbf16>
    %176 = vector.shape_cast %175 : vector<1x8x512xbf16> to vector<8x512xbf16>
    %177 = arith.extf %176 : vector<8x512xbf16> to vector<8x512xf32>
    %c0_66 = arith.constant 0 : index
    %c0_67 = arith.constant 0 : index
    %178 = vector.load %arg2[%c0_66, %c0_67] : memref<128x512xbf16, #tpu.memory_space<vmem>>, vector<128x512xbf16>
    %cst_68 = arith.constant dense<0.000000e+00> : vector<8x512xf32>
    %179 = tpu.matmul %173, %178, %cst_68 {dimension_numbers = #tpu.dot_dimension_numbers<[1], [0], [0], [1], [0, 0, 1, 1], [], []>} : vector<8x128xbf16>, vector<128x512xbf16>, vector<8x512xf32> -> vector<8x512xf32>
    %180 = arith.addf %177, %179 : vector<8x512xf32>
    %181 = vector.extract_strided_slice %180 {offsets = [0, 0], sizes = [8, 128], strides = [1, 1]} : vector<8x512xf32> to vector<8x128xf32>
    %cst_69 = arith.constant 5.000000e-01 : f32
    %182 = vector.broadcast %cst_69 : f32 to vector<8x128xf32>
    %183 = arith.mulf %182, %181 : vector<8x128xf32>
    %184 = math.tanh %183 : vector<8x128xf32>
    %cst_70 = arith.constant 1.000000e+00 : f32
    %185 = vector.broadcast %cst_70 : f32 to vector<8x128xf32>
    %186 = arith.addf %184, %185 : vector<8x128xf32>
    %cst_71 = arith.constant 5.000000e-01 : f32
    %187 = vector.broadcast %cst_71 : f32 to vector<8x128xf32>
    %188 = arith.mulf %187, %186 : vector<8x128xf32>
    %189 = vector.extract_strided_slice %180 {offsets = [0, 128], sizes = [8, 128], strides = [1, 1]} : vector<8x512xf32> to vector<8x128xf32>
    %cst_72 = arith.constant 5.000000e-01 : f32
    %190 = vector.broadcast %cst_72 : f32 to vector<8x128xf32>
    %191 = arith.mulf %190, %189 : vector<8x128xf32>
    %192 = math.tanh %191 : vector<8x128xf32>
    %cst_73 = arith.constant 1.000000e+00 : f32
    %193 = vector.broadcast %cst_73 : f32 to vector<8x128xf32>
    %194 = arith.addf %192, %193 : vector<8x128xf32>
    %cst_74 = arith.constant 5.000000e-01 : f32
    %195 = vector.broadcast %cst_74 : f32 to vector<8x128xf32>
    %196 = arith.mulf %195, %194 : vector<8x128xf32>
    %197 = vector.extract_strided_slice %180 {offsets = [0, 256], sizes = [8, 128], strides = [1, 1]} : vector<8x512xf32> to vector<8x128xf32>
    %198 = math.tanh %197 : vector<8x128xf32>
    %199 = vector.extract_strided_slice %180 {offsets = [0, 384], sizes = [8, 128], strides = [1, 1]} : vector<8x512xf32> to vector<8x128xf32>
    %cst_75 = arith.constant 5.000000e-01 : f32
    %200 = vector.broadcast %cst_75 : f32 to vector<8x128xf32>
    %201 = arith.mulf %200, %199 : vector<8x128xf32>
    %202 = math.tanh %201 : vector<8x128xf32>
    %cst_76 = arith.constant 1.000000e+00 : f32
    %203 = vector.broadcast %cst_76 : f32 to vector<8x128xf32>
    %204 = arith.addf %202, %203 : vector<8x128xf32>
    %cst_77 = arith.constant 5.000000e-01 : f32
    %205 = vector.broadcast %cst_77 : f32 to vector<8x128xf32>
    %206 = arith.mulf %205, %204 : vector<8x128xf32>
    %207 = arith.mulf %196, %166 : vector<8x128xf32>
    %208 = arith.mulf %188, %198 : vector<8x128xf32>
    %209 = arith.addf %207, %208 : vector<8x128xf32>
    %210 = math.tanh %209 : vector<8x128xf32>
    %211 = arith.mulf %206, %210 : vector<8x128xf32>
    %212 = arith.truncf %211 : vector<8x128xf32> to vector<8x128xbf16>
    %213 = vector.shape_cast %212 : vector<8x128xbf16> to vector<8x1x128xbf16>
    %c0_78 = arith.constant 0 : index
    %214 = arith.index_cast %c4_i32 : i32 to index
    %c0_79 = arith.constant 0 : index
    %215 = vector.load %arg3[%c0_78, %214, %c0_79] : memref<8x8x128xbf16, #tpu.memory_space<vmem>>, vector<8x1x128xbf16>
    tpu.vector_store %arg3[%c0_78, %214, %c0_79], %213 {strides = array<i32>} : memref<8x8x128xbf16, #tpu.memory_space<vmem>>, vector<8x1x128xbf16>,
    %216 = arith.truncf %211 : vector<8x128xf32> to vector<8x128xbf16>
    %c5_i32 = arith.constant 5 : i32
    %217 = arith.index_cast %c5_i32 : i32 to index
    %c0_80 = arith.constant 0 : index
    %c0_81 = arith.constant 0 : index
    %218 = vector.load %arg1[%217, %c0_80, %c0_81] : memref<8x8x512xbf16, #tpu.memory_space<vmem>>, vector<1x8x512xbf16>
    %219 = vector.shape_cast %218 : vector<1x8x512xbf16> to vector<8x512xbf16>
    %220 = arith.extf %219 : vector<8x512xbf16> to vector<8x512xf32>
    %c0_82 = arith.constant 0 : index
    %c0_83 = arith.constant 0 : index
    %221 = vector.load %arg2[%c0_82, %c0_83] : memref<128x512xbf16, #tpu.memory_space<vmem>>, vector<128x512xbf16>
    %cst_84 = arith.constant dense<0.000000e+00> : vector<8x512xf32>
    %222 = tpu.matmul %216, %221, %cst_84 {dimension_numbers = #tpu.dot_dimension_numbers<[1], [0], [0], [1], [0, 0, 1, 1], [], []>} : vector<8x128xbf16>, vector<128x512xbf16>, vector<8x512xf32> -> vector<8x512xf32>
    %223 = arith.addf %220, %222 : vector<8x512xf32>
    %224 = vector.extract_strided_slice %223 {offsets = [0, 0], sizes = [8, 128], strides = [1, 1]} : vector<8x512xf32> to vector<8x128xf32>
    %cst_85 = arith.constant 5.000000e-01 : f32
    %225 = vector.broadcast %cst_85 : f32 to vector<8x128xf32>
    %226 = arith.mulf %225, %224 : vector<8x128xf32>
    %227 = math.tanh %226 : vector<8x128xf32>
    %cst_86 = arith.constant 1.000000e+00 : f32
    %228 = vector.broadcast %cst_86 : f32 to vector<8x128xf32>
    %229 = arith.addf %227, %228 : vector<8x128xf32>
    %cst_87 = arith.constant 5.000000e-01 : f32
    %230 = vector.broadcast %cst_87 : f32 to vector<8x128xf32>
    %231 = arith.mulf %230, %229 : vector<8x128xf32>
    %232 = vector.extract_strided_slice %223 {offsets = [0, 128], sizes = [8, 128], strides = [1, 1]} : vector<8x512xf32> to vector<8x128xf32>
    %cst_88 = arith.constant 5.000000e-01 : f32
    %233 = vector.broadcast %cst_88 : f32 to vector<8x128xf32>
    %234 = arith.mulf %233, %232 : vector<8x128xf32>
    %235 = math.tanh %234 : vector<8x128xf32>
    %cst_89 = arith.constant 1.000000e+00 : f32
    %236 = vector.broadcast %cst_89 : f32 to vector<8x128xf32>
    %237 = arith.addf %235, %236 : vector<8x128xf32>
    %cst_90 = arith.constant 5.000000e-01 : f32
    %238 = vector.broadcast %cst_90 : f32 to vector<8x128xf32>
    %239 = arith.mulf %238, %237 : vector<8x128xf32>
    %240 = vector.extract_strided_slice %223 {offsets = [0, 256], sizes = [8, 128], strides = [1, 1]} : vector<8x512xf32> to vector<8x128xf32>
    %241 = math.tanh %240 : vector<8x128xf32>
    %242 = vector.extract_strided_slice %223 {offsets = [0, 384], sizes = [8, 128], strides = [1, 1]} : vector<8x512xf32> to vector<8x128xf32>
    %cst_91 = arith.constant 5.000000e-01 : f32
    %243 = vector.broadcast %cst_91 : f32 to vector<8x128xf32>
    %244 = arith.mulf %243, %242 : vector<8x128xf32>
    %245 = math.tanh %244 : vector<8x128xf32>
    %cst_92 = arith.constant 1.000000e+00 : f32
    %246 = vector.broadcast %cst_92 : f32 to vector<8x128xf32>
    %247 = arith.addf %245, %246 : vector<8x128xf32>
    %cst_93 = arith.constant 5.000000e-01 : f32
    %248 = vector.broadcast %cst_93 : f32 to vector<8x128xf32>
    %249 = arith.mulf %248, %247 : vector<8x128xf32>
    %250 = arith.mulf %239, %209 : vector<8x128xf32>
    %251 = arith.mulf %231, %241 : vector<8x128xf32>
    %252 = arith.addf %250, %251 : vector<8x128xf32>
    %253 = math.tanh %252 : vector<8x128xf32>
    %254 = arith.mulf %249, %253 : vector<8x128xf32>
    %255 = arith.truncf %254 : vector<8x128xf32> to vector<8x128xbf16>
    %256 = vector.shape_cast %255 : vector<8x128xbf16> to vector<8x1x128xbf16>
    %c0_94 = arith.constant 0 : index
    %257 = arith.index_cast %c5_i32 : i32 to index
    %c0_95 = arith.constant 0 : index
    %258 = vector.load %arg3[%c0_94, %257, %c0_95] : memref<8x8x128xbf16, #tpu.memory_space<vmem>>, vector<8x1x128xbf16>
    tpu.vector_store %arg3[%c0_94, %257, %c0_95], %256 {strides = array<i32>} : memref<8x8x128xbf16, #tpu.memory_space<vmem>>, vector<8x1x128xbf16>,
    %259 = arith.truncf %254 : vector<8x128xf32> to vector<8x128xbf16>
    %c6_i32 = arith.constant 6 : i32
    %260 = arith.index_cast %c6_i32 : i32 to index
    %c0_96 = arith.constant 0 : index
    %c0_97 = arith.constant 0 : index
    %261 = vector.load %arg1[%260, %c0_96, %c0_97] : memref<8x8x512xbf16, #tpu.memory_space<vmem>>, vector<1x8x512xbf16>
    %262 = vector.shape_cast %261 : vector<1x8x512xbf16> to vector<8x512xbf16>
    %263 = arith.extf %262 : vector<8x512xbf16> to vector<8x512xf32>
    %c0_98 = arith.constant 0 : index
    %c0_99 = arith.constant 0 : index
    %264 = vector.load %arg2[%c0_98, %c0_99] : memref<128x512xbf16, #tpu.memory_space<vmem>>, vector<128x512xbf16>
    %cst_100 = arith.constant dense<0.000000e+00> : vector<8x512xf32>
    %265 = tpu.matmul %259, %264, %cst_100 {dimension_numbers = #tpu.dot_dimension_numbers<[1], [0], [0], [1], [0, 0, 1, 1], [], []>} : vector<8x128xbf16>, vector<128x512xbf16>, vector<8x512xf32> -> vector<8x512xf32>
    %266 = arith.addf %263, %265 : vector<8x512xf32>
    %267 = vector.extract_strided_slice %266 {offsets = [0, 0], sizes = [8, 128], strides = [1, 1]} : vector<8x512xf32> to vector<8x128xf32>
    %cst_101 = arith.constant 5.000000e-01 : f32
    %268 = vector.broadcast %cst_101 : f32 to vector<8x128xf32>
    %269 = arith.mulf %268, %267 : vector<8x128xf32>
    %270 = math.tanh %269 : vector<8x128xf32>
    %cst_102 = arith.constant 1.000000e+00 : f32
    %271 = vector.broadcast %cst_102 : f32 to vector<8x128xf32>
    %272 = arith.addf %270, %271 : vector<8x128xf32>
    %cst_103 = arith.constant 5.000000e-01 : f32
    %273 = vector.broadcast %cst_103 : f32 to vector<8x128xf32>
    %274 = arith.mulf %273, %272 : vector<8x128xf32>
    %275 = vector.extract_strided_slice %266 {offsets = [0, 128], sizes = [8, 128], strides = [1, 1]} : vector<8x512xf32> to vector<8x128xf32>
    %cst_104 = arith.constant 5.000000e-01 : f32
    %276 = vector.broadcast %cst_104 : f32 to vector<8x128xf32>
    %277 = arith.mulf %276, %275 : vector<8x128xf32>
    %278 = math.tanh %277 : vector<8x128xf32>
    %cst_105 = arith.constant 1.000000e+00 : f32
    %279 = vector.broadcast %cst_105 : f32 to vector<8x128xf32>
    %280 = arith.addf %278, %279 : vector<8x128xf32>
    %cst_106 = arith.constant 5.000000e-01 : f32
    %281 = vector.broadcast %cst_106 : f32 to vector<8x128xf32>
    %282 = arith.mulf %281, %280 : vector<8x128xf32>
    %283 = vector.extract_strided_slice %266 {offsets = [0, 256], sizes = [8, 128], strides = [1, 1]} : vector<8x512xf32> to vector<8x128xf32>
    %284 = math.tanh %283 : vector<8x128xf32>
    %285 = vector.extract_strided_slice %266 {offsets = [0, 384], sizes = [8, 128], strides = [1, 1]} : vector<8x512xf32> to vector<8x128xf32>
    %cst_107 = arith.constant 5.000000e-01 : f32
    %286 = vector.broadcast %cst_107 : f32 to vector<8x128xf32>
    %287 = arith.mulf %286, %285 : vector<8x128xf32>
    %288 = math.tanh %287 : vector<8x128xf32>
    %cst_108 = arith.constant 1.000000e+00 : f32
    %289 = vector.broadcast %cst_108 : f32 to vector<8x128xf32>
    %290 = arith.addf %288, %289 : vector<8x128xf32>
    %cst_109 = arith.constant 5.000000e-01 : f32
    %291 = vector.broadcast %cst_109 : f32 to vector<8x128xf32>
    %292 = arith.mulf %291, %290 : vector<8x128xf32>
    %293 = arith.mulf %282, %252 : vector<8x128xf32>
    %294 = arith.mulf %274, %284 : vector<8x128xf32>
    %295 = arith.addf %293, %294 : vector<8x128xf32>
    %296 = math.tanh %295 : vector<8x128xf32>
    %297 = arith.mulf %292, %296 : vector<8x128xf32>
    %298 = arith.truncf %297 : vector<8x128xf32> to vector<8x128xbf16>
    %299 = vector.shape_cast %298 : vector<8x128xbf16> to vector<8x1x128xbf16>
    %c0_110 = arith.constant 0 : index
    %300 = arith.index_cast %c6_i32 : i32 to index
    %c0_111 = arith.constant 0 : index
    %301 = vector.load %arg3[%c0_110, %300, %c0_111] : memref<8x8x128xbf16, #tpu.memory_space<vmem>>, vector<8x1x128xbf16>
    tpu.vector_store %arg3[%c0_110, %300, %c0_111], %299 {strides = array<i32>} : memref<8x8x128xbf16, #tpu.memory_space<vmem>>, vector<8x1x128xbf16>,
    %302 = arith.truncf %297 : vector<8x128xf32> to vector<8x128xbf16>
    %c7_i32 = arith.constant 7 : i32
    %303 = arith.index_cast %c7_i32 : i32 to index
    %c0_112 = arith.constant 0 : index
    %c0_113 = arith.constant 0 : index
    %304 = vector.load %arg1[%303, %c0_112, %c0_113] : memref<8x8x512xbf16, #tpu.memory_space<vmem>>, vector<1x8x512xbf16>
    %305 = vector.shape_cast %304 : vector<1x8x512xbf16> to vector<8x512xbf16>
    %306 = arith.extf %305 : vector<8x512xbf16> to vector<8x512xf32>
    %c0_114 = arith.constant 0 : index
    %c0_115 = arith.constant 0 : index
    %307 = vector.load %arg2[%c0_114, %c0_115] : memref<128x512xbf16, #tpu.memory_space<vmem>>, vector<128x512xbf16>
    %cst_116 = arith.constant dense<0.000000e+00> : vector<8x512xf32>
    %308 = tpu.matmul %302, %307, %cst_116 {dimension_numbers = #tpu.dot_dimension_numbers<[1], [0], [0], [1], [0, 0, 1, 1], [], []>} : vector<8x128xbf16>, vector<128x512xbf16>, vector<8x512xf32> -> vector<8x512xf32>
    %309 = arith.addf %306, %308 : vector<8x512xf32>
    %310 = vector.extract_strided_slice %309 {offsets = [0, 0], sizes = [8, 128], strides = [1, 1]} : vector<8x512xf32> to vector<8x128xf32>
    %cst_117 = arith.constant 5.000000e-01 : f32
    %311 = vector.broadcast %cst_117 : f32 to vector<8x128xf32>
    %312 = arith.mulf %311, %310 : vector<8x128xf32>
    %313 = math.tanh %312 : vector<8x128xf32>
    %cst_118 = arith.constant 1.000000e+00 : f32
    %314 = vector.broadcast %cst_118 : f32 to vector<8x128xf32>
    %315 = arith.addf %313, %314 : vector<8x128xf32>
    %cst_119 = arith.constant 5.000000e-01 : f32
    %316 = vector.broadcast %cst_119 : f32 to vector<8x128xf32>
    %317 = arith.mulf %316, %315 : vector<8x128xf32>
    %318 = vector.extract_strided_slice %309 {offsets = [0, 128], sizes = [8, 128], strides = [1, 1]} : vector<8x512xf32> to vector<8x128xf32>
    %cst_120 = arith.constant 5.000000e-01 : f32
    %319 = vector.broadcast %cst_120 : f32 to vector<8x128xf32>
    %320 = arith.mulf %319, %318 : vector<8x128xf32>
    %321 = math.tanh %320 : vector<8x128xf32>
    %cst_121 = arith.constant 1.000000e+00 : f32
    %322 = vector.broadcast %cst_121 : f32 to vector<8x128xf32>
    %323 = arith.addf %321, %322 : vector<8x128xf32>
    %cst_122 = arith.constant 5.000000e-01 : f32
    %324 = vector.broadcast %cst_122 : f32 to vector<8x128xf32>
    %325 = arith.mulf %324, %323 : vector<8x128xf32>
    %326 = vector.extract_strided_slice %309 {offsets = [0, 256], sizes = [8, 128], strides = [1, 1]} : vector<8x512xf32> to vector<8x128xf32>
    %327 = math.tanh %326 : vector<8x128xf32>
    %328 = vector.extract_strided_slice %309 {offsets = [0, 384], sizes = [8, 128], strides = [1, 1]} : vector<8x512xf32> to vector<8x128xf32>
    %cst_123 = arith.constant 5.000000e-01 : f32
    %329 = vector.broadcast %cst_123 : f32 to vector<8x128xf32>
    %330 = arith.mulf %329, %328 : vector<8x128xf32>
    %331 = math.tanh %330 : vector<8x128xf32>
    %cst_124 = arith.constant 1.000000e+00 : f32
    %332 = vector.broadcast %cst_124 : f32 to vector<8x128xf32>
    %333 = arith.addf %331, %332 : vector<8x128xf32>
    %cst_125 = arith.constant 5.000000e-01 : f32
    %334 = vector.broadcast %cst_125 : f32 to vector<8x128xf32>
    %335 = arith.mulf %334, %333 : vector<8x128xf32>
    %336 = arith.mulf %325, %295 : vector<8x128xf32>
    %337 = arith.mulf %317, %327 : vector<8x128xf32>
    %338 = arith.addf %336, %337 : vector<8x128xf32>
    %339 = math.tanh %338 : vector<8x128xf32>
    %340 = arith.mulf %335, %339 : vector<8x128xf32>
    %341 = arith.truncf %340 : vector<8x128xf32> to vector<8x128xbf16>
    %342 = vector.shape_cast %341 : vector<8x128xbf16> to vector<8x1x128xbf16>
    %c0_126 = arith.constant 0 : index
    %343 = arith.index_cast %c7_i32 : i32 to index
    %c0_127 = arith.constant 0 : index
    %344 = vector.load %arg3[%c0_126, %343, %c0_127] : memref<8x8x128xbf16, #tpu.memory_space<vmem>>, vector<8x1x128xbf16>
    tpu.vector_store %arg3[%c0_126, %343, %c0_127], %342 {strides = array<i32>} : memref<8x8x128xbf16, #tpu.memory_space<vmem>>, vector<8x1x128xbf16>,
    %345 = arith.truncf %340 : vector<8x128xf32> to vector<8x128xbf16>
    %c8_i32 = arith.constant 8 : i32
    return
  }
  func.func @transform_0(%arg0: i32) -> (i32, i32, i32) {
    %c0_i32 = arith.constant 0 : i32
    %c0_i32_0 = arith.constant 0 : i32
    %c0_i32_1 = arith.constant 0 : i32
    return %c0_i32, %arg0, %c0_i32_0 : i32, i32, i32
  }
  func.func @transform_1(%arg0: i32) -> (i32, i32) {
    %c0_i32 = arith.constant 0 : i32
    %c0_i32_0 = arith.constant 0 : i32
    %c0_i32_1 = arith.constant 0 : i32
    return %c0_i32, %c0_i32_0 : i32, i32
  }
  func.func @transform_2(%arg0: i32) -> (i32, i32, i32) {
    %c0_i32 = arith.constant 0 : i32
    %c0_i32_0 = arith.constant 0 : i32
    %c0_i32_1 = arith.constant 0 : i32
    return %arg0, %c0_i32, %c0_i32_0 : i32, i32, i32
  }
}

</mosaic_0001>

<llo_original>
// kernel: _decoder_forward.5
$region0: #{_decoder_forward.5}
  #allocation0 [shape = 'u32[]', space=smem, size = 0x4, offset = 0x4, fixed_abs, tag = 'smem constant byte address 0x4 - core index']
  #allocation1 [shape = 'u32[72,128]{1,0:T(1,128)}', space=vmem, size = 0x9000, scoped, tag = 'internal scratch']
  %s0 = inlined_call_operand.vmem [shape: bf16[64,128], index: 0, kind: input, shape index: {}]
  %s1 = inlined_call_operand.vmem [shape: bf16[128,128], index: 1, kind: input, shape index: {}]
  %s2 = inlined_call_operand.vmem [shape: f32[1,128], index: 2, kind: input, shape index: {}]
  %s3 = inlined_call_operand.vmem [shape: f32[64,128], index: 3, kind: output, shape index: {}]
  %s4 = sld [smem:[#allocation0]]
  $region22: #{_decoder_forward.5} parent=0
    _
  %s6 = ssub.s32 1, %s4
  %s7 = scalar_select 0, %s6, %s4
  // Predicated region
  $region2: #{_decoder_forward.5} parent=0 // pred_check
    _
  $region3: #{_decoder_forward.5} parent=0 // pred_check_branch
    %9 = sbr.rel (0) target = $region5
  $region4: #{_decoder_forward.5} parent=0 // pred_region
    _
  $region5: #{_decoder_forward.5} parent=0 // pred_fallthru
    _
  // Predicated region
  $region6: #{_decoder_forward.5} parent=0 // pred_check
    _
  $region7: #{_decoder_forward.5} parent=0 // pred_check_branch
    %11 = sbr.rel (0) target = $region9
  $region8: #{_decoder_forward.5} parent=0 // pred_region
    _
  $region9: #{_decoder_forward.5} parent=0 // pred_fallthru
    _
  // Predicated region
  $region10: #{_decoder_forward.5} parent=0 // pred_check
    _
  $region11: #{_decoder_forward.5} parent=0 // pred_check_branch
    %13 = sbr.rel (0) target = $region13
  $region12: #{_decoder_forward.5} parent=0 // pred_region
    _
  $region13: #{_decoder_forward.5} parent=0 // pred_fallthru
    _
  %v14 = vld [vmem:[%s0] sm:$0xf]
  %v15 = vld [vmem:[%s0 + $0x4] sm:$0xf]
  %v16 = vld [vmem:[%s0 + $0x8] sm:$0xf]
  %v17 = vld [vmem:[%s0 + $0xc] sm:$0xf]
  %v18 = vld [vmem:[%s0 + $0x10] sm:$0xf]
  %v19 = vld [vmem:[%s0 + $0x14] sm:$0xf]
  %v20 = vld [vmem:[%s0 + $0x18] sm:$0xf]
  %v21 = vld [vmem:[%s0 + $0x1c] sm:$0xf]
  %v22 = vld [vmem:[%s1] sm:$0xf]
  %v23 = vld [vmem:[%s1 + $0x4] sm:$0xf]
  %v24 = vld [vmem:[%s1 + $0x8] sm:$0xf]
  %v25 = vld [vmem:[%s1 + $0xc] sm:$0xf]
  %v26 = vld [vmem:[%s1 + $0x10] sm:$0xf]
  %v27 = vld [vmem:[%s1 + $0x14] sm:$0xf]
  %v28 = vld [vmem:[%s1 + $0x18] sm:$0xf]
  %v29 = vld [vmem:[%s1 + $0x1c] sm:$0xf]
  %v30 = vld [vmem:[%s1 + $0x20] sm:$0xf]
  %v31 = vld [vmem:[%s1 + $0x24] sm:$0xf]
  %v32 = vld [vmem:[%s1 + $0x28] sm:$0xf]
  %v33 = vld [vmem:[%s1 + $0x2c] sm:$0xf]
  %v34 = vld [vmem:[%s1 + $0x30] sm:$0xf]
  %v35 = vld [vmem:[%s1 + $0x34] sm:$0xf]
  %v36 = vld [vmem:[%s1 + $0x38] sm:$0xf]
  %v37 = vld [vmem:[%s1 + $0x3c] sm:$0xf]
  %v38 = vld [vmem:[%s2] sm:$0x1]
  %v40 = vperm.slane %v38, 0
  %v50 = vunpack.c.l.b16 %v14
  %v51 = vunpack.c.l.b16 %v15
  %v52 = vunpack.c.l.b16 %v16
  %v53 = vunpack.c.l.b16 %v17
  %v54 = vunpack.c.l.b16 %v18
  %v55 = vunpack.c.l.b16 %v19
  %v56 = vunpack.c.l.b16 %v20
  %v57 = vunpack.c.l.b16 %v21
  %v58 = vpack.c.b16 %v51, %v50
  %v59 = vpack.c.b16 %v53, %v52
  %v60 = vpack.c.b16 %v55, %v54
  %v61 = vpack.c.b16 %v57, %v56
  %v82 = vunpack.c.l.b16 %v22
  %v83 = vunpack.c.l.b16 %v23
  %v84 = vunpack.c.l.b16 %v24
  %v85 = vunpack.c.l.b16 %v25
  %v86 = vunpack.c.l.b16 %v26
  %v87 = vunpack.c.l.b16 %v27
  %v88 = vunpack.c.l.b16 %v28
  %v89 = vunpack.c.l.b16 %v29
  %v90 = vunpack.c.l.b16 %v30
  %v91 = vunpack.c.l.b16 %v31
  %v92 = vunpack.c.l.b16 %v32
  %v93 = vunpack.c.l.b16 %v33
  %v94 = vunpack.c.l.b16 %v34
  %v95 = vunpack.c.l.b16 %v35
  %v96 = vunpack.c.l.b16 %v36
  %v97 = vunpack.c.l.b16 %v37
  %v98 = vpack.c.b16 %v83, %v82
  %v99 = vpack.c.b16 %v85, %v84
  %v100 = vpack.c.b16 %v87, %v86
  %v101 = vpack.c.b16 %v89, %v88
  %v102 = vpack.c.b16 %v91, %v90
  %v103 = vpack.c.b16 %v93, %v92
  %v104 = vpack.c.b16 %v95, %v94
  %v105 = vpack.c.b16 %v97, %v96
  %114 = vmatpush.bf16.msra.mxu0 %v105
  %115 = vmatpush.bf16.msra.mxu0 %v104
  %116 = vmatpush.bf16.msra.mxu0 %v103
  %117 = vmatpush.bf16.msra.mxu0 %v102
  %118 = vmatpush.bf16.msra.mxu0 %v101
  %119 = vmatpush.bf16.msra.mxu0 %v100
  %120 = vmatpush.bf16.msra.mxu0 %v99
  %121 = vmatpush.bf16.msra.mxu0 %v98
  %122 = vmatmul.bf16.gmra.mxu0 %v58
  %v123 = vpop.f32.mrf.mxu0
  %v124 = vadd.f32 %v40, %v123
  %v125 = vpop.f32.mrf.mxu0
  %v126 = vadd.f32 %v40, %v125
  %127 = vmatmul.bf16.gmra.mxu0 %v59
  %v128 = vpop.f32.mrf.mxu0
  %v129 = vadd.f32 %v40, %v128
  %v130 = vpop.f32.mrf.mxu0
  %v131 = vadd.f32 %v40, %v130
  %132 = vmatmul.bf16.gmra.mxu0 %v60
  %v133 = vpop.f32.mrf.mxu0
  %v134 = vadd.f32 %v40, %v133
  %v135 = vpop.f32.mrf.mxu0
  %v136 = vadd.f32 %v40, %v135
  %137 = vmatmul.bf16.gmra.mxu0 %v61
  %v138 = vpop.f32.mrf.mxu0
  %v139 = vadd.f32 %v40, %v138
  %v140 = vpop.f32.mrf.mxu0
  %v141 = vadd.f32 %v40, %v140
  %142 = vdwg.mxu0
  %143 = vst [vmem:[%s3] sm:$0xff] %v124
  %144 = vst [vmem:[%s3 + $0x8] sm:$0xff] %v126
  %145 = vst [vmem:[%s3 + $0x10] sm:$0xff] %v129
  %146 = vst [vmem:[%s3 + $0x18] sm:$0xff] %v131
  %147 = vst [vmem:[%s3 + $0x20] sm:$0xff] %v134
  %148 = vst [vmem:[%s3 + $0x28] sm:$0xff] %v136
  %149 = vst [vmem:[%s3 + $0x30] sm:$0xff] %v139
  %150 = vst [vmem:[%s3 + $0x38] sm:$0xff] %v141
  // Predicated region
  $region14: #{_decoder_forward.5} parent=0 // pred_check
    _
  $region15: #{_decoder_forward.5} parent=0 // pred_check_branch
    %152 = sbr.rel (0) target = $region17
  $region16: #{_decoder_forward.5} parent=0 // pred_region
    _
  $region17: #{_decoder_forward.5} parent=0 // pred_fallthru
    _
  // Predicated region
  $region18: #{_decoder_forward.5} parent=0 // pred_check
    _
  $region19: #{_decoder_forward.5} parent=0 // pred_check_branch
    %154 = sbr.rel (0) target = $region21
  $region20: #{_decoder_forward.5} parent=0 // pred_region
    _
  $region21: #{_decoder_forward.5} parent=0 // pred_fallthru
    _

// kernel: _decoder_forward.3
$region0: #{_decoder_forward.3}
  #allocation0 [shape = 'u32[]', space=smem, size = 0x4, offset = 0x4, fixed_abs, tag = 'smem constant byte address 0x4 - core index']
  #allocation1 [shape = 'u32[72,128]{1,0:T(1,128)}', space=vmem, size = 0x9000, scoped, tag = 'internal scratch']
  %s0 = inlined_call_operand.vmem [shape: bf16[64,128], index: 0, kind: input, shape index: {}]
  %s1 = inlined_call_operand.hbm [shape: bf16[128,512], index: 1, kind: input, shape index: {}]
  %s2 = inlined_call_operand.vmem [shape: f32[1,512], index: 2, kind: input, shape index: {}]
  %s3 = inlined_call_operand.vmem [shape: bf16[64,512], index: 3, kind: output, shape index: {}]
  %s4 = sld [smem:[#allocation0]]
  $region26: #{_decoder_forward.3} parent=0
    _
  %s6 = ssub.s32 1, %s4
  %s7 = scalar_select 0, %s6, %s4
  $region1: #{_decoder_forward.3} parent=0
    #allocation2 [shape = 'u8[131072]{0}', space=vmem, size = 0x20000, scoped, tag = 'input window, operand 1, single buffered']
    #allocation3 [shape = 's32[1]{0}', space=sflag, size = 0x4, scoped, tag = 'scoped memory for _decoder_forward.3']
    %8 = vsyncpa [#allocation3], 0
    // Predicated region
    $region2: #{_decoder_forward.3} parent=1 // pred_check
      _
    $region3: #{_decoder_forward.3} parent=1 // pred_check_branch
      %10 = sbr.rel (0) target = $region5
    $region4: #{_decoder_forward.3} parent=1 // pred_region
      _
    $region5: #{_decoder_forward.3} parent=1 // pred_fallthru
      _
    // Predicated region
    $region6: #{_decoder_forward.3} parent=1 // pred_check
      _
    $region7: #{_decoder_forward.3} parent=1 // pred_check_branch
      %12 = sbr.rel (0) target = $region9
    $region8: #{_decoder_forward.3} parent=1 // pred_region
      %14 = vsyncadd [#allocation3], 0
      %s15 = sshll.u32 %s1, 4
      %s16 = int_to_ptr.hbm [resolvable:$true] %s15
      %s17 = sshll.u32 [#allocation2], 4
      %s18 = int_to_ptr.vmem [resolvable:$true] %s17
      %23 = dma.hbm_to_vmem [thread:$0]  %s16, 4096, %s18, [#allocation3], 256, 256, 16
    $region9: #{_decoder_forward.3} parent=1 // pred_fallthru
      _
    // Predicated region
    $region10: #{_decoder_forward.3} parent=1 // pred_check
      _
    $region11: #{_decoder_forward.3} parent=1 // pred_check_branch
      %25 = sbr.rel (0) target = $region13
    $region12: #{_decoder_forward.3} parent=1 // pred_region
      _
    $region13: #{_decoder_forward.3} parent=1 // pred_fallthru
      _
    // Predicated region
    $region14: #{_decoder_forward.3} parent=1 // pred_check
      _
    $region15: #{_decoder_forward.3} parent=1 // pred_check_branch
      %27 = sbr.rel (0) target = $region17
    $region16: #{_decoder_forward.3} parent=1 // pred_region
      %29 = dma.done [#allocation3], 4096
    $region17: #{_decoder_forward.3} parent=1 // pred_fallthru
      _
    %v30 = vld [vmem:[%s0] sm:$0xf]
    %v31 = vld [vmem:[%s0 + $0x4] sm:$0xf]
    %v32 = vld [vmem:[%s0 + $0x8] sm:$0xf]
    %v33 = vld [vmem:[%s0 + $0xc] sm:$0xf]
    %v34 = vld [vmem:[%s0 + $0x10] sm:$0xf]
    %v35 = vld [vmem:[%s0 + $0x14] sm:$0xf]
    %v36 = vld [vmem:[%s0 + $0x18] sm:$0xf]
    %v37 = vld [vmem:[%s0 + $0x1c] sm:$0xf]
    %v38 = vld [vmem:[#allocation2] sm:$0xff]
    %v39 = vld [vmem:[#allocation2 + $0x8] sm:$0xff]
    %v40 = vld [vmem:[#allocation2 + $0x10] sm:$0xff]
    %v41 = vld [vmem:[#allocation2 + $0x18] sm:$0xff]
    %v42 = vld [vmem:[#allocation2 + $0x20] sm:$0xff]
    %v43 = vld [vmem:[#allocation2 + $0x28] sm:$0xff]
    %v44 = vld [vmem:[#allocation2 + $0x30] sm:$0xff]
    %v45 = vld [vmem:[#allocation2 + $0x38] sm:$0xff]
    %v46 = vld [vmem:[#allocation2 + $0x40] sm:$0xff]
    %v47 = vld [vmem:[#allocation2 + $0x48] sm:$0xff]
    %v48 = vld [vmem:[#allocation2 + $0x50] sm:$0xff]
    %v49 = vld [vmem:[#allocation2 + $0x58] sm:$0xff]
    %v50 = vld [vmem:[#allocation2 + $0x60] sm:$0xff]
    %v51 = vld [vmem:[#allocation2 + $0x68] sm:$0xff]
    %v52 = vld [vmem:[#allocation2 + $0x70] sm:$0xff]
    %v53 = vld [vmem:[#allocation2 + $0x78] sm:$0xff]
    %v54 = vld [vmem:[#allocation2 + $0x80] sm:$0xff]
    %v55 = vld [vmem:[#allocation2 + $0x88] sm:$0xff]
    %v56 = vld [vmem:[#allocation2 + $0x90] sm:$0xff]
    %v57 = vld [vmem:[#allocation2 + $0x98] sm:$0xff]
    %v58 = vld [vmem:[#allocation2 + $0xa0] sm:$0xff]
    %v59 = vld [vmem:[#allocation2 + $0xa8] sm:$0xff]
    %v60 = vld [vmem:[#allocation2 + $0xb0] sm:$0xff]
    %v61 = vld [vmem:[#allocation2 + $0xb8] sm:$0xff]
    %v62 = vld [vmem:[#allocation2 + $0xc0] sm:$0xff]
    %v63 = vld [vmem:[#allocation2 + $0xc8] sm:$0xff]
    %v64 = vld [vmem:[#allocation2 + $0xd0] sm:$0xff]
    %v65 = vld [vmem:[#allocation2 + $0xd8] sm:$0xff]
    %v66 = vld [vmem:[#allocation2 + $0xe0] sm:$0xff]
    %v67 = vld [vmem:[#allocation2 + $0xe8] sm:$0xff]
    %v68 = vld [vmem:[#allocation2 + $0xf0] sm:$0xff]
    %v69 = vld [vmem:[#allocation2 + $0xf8] sm:$0xff]
    %v70 = vld [vmem:[%s2] sm:$0xf]
    %v72 = vperm.slane %v70, 0
    %v73 = vperm.slane %v70, 1
    %v74 = vperm.slane %v70, 2
    %v75 = vperm.slane %v70, 3
    %v88 = vunpack.c.l.b16 %v30
    %v89 = vunpack.c.l.b16 %v31
    %v90 = vunpack.c.l.b16 %v32
    %v91 = vunpack.c.l.b16 %v33
    %v92 = vunpack.c.l.b16 %v34
    %v93 = vunpack.c.l.b16 %v35
    %v94 = vunpack.c.l.b16 %v36
    %v95 = vunpack.c.l.b16 %v37
    %v96 = vpack.c.b16 %v89, %v88
    %v97 = vpack.c.b16 %v91, %v90
    %v98 = vpack.c.b16 %v93, %v92
    %v99 = vpack.c.b16 %v95, %v94
    %v136 = vunpack.c.l.b16 %v38
    %v137 = vunpack.c.h.b16 %v38
    %v138 = vunpack.c.l.b16 %v39
    %v139 = vunpack.c.h.b16 %v39
    %v140 = vunpack.c.l.b16 %v40
    %v141 = vunpack.c.h.b16 %v40
    %v142 = vunpack.c.l.b16 %v41
    %v143 = vunpack.c.h.b16 %v41
    %v144 = vunpack.c.l.b16 %v42
    %v145 = vunpack.c.h.b16 %v42
    %v146 = vunpack.c.l.b16 %v43
    %v147 = vunpack.c.h.b16 %v43
    %v148 = vunpack.c.l.b16 %v44
    %v149 = vunpack.c.h.b16 %v44
    %v150 = vunpack.c.l.b16 %v45
    %v151 = vunpack.c.h.b16 %v45
    %v152 = vunpack.c.l.b16 %v46
    %v153 = vunpack.c.h.b16 %v46
    %v154 = vunpack.c.l.b16 %v47
    %v155 = vunpack.c.h.b16 %v47
    %v156 = vunpack.c.l.b16 %v48
    %v157 = vunpack.c.h.b16 %v48
    %v158 = vunpack.c.l.b16 %v49
    %v159 = vunpack.c.h.b16 %v49
    %v160 = vunpack.c.l.b16 %v50
    %v161 = vunpack.c.h.b16 %v50
    %v162 = vunpack.c.l.b16 %v51
    %v163 = vunpack.c.h.b16 %v51
    %v164 = vunpack.c.l.b16 %v52
    %v165 = vunpack.c.h.b16 %v52
    %v166 = vunpack.c.l.b16 %v53
    %v167 = vunpack.c.h.b16 %v53
    %v168 = vunpack.c.l.b16 %v54
    %v169 = vunpack.c.h.b16 %v54
    %v170 = vunpack.c.l.b16 %v55
    %v171 = vunpack.c.h.b16 %v55
    %v172 = vunpack.c.l.b16 %v56
    %v173 = vunpack.c.h.b16 %v56
    %v174 = vunpack.c.l.b16 %v57
    %v175 = vunpack.c.h.b16 %v57
    %v176 = vunpack.c.l.b16 %v58
    %v177 = vunpack.c.h.b16 %v58
    %v178 = vunpack.c.l.b16 %v59
    %v179 = vunpack.c.h.b16 %v59
    %v180 = vunpack.c.l.b16 %v60
    %v181 = vunpack.c.h.b16 %v60
    %v182 = vunpack.c.l.b16 %v61
    %v183 = vunpack.c.h.b16 %v61
    %v184 = vunpack.c.l.b16 %v62
    %v185 = vunpack.c.h.b16 %v62
    %v186 = vunpack.c.l.b16 %v63
    %v187 = vunpack.c.h.b16 %v63
    %v188 = vunpack.c.l.b16 %v64
    %v189 = vunpack.c.h.b16 %v64
    %v190 = vunpack.c.l.b16 %v65
    %v191 = vunpack.c.h.b16 %v65
    %v192 = vunpack.c.l.b16 %v66
    %v193 = vunpack.c.h.b16 %v66
    %v194 = vunpack.c.l.b16 %v67
    %v195 = vunpack.c.h.b16 %v67
    %v196 = vunpack.c.l.b16 %v68
    %v197 = vunpack.c.h.b16 %v68
    %v198 = vunpack.c.l.b16 %v69
    %v199 = vunpack.c.h.b16 %v69
    %v200 = vpack.c.b16 %v140, %v136
    %v201 = vpack.c.b16 %v141, %v137
    %v202 = vpack.c.b16 %v142, %v138
    %v203 = vpack.c.b16 %v143, %v139
    %v204 = vpack.c.b16 %v148, %v144
    %v205 = vpack.c.b16 %v149, %v145
    %v206 = vpack.c.b16 %v150, %v146
    %v207 = vpack.c.b16 %v151, %v147
    %v208 = vpack.c.b16 %v156, %v152
    %v209 = vpack.c.b16 %v157, %v153
    %v210 = vpack.c.b16 %v158, %v154
    %v211 = vpack.c.b16 %v159, %v155
    %v212 = vpack.c.b16 %v164, %v160
    %v213 = vpack.c.b16 %v165, %v161
    %v214 = vpack.c.b16 %v166, %v162
    %v215 = vpack.c.b16 %v167, %v163
    %v216 = vpack.c.b16 %v172, %v168
    %v217 = vpack.c.b16 %v173, %v169
    %v218 = vpack.c.b16 %v174, %v170
    %v219 = vpack.c.b16 %v175, %v171
    %v220 = vpack.c.b16 %v180, %v176
    %v221 = vpack.c.b16 %v181, %v177
    %v222 = vpack.c.b16 %v182, %v178
    %v223 = vpack.c.b16 %v183, %v179
    %v224 = vpack.c.b16 %v188, %v184
    %v225 = vpack.c.b16 %v189, %v185
    %v226 = vpack.c.b16 %v190, %v186
    %v227 = vpack.c.b16 %v191, %v187
    %v228 = vpack.c.b16 %v196, %v192
    %v229 = vpack.c.b16 %v197, %v193
    %v230 = vpack.c.b16 %v198, %v194
    %v231 = vpack.c.b16 %v199, %v195
    %264 = vmatpush.bf16.msra.mxu0 %v228
    %265 = vmatpush.bf16.msra.mxu0 %v224
    %266 = vmatpush.bf16.msra.mxu0 %v220
    %267 = vmatpush.bf16.msra.mxu0 %v216
    %268 = vmatpush.bf16.msra.mxu0 %v212
    %269 = vmatpush.bf16.msra.mxu0 %v208
    %270 = vmatpush.bf16.msra.mxu0 %v204
    %271 = vmatpush.bf16.msra.mxu0 %v200
    %272 = vmatmul.bf16.gmra.mxu0 %v96
    %v273 = vpop.f32.mrf.mxu0
    %v274 = vadd.f32 %v72, %v273
    %v275 = vpop.f32.mrf.mxu0
    %v276 = vadd.f32 %v72, %v275
    %277 = vmatmul.bf16.gmra.mxu0 %v97
    %v278 = vpop.f32.mrf.mxu0
    %v279 = vadd.f32 %v72, %v278
    %v280 = vpop.f32.mrf.mxu0
    %v281 = vadd.f32 %v72, %v280
    %282 = vmatmul.bf16.gmra.mxu0 %v98
    %v283 = vpop.f32.mrf.mxu0
    %v284 = vadd.f32 %v72, %v283
    %v285 = vpop.f32.mrf.mxu0
    %v286 = vadd.f32 %v72, %v285
    %287 = vmatmul.bf16.gmra.mxu0 %v99
    %v288 = vpop.f32.mrf.mxu0
    %v289 = vadd.f32 %v72, %v288
    %v290 = vpop.f32.mrf.mxu0
    %v291 = vadd.f32 %v72, %v290
    %292 = vdwg.mxu0
    %293 = vmatpush.bf16.msra.mxu0 %v229
    %294 = vmatpush.bf16.msra.mxu0 %v225
    %295 = vmatpush.bf16.msra.mxu0 %v221
    %296 = vmatpush.bf16.msra.mxu0 %v217
    %297 = vmatpush.bf16.msra.mxu0 %v213
    %298 = vmatpush.bf16.msra.mxu0 %v209
    %299 = vmatpush.bf16.msra.mxu0 %v205
    %300 = vmatpush.bf16.msra.mxu0 %v201
    %301 = vmatmul.bf16.gmra.mxu0 %v96
    %v302 = vpop.f32.mrf.mxu0
    %v303 = vadd.f32 %v73, %v302
    %v304 = vpop.f32.mrf.mxu0
    %v305 = vadd.f32 %v73, %v304
    %306 = vmatmul.bf16.gmra.mxu0 %v97
    %v307 = vpop.f32.mrf.mxu0
    %v308 = vadd.f32 %v73, %v307
    %v309 = vpop.f32.mrf.mxu0
    %v310 = vadd.f32 %v73, %v309
    %311 = vmatmul.bf16.gmra.mxu0 %v98
    %v312 = vpop.f32.mrf.mxu0
    %v313 = vadd.f32 %v73, %v312
    %v314 = vpop.f32.mrf.mxu0
    %v315 = vadd.f32 %v73, %v314
    %316 = vmatmul.bf16.gmra.mxu0 %v99
    %v317 = vpop.f32.mrf.mxu0
    %v318 = vadd.f32 %v73, %v317
    %v319 = vpop.f32.mrf.mxu0
    %v320 = vadd.f32 %v73, %v319
    %321 = vdwg.mxu0
    %322 = vmatpush.bf16.msra.mxu0 %v230
    %323 = vmatpush.bf16.msra.mxu0 %v226
    %324 = vmatpush.bf16.msra.mxu0 %v222
    %325 = vmatpush.bf16.msra.mxu0 %v218
    %326 = vmatpush.bf16.msra.mxu0 %v214
    %327 = vmatpush.bf16.msra.mxu0 %v210
    %328 = vmatpush.bf16.msra.mxu0 %v206
    %329 = vmatpush.bf16.msra.mxu0 %v202
    %330 = vmatmul.bf16.gmra.mxu0 %v96
    %v331 = vpop.f32.mrf.mxu0
    %v332 = vadd.f32 %v74, %v331
    %v333 = vpop.f32.mrf.mxu0
    %v334 = vadd.f32 %v74, %v333
    %335 = vmatmul.bf16.gmra.mxu0 %v97
    %v336 = vpop.f32.mrf.mxu0
    %v337 = vadd.f32 %v74, %v336
    %v338 = vpop.f32.mrf.mxu0
    %v339 = vadd.f32 %v74, %v338
    %340 = vmatmul.bf16.gmra.mxu0 %v98
    %v341 = vpop.f32.mrf.mxu0
    %v342 = vadd.f32 %v74, %v341
    %v343 = vpop.f32.mrf.mxu0
    %v344 = vadd.f32 %v74, %v343
    %345 = vmatmul.bf16.gmra.mxu0 %v99
    %v346 = vpop.f32.mrf.mxu0
    %v347 = vadd.f32 %v74, %v346
    %v348 = vpop.f32.mrf.mxu0
    %v349 = vadd.f32 %v74, %v348
    %350 = vdwg.mxu0
    %351 = vmatpush.bf16.msra.mxu0 %v231
    %352 = vmatpush.bf16.msra.mxu0 %v227
    %353 = vmatpush.bf16.msra.mxu0 %v223
    %354 = vmatpush.bf16.msra.mxu0 %v219
    %355 = vmatpush.bf16.msra.mxu0 %v215
    %356 = vmatpush.bf16.msra.mxu0 %v211
    %357 = vmatpush.bf16.msra.mxu0 %v207
    %358 = vmatpush.bf16.msra.mxu0 %v203
    %359 = vmatmul.bf16.gmra.mxu0 %v96
    %v360 = vpop.f32.mrf.mxu0
    %v361 = vadd.f32 %v75, %v360
    %v362 = vpop.f32.mrf.mxu0
    %v363 = vadd.f32 %v75, %v362
    %364 = vmatmul.bf16.gmra.mxu0 %v97
    %v365 = vpop.f32.mrf.mxu0
    %v366 = vadd.f32 %v75, %v365
    %v367 = vpop.f32.mrf.mxu0
    %v368 = vadd.f32 %v75, %v367
    %369 = vmatmul.bf16.gmra.mxu0 %v98
    %v370 = vpop.f32.mrf.mxu0
    %v371 = vadd.f32 %v75, %v370
    %v372 = vpop.f32.mrf.mxu0
    %v373 = vadd.f32 %v75, %v372
    %374 = vmatmul.bf16.gmra.mxu0 %v99
    %v375 = vpop.f32.mrf.mxu0
    %v376 = vadd.f32 %v75, %v375
    %v377 = vpop.f32.mrf.mxu0
    %v378 = vadd.f32 %v75, %v377
    %379 = vdwg.mxu0
    %v380 = vpack.c.bf16 %v303, %v274
    %v381 = vpack.c.bf16 %v361, %v332
    %v382 = vpack.c.bf16 %v305, %v276
    %v383 = vpack.c.bf16 %v363, %v334
    %v384 = vpack.c.bf16 %v308, %v279
    %v385 = vpack.c.bf16 %v366, %v337
    %v386 = vpack.c.bf16 %v310, %v281
    %v387 = vpack.c.bf16 %v368, %v339
    %v388 = vpack.c.bf16 %v313, %v284
    %v389 = vpack.c.bf16 %v371, %v342
    %v390 = vpack.c.bf16 %v315, %v286
    %v391 = vpack.c.bf16 %v373, %v344
    %v392 = vpack.c.bf16 %v318, %v289
    %v393 = vpack.c.bf16 %v376, %v347
    %v394 = vpack.c.bf16 %v320, %v291
    %v395 = vpack.c.bf16 %v378, %v349
    %396 = vst [vmem:[%s3] sm:$0xff] %v380
    %397 = vst [vmem:[%s3 + $0x8] sm:$0xff] %v381
    %398 = vst [vmem:[%s3 + $0x10] sm:$0xff] %v382
    %399 = vst [vmem:[%s3 + $0x18] sm:$0xff] %v383
    %400 = vst [vmem:[%s3 + $0x20] sm:$0xff] %v384
    %401 = vst [vmem:[%s3 + $0x28] sm:$0xff] %v385
    %402 = vst [vmem:[%s3 + $0x30] sm:$0xff] %v386
    %403 = vst [vmem:[%s3 + $0x38] sm:$0xff] %v387
    %404 = vst [vmem:[%s3 + $0x40] sm:$0xff] %v388
    %405 = vst [vmem:[%s3 + $0x48] sm:$0xff] %v389
    %406 = vst [vmem:[%s3 + $0x50] sm:$0xff] %v390
    %407 = vst [vmem:[%s3 + $0x58] sm:$0xff] %v391
    %408 = vst [vmem:[%s3 + $0x60] sm:$0xff] %v392
    %409 = vst [vmem:[%s3 + $0x68] sm:$0xff] %v393
    %410 = vst [vmem:[%s3 + $0x70] sm:$0xff] %v394
    %411 = vst [vmem:[%s3 + $0x78] sm:$0xff] %v395
    // Predicated region
    $region18: #{_decoder_forward.3} parent=1 // pred_check
      _
    $region19: #{_decoder_forward.3} parent=1 // pred_check_branch
      %413 = sbr.rel (0) target = $region21
    $region20: #{_decoder_forward.3} parent=1 // pred_region
      _
    $region21: #{_decoder_forward.3} parent=1 // pred_fallthru
      _
    // Predicated region
    $region22: #{_decoder_forward.3} parent=1 // pred_check
      _
    $region23: #{_decoder_forward.3} parent=1 // pred_check_branch
      %415 = sbr.rel (0) target = $region25
    $region24: #{_decoder_forward.3} parent=1 // pred_region
      _
    $region25: #{_decoder_forward.3} parent=1 // pred_fallthru
      _
    %416 = vsyncpa [#allocation3], 1

// kernel: _decoder_forward.4
$region0: #{_decoder_forward.4}
  #allocation0 [shape = 'u32[]', space=smem, size = 0x4, offset = 0x4, fixed_abs, tag = 'smem constant byte address 0x4 - core index']
  #allocation1 [shape = 'u32[72,128]{1,0:T(1,128)}', space=vmem, size = 0x9000, scoped, tag = 'internal scratch']
  %s0 = inlined_call_operand.vmem [shape: bf16[8,8,512], index: 0, kind: input, shape index: {}]
  %s1 = inlined_call_operand.hbm [shape: bf16[128,512], index: 1, kind: input, shape index: {}]
  %s2 = inlined_call_operand.vmem [shape: bf16[8,8,128], index: 2, kind: output, shape index: {}]
  %s3 = sld [smem:[#allocation0]]
  $region22: #{_decoder_forward.4} parent=0
    _
  %s5 = ssub.s32 1, %s3
  %s6 = scalar_select 0, %s5, %s3
  $region1: #{_decoder_forward.4} parent=0
    #allocation2 [shape = 'u8[131072]{0}', space=vmem, size = 0x20000, scoped, tag = 'input window, operand 1, single buffered']
    #allocation3 [shape = 's32[1]{0}', space=sflag, size = 0x4, scoped, tag = 'scoped memory for _decoder_forward.4']
    %7 = vsyncpa [#allocation3], 0
    // Predicated region
    $region2: #{_decoder_forward.4} parent=1 // pred_check
      _
    $region3: #{_decoder_forward.4} parent=1 // pred_check_branch
      %9 = sbr.rel (0) target = $region5
    $region4: #{_decoder_forward.4} parent=1 // pred_region
      _
    $region5: #{_decoder_forward.4} parent=1 // pred_fallthru
      _
    // Predicated region
    $region6: #{_decoder_forward.4} parent=1 // pred_check
      _
    $region7: #{_decoder_forward.4} parent=1 // pred_check_branch
      %11 = sbr.rel (0) target = $region9
    $region8: #{_decoder_forward.4} parent=1 // pred_region
      %13 = vsyncadd [#allocation3], 0
      %s14 = sshll.u32 %s1, 4
      %s15 = int_to_ptr.hbm [resolvable:$true] %s14
      %s16 = sshll.u32 [#allocation2], 4
      %s17 = int_to_ptr.vmem [resolvable:$true] %s16
      %22 = dma.hbm_to_vmem [thread:$0]  %s15, 4096, %s17, [#allocation3], 256, 256, 16
    $region9: #{_decoder_forward.4} parent=1 // pred_fallthru
      _
    // Predicated region
    $region10: #{_decoder_forward.4} parent=1 // pred_check
      _
    $region11: #{_decoder_forward.4} parent=1 // pred_check_branch
      %24 = sbr.rel (0) target = $region13
    $region12: #{_decoder_forward.4} parent=1 // pred_region
      %26 = dma.done [#allocation3], 4096
    $region13: #{_decoder_forward.4} parent=1 // pred_fallthru
      _
    %v28 = vld [vmem:[%s0] sm:$0xff]
    %v29 = vld [vmem:[%s0 + $0x8] sm:$0xff]
    %v30 = vunpack.c.l.bf16 %v28
    %v31 = vunpack.c.h.bf16 %v28
    %v32 = vunpack.c.l.bf16 %v29
    %v33 = vunpack.c.h.bf16 %v29
    %v34 = vld [vmem:[#allocation2] sm:$0xff]
    %v35 = vld [vmem:[#allocation2 + $0x8] sm:$0xff]
    %v36 = vld [vmem:[#allocation2 + $0x10] sm:$0xff]
    %v37 = vld [vmem:[#allocation2 + $0x18] sm:$0xff]
    %v38 = vld [vmem:[#allocation2 + $0x20] sm:$0xff]
    %v39 = vld [vmem:[#allocation2 + $0x28] sm:$0xff]
    %v40 = vld [vmem:[#allocation2 + $0x30] sm:$0xff]
    %v41 = vld [vmem:[#allocation2 + $0x38] sm:$0xff]
    %v42 = vld [vmem:[#allocation2 + $0x40] sm:$0xff]
    %v43 = vld [vmem:[#allocation2 + $0x48] sm:$0xff]
    %v44 = vld [vmem:[#allocation2 + $0x50] sm:$0xff]
    %v45 = vld [vmem:[#allocation2 + $0x58] sm:$0xff]
    %v46 = vld [vmem:[#allocation2 + $0x60] sm:$0xff]
    %v47 = vld [vmem:[#allocation2 + $0x68] sm:$0xff]
    %v48 = vld [vmem:[#allocation2 + $0x70] sm:$0xff]
    %v49 = vld [vmem:[#allocation2 + $0x78] sm:$0xff]
    %v50 = vld [vmem:[#allocation2 + $0x80] sm:$0xff]
    %v51 = vld [vmem:[#allocation2 + $0x88] sm:$0xff]
    %v52 = vld [vmem:[#allocation2 + $0x90] sm:$0xff]
    %v53 = vld [vmem:[#allocation2 + $0x98] sm:$0xff]
    %v54 = vld [vmem:[#allocation2 + $0xa0] sm:$0xff]
    %v55 = vld [vmem:[#allocation2 + $0xa8] sm:$0xff]
    %v56 = vld [vmem:[#allocation2 + $0xb0] sm:$0xff]
    %v57 = vld [vmem:[#allocation2 + $0xb8] sm:$0xff]
    %v58 = vld [vmem:[#allocation2 + $0xc0] sm:$0xff]
    %v59 = vld [vmem:[#allocation2 + $0xc8] sm:$0xff]
    %v60 = vld [vmem:[#allocation2 + $0xd0] sm:$0xff]
    %v61 = vld [vmem:[#allocation2 + $0xd8] sm:$0xff]
    %v62 = vld [vmem:[#allocation2 + $0xe0] sm:$0xff]
    %v63 = vld [vmem:[#allocation2 + $0xe8] sm:$0xff]
    %v64 = vld [vmem:[#allocation2 + $0xf0] sm:$0xff]
    %v65 = vld [vmem:[#allocation2 + $0xf8] sm:$0xff]
    %v98 = vunpack.c.l.b16 %v34
    %v99 = vunpack.c.h.b16 %v34
    %v100 = vunpack.c.l.b16 %v35
    %v101 = vunpack.c.h.b16 %v35
    %v102 = vunpack.c.l.b16 %v36
    %v103 = vunpack.c.h.b16 %v36
    %v104 = vunpack.c.l.b16 %v37
    %v105 = vunpack.c.h.b16 %v37
    %v106 = vunpack.c.l.b16 %v38
    %v107 = vunpack.c.h.b16 %v38
    %v108 = vunpack.c.l.b16 %v39
    %v109 = vunpack.c.h.b16 %v39
    %v110 = vunpack.c.l.b16 %v40
    %v111 = vunpack.c.h.b16 %v40
    %v112 = vunpack.c.l.b16 %v41
    %v113 = vunpack.c.h.b16 %v41
    %v114 = vunpack.c.l.b16 %v42
    %v115 = vunpack.c.h.b16 %v42
    %v116 = vunpack.c.l.b16 %v43
    %v117 = vunpack.c.h.b16 %v43
    %v118 = vunpack.c.l.b16 %v44
    %v119 = vunpack.c.h.b16 %v44
    %v120 = vunpack.c.l.b16 %v45
    %v121 = vunpack.c.h.b16 %v45
    %v122 = vunpack.c.l.b16 %v46
    %v123 = vunpack.c.h.b16 %v46
    %v124 = vunpack.c.l.b16 %v47
    %v125 = vunpack.c.h.b16 %v47
    %v126 = vunpack.c.l.b16 %v48
    %v127 = vunpack.c.h.b16 %v48
    %v128 = vunpack.c.l.b16 %v49
    %v129 = vunpack.c.h.b16 %v49
    %v130 = vunpack.c.l.b16 %v50
    %v131 = vunpack.c.h.b16 %v50
    %v132 = vunpack.c.l.b16 %v51
    %v133 = vunpack.c.h.b16 %v51
    %v134 = vunpack.c.l.b16 %v52
    %v135 = vunpack.c.h.b16 %v52
    %v136 = vunpack.c.l.b16 %v53
    %v137 = vunpack.c.h.b16 %v53
    %v138 = vunpack.c.l.b16 %v54
    %v139 = vunpack.c.h.b16 %v54
    %v140 = vunpack.c.l.b16 %v55
    %v141 = vunpack.c.h.b16 %v55
    %v142 = vunpack.c.l.b16 %v56
    %v143 = vunpack.c.h.b16 %v56
    %v144 = vunpack.c.l.b16 %v57
    %v145 = vunpack.c.h.b16 %v57
    %v146 = vunpack.c.l.b16 %v58
    %v147 = vunpack.c.h.b16 %v58
    %v148 = vunpack.c.l.b16 %v59
    %v149 = vunpack.c.h.b16 %v59
    %v150 = vunpack.c.l.b16 %v60
    %v151 = vunpack.c.h.b16 %v60
    %v152 = vunpack.c.l.b16 %v61
    %v153 = vunpack.c.h.b16 %v61
    %v154 = vunpack.c.l.b16 %v62
    %v155 = vunpack.c.h.b16 %v62
    %v156 = vunpack.c.l.b16 %v63
    %v157 = vunpack.c.h.b16 %v63
    %v158 = vunpack.c.l.b16 %v64
    %v159 = vunpack.c.h.b16 %v64
    %v160 = vunpack.c.l.b16 %v65
    %v161 = vunpack.c.h.b16 %v65
    %v162 = vpack.c.b16 %v102, %v98
    %v163 = vpack.c.b16 %v103, %v99
    %v164 = vpack.c.b16 %v104, %v100
    %v165 = vpack.c.b16 %v105, %v101
    %v166 = vpack.c.b16 %v110, %v106
    %v167 = vpack.c.b16 %v111, %v107
    %v168 = vpack.c.b16 %v112, %v108
    %v169 = vpack.c.b16 %v113, %v109
    %v170 = vpack.c.b16 %v118, %v114
    %v171 = vpack.c.b16 %v119, %v115
    %v172 = vpack.c.b16 %v120, %v116
    %v173 = vpack.c.b16 %v121, %v117
    %v174 = vpack.c.b16 %v126, %v122
    %v175 = vpack.c.b16 %v127, %v123
    %v176 = vpack.c.b16 %v128, %v124
    %v177 = vpack.c.b16 %v129, %v125
    %v178 = vpack.c.b16 %v134, %v130
    %v179 = vpack.c.b16 %v135, %v131
    %v180 = vpack.c.b16 %v136, %v132
    %v181 = vpack.c.b16 %v137, %v133
    %v182 = vpack.c.b16 %v142, %v138
    %v183 = vpack.c.b16 %v143, %v139
    %v184 = vpack.c.b16 %v144, %v140
    %v185 = vpack.c.b16 %v145, %v141
    %v186 = vpack.c.b16 %v150, %v146
    %v187 = vpack.c.b16 %v151, %v147
    %v188 = vpack.c.b16 %v152, %v148
    %v189 = vpack.c.b16 %v153, %v149
    %v190 = vpack.c.b16 %v158, %v154
    %v191 = vpack.c.b16 %v159, %v155
    %v192 = vpack.c.b16 %v160, %v156
    %v193 = vpack.c.b16 %v161, %v157
    %226 = vmatpush.bf16.msra.mxu0 %v190
    %227 = vmatpush.bf16.msra.mxu0 %v186
    %228 = vmatpush.bf16.msra.mxu0 %v182
    %229 = vmatpush.bf16.msra.mxu0 %v178
    %230 = vmatpush.bf16.msra.mxu0 %v174
    %231 = vmatpush.bf16.msra.mxu0 %v170
    %232 = vmatpush.bf16.msra.mxu0 %v166
    %233 = vmatpush.bf16.msra.mxu0 %v162
    %234 = vmatmul.bf16.gmra.mxu0 0
    %v235 = vpop.f32.mrf.mxu0
    %v236 = vadd.f32 0.0, %v235
    %v237 = vpop.f32.mrf.mxu0
    %238 = vdwg.mxu0
    %239 = vmatpush.bf16.msra.mxu0 %v191
    %240 = vmatpush.bf16.msra.mxu0 %v187
    %241 = vmatpush.bf16.msra.mxu0 %v183
    %242 = vmatpush.bf16.msra.mxu0 %v179
    %243 = vmatpush.bf16.msra.mxu0 %v175
    %244 = vmatpush.bf16.msra.mxu0 %v171
    %245 = vmatpush.bf16.msra.mxu0 %v167
    %246 = vmatpush.bf16.msra.mxu0 %v163
    %247 = vmatmul.bf16.gmra.mxu0 0
    %v248 = vpop.f32.mrf.mxu0
    %v249 = vadd.f32 0.0, %v248
    %v250 = vpop.f32.mrf.mxu0
    %251 = vdwg.mxu0
    %252 = vmatpush.bf16.msra.mxu0 %v192
    %253 = vmatpush.bf16.msra.mxu0 %v188
    %254 = vmatpush.bf16.msra.mxu0 %v184
    %255 = vmatpush.bf16.msra.mxu0 %v180
    %256 = vmatpush.bf16.msra.mxu0 %v176
    %257 = vmatpush.bf16.msra.mxu0 %v172
    %258 = vmatpush.bf16.msra.mxu0 %v168
    %259 = vmatpush.bf16.msra.mxu0 %v164
    %260 = vmatmul.bf16.gmra.mxu0 0
    %v261 = vpop.f32.mrf.mxu0
    %v262 = vadd.f32 0.0, %v261
    %v263 = vpop.f32.mrf.mxu0
    %264 = vdwg.mxu0
    %265 = vmatpush.bf16.msra.mxu0 %v193
    %266 = vmatpush.bf16.msra.mxu0 %v189
    %267 = vmatpush.bf16.msra.mxu0 %v185
    %268 = vmatpush.bf16.msra.mxu0 %v181
    %269 = vmatpush.bf16.msra.mxu0 %v177
    %270 = vmatpush.bf16.msra.mxu0 %v173
    %271 = vmatpush.bf16.msra.mxu0 %v169
    %272 = vmatpush.bf16.msra.mxu0 %v165
    %273 = vmatmul.bf16.gmra.mxu0 0
    %v274 = vpop.f32.mrf.mxu0
    %v275 = vadd.f32 0.0, %v274
    %v276 = vpop.f32.mrf.mxu0
    %277 = vdwg.mxu0
    %v278 = vadd.f32 %v30, %v236
    %v279 = vadd.f32 %v31, %v249
    %v280 = vadd.f32 %v32, %v262
    %v281 = vadd.f32 %v33, %v275
    %v282 = vmul.f32 %v278, 0.5
    %v283 = vtanh.pop %v282
    %v284 = vadd.f32 %v283, 1.0
    %v285 = vmul.f32 %v284, 0.5
    %v286 = vmul.f32 %v279, 0.5
    %v287 = vtanh.pop %v286
    %v288 = vadd.f32 %v287, 1.0
    %v289 = vmul.f32 %v288, 0.5
    %v290 = vtanh.pop %v280
    %v291 = vmul.f32 %v281, 0.5
    %v292 = vtanh.pop %v291
    %v293 = vadd.f32 %v292, 1.0
    %v294 = vmul.f32 %v293, 0.5
    %v295 = vmul.f32 %v289, 0.0
    %v296 = vmul.f32 %v285, %v290
    %v297 = vadd.f32 %v295, %v296
    %v298 = vtanh.pop %v297
    %v299 = vmul.f32 %v294, %v298
    %v300 = vpack.c.bf16 %v299, %v299
    %v302 = vrot.slane %v300, 3
    %vm303 = vcmask 1040384
    %v306 = vsel %vm303, %v300, %v302
    %vm308 = vcmask 1041409
    %v309 = vsel %vm308, %v300, %v302
    %v311 = vrot.slane %v309, 1
    %vm312 = vcmask 1042434
    %v313 = vsel %vm312, %v300, %v302
    %v315 = vrot.slane %v313, 2
    %vm316 = vcmask 1043459
    %v317 = vsel %vm316, %v300, %v302
    %v319 = vrot.slane %v317, 3
    %v320 = vunpack.i.l.s16 %v306
    %v321 = vunpack.i.h.s16 %v306
    %v322 = vunpack.i.l.s16 %v311
    %v323 = vunpack.i.h.s16 %v311
    %v324 = vunpack.i.l.s16 %v315
    %v325 = vunpack.i.h.s16 %v315
    %v326 = vunpack.i.l.s16 %v319
    %v327 = vunpack.i.h.s16 %v319
    %v328 = vpack.i.b16 %v320, %v320
    %v329 = vpack.i.b16 %v321, %v321
    %v330 = vpack.i.b16 %v322, %v322
    %v331 = vpack.i.b16 %v323, %v323
    %v332 = vpack.i.b16 %v324, %v324
    %v333 = vpack.i.b16 %v325, %v325
    %v334 = vpack.i.b16 %v326, %v326
    %v335 = vpack.i.b16 %v327, %v327
    %v337 = vunpack.c.l.s4 286326784
    %v338 = vunpack.c.0.s8 %v337
    %v339 = vperm.slane %v328, %v338
    %v341 = vunpack.c.l.s4 286326784
    %v342 = vunpack.c.0.s8 %v341
    %v343 = vperm.slane %v329, %v342
    %v345 = vunpack.c.l.s4 286326784
    %v346 = vunpack.c.0.s8 %v345
    %v347 = vperm.slane %v330, %v346
    %v349 = vunpack.c.l.s4 286326784
    %v350 = vunpack.c.0.s8 %v349
    %v351 = vperm.slane %v331, %v350
    %v353 = vunpack.c.l.s4 286326784
    %v354 = vunpack.c.0.s8 %v353
    %v355 = vperm.slane %v332, %v354
    %v357 = vunpack.c.l.s4 286326784
    %v358 = vunpack.c.0.s8 %v357
    %v359 = vperm.slane %v333, %v358
    %v361 = vunpack.c.l.s4 286326784
    %v362 = vunpack.c.0.s8 %v361
    %v363 = vperm.slane %v334, %v362
    %v365 = vunpack.c.l.s4 286326784
    %v366 = vunpack.c.0.s8 %v365
    %v367 = vperm.slane %v335, %v366
    %vm376 = vcmask 1040384
    %vm377 = vsmask.f32 256
    %vm378 = vmand %vm376, %vm377
    %v379 = vld [vmem:[%s2] sm:$0x1]
    %v380 = vsel %vm378, %v339, %v379
    %381 = vst [vmem:[%s2] sm:$0x1] %v380
    %v382 = vld [vmem:[%s2 + $0x4] sm:$0x1]
    %v383 = vsel %vm378, %v343, %v382
    %384 = vst [vmem:[%s2 + $0x4] sm:$0x1] %v383
    %v385 = vld [vmem:[%s2 + $0x8] sm:$0x1]
    %v386 = vsel %vm378, %v347, %v385
    %387 = vst [vmem:[%s2 + $0x8] sm:$0x1] %v386
    %v388 = vld [vmem:[%s2 + $0xc] sm:$0x1]
    %v389 = vsel %vm378, %v351, %v388
    %390 = vst [vmem:[%s2 + $0xc] sm:$0x1] %v389
    %v391 = vld [vmem:[%s2 + $0x10] sm:$0x1]
    %v392 = vsel %vm378, %v355, %v391
    %393 = vst [vmem:[%s2 + $0x10] sm:$0x1] %v392
    %v394 = vld [vmem:[%s2 + $0x14] sm:$0x1]
    %v395 = vsel %vm378, %v359, %v394
    %396 = vst [vmem:[%s2 + $0x14] sm:$0x1] %v395
    %v397 = vld [vmem:[%s2 + $0x18] sm:$0x1]
    %v398 = vsel %vm378, %v363, %v397
    %399 = vst [vmem:[%s2 + $0x18] sm:$0x1] %v398
    %v400 = vld [vmem:[%s2 + $0x1c] sm:$0x1]
    %v401 = vsel %vm378, %v367, %v400
    %402 = vst [vmem:[%s2 + $0x1c] sm:$0x1] %v401
    %s403 = scalar_lea.vmem %s0, 16
    %v404 = vld [vmem:[%s403] sm:$0xff]
    %v405 = vld [vmem:[%s403 + $0x8] sm:$0xff]
    %v406 = vunpack.c.l.bf16 %v404
    %v407 = vunpack.c.h.bf16 %v404
    %v408 = vunpack.c.l.bf16 %v405
    %v409 = vunpack.c.h.bf16 %v405
    %v410 = vld [vmem:[#allocation2] sm:$0xff]
    %v411 = vld [vmem:[#allocation2 + $0x8] sm:$0xff]
    %v412 = vld [vmem:[#allocation2 + $0x10] sm:$0xff]
    %v413 = vld [vmem:[#allocation2 + $0x18] sm:$0xff]
    %v414 = vld [vmem:[#allocation2 + $0x20] sm:$0xff]
    %v415 = vld [vmem:[#allocation2 + $0x28] sm:$0xff]
    %v416 = vld [vmem:[#allocation2 + $0x30] sm:$0xff]
    %v417 = vld [vmem:[#allocation2 + $0x38] sm:$0xff]
    %v418 = vld [vmem:[#allocation2 + $0x40] sm:$0xff]
    %v419 = vld [vmem:[#allocation2 + $0x48] sm:$0xff]
    %v420 = vld [vmem:[#allocation2 + $0x50] sm:$0xff]
    %v421 = vld [vmem:[#allocation2 + $0x58] sm:$0xff]
    %v422 = vld [vmem:[#allocation2 + $0x60] sm:$0xff]
    %v423 = vld [vmem:[#allocation2 + $0x68] sm:$0xff]
    %v424 = vld [vmem:[#allocation2 + $0x70] sm:$0xff]
    %v425 = vld [vmem:[#allocation2 + $0x78] sm:$0xff]
    %v426 = vld [vmem:[#allocation2 + $0x80] sm:$0xff]
    %v427 = vld [vmem:[#allocation2 + $0x88] sm:$0xff]
    %v428 = vld [vmem:[#allocation2 + $0x90] sm:$0xff]
    %v429 = vld [vmem:[#allocation2 + $0x98] sm:$0xff]
    %v430 = vld [vmem:[#allocation2 + $0xa0] sm:$0xff]
    %v431 = vld [vmem:[#allocation2 + $0xa8] sm:$0xff]
    %v432 = vld [vmem:[#allocation2 + $0xb0] sm:$0xff]
    %v433 = vld [vmem:[#allocation2 + $0xb8] sm:$0xff]
    %v434 = vld [vmem:[#allocation2 + $0xc0] sm:$0xff]
    %v435 = vld [vmem:[#allocation2 + $0xc8] sm:$0xff]
    %v436 = vld [vmem:[#allocation2 + $0xd0] sm:$0xff]
    %v437 = vld [vmem:[#allocation2 + $0xd8] sm:$0xff]
    %v438 = vld [vmem:[#allocation2 + $0xe0] sm:$0xff]
    %v439 = vld [vmem:[#allocation2 + $0xe8] sm:$0xff]
    %v440 = vld [vmem:[#allocation2 + $0xf0] sm:$0xff]
    %v441 = vld [vmem:[#allocation2 + $0xf8] sm:$0xff]
    %v474 = vunpack.c.l.b16 %v410
    %v475 = vunpack.c.h.b16 %v410
    %v476 = vunpack.c.l.b16 %v411
    %v477 = vunpack.c.h.b16 %v411
    %v478 = vunpack.c.l.b16 %v412
    %v479 = vunpack.c.h.b16 %v412
    %v480 = vunpack.c.l.b16 %v413
    %v481 = vunpack.c.h.b16 %v413
    %v482 = vunpack.c.l.b16 %v414
    %v483 = vunpack.c.h.b16 %v414
    %v484 = vunpack.c.l.b16 %v415
    %v485 = vunpack.c.h.b16 %v415
    %v486 = vunpack.c.l.b16 %v416
    %v487 = vunpack.c.h.b16 %v416
    %v488 = vunpack.c.l.b16 %v417
    %v489 = vunpack.c.h.b16 %v417
    %v490 = vunpack.c.l.b16 %v418
    %v491 = vunpack.c.h.b16 %v418
    %v492 = vunpack.c.l.b16 %v419
    %v493 = vunpack.c.h.b16 %v419
    %v494 = vunpack.c.l.b16 %v420
    %v495 = vunpack.c.h.b16 %v420
    %v496 = vunpack.c.l.b16 %v421
    %v497 = vunpack.c.h.b16 %v421
    %v498 = vunpack.c.l.b16 %v422
    %v499 = vunpack.c.h.b16 %v422
    %v500 = vunpack.c.l.b16 %v423
    %v501 = vunpack.c.h.b16 %v423
    %v502 = vunpack.c.l.b16 %v424
    %v503 = vunpack.c.h.b16 %v424
    %v504 = vunpack.c.l.b16 %v425
    %v505 = vunpack.c.h.b16 %v425
    %v506 = vunpack.c.l.b16 %v426
    %v507 = vunpack.c.h.b16 %v426
    %v508 = vunpack.c.l.b16 %v427
    %v509 = vunpack.c.h.b16 %v427
    %v510 = vunpack.c.l.b16 %v428
    %v511 = vunpack.c.h.b16 %v428
    %v512 = vunpack.c.l.b16 %v429
    %v513 = vunpack.c.h.b16 %v429
    %v514 = vunpack.c.l.b16 %v430
    %v515 = vunpack.c.h.b16 %v430
    %v516 = vunpack.c.l.b16 %v431
    %v517 = vunpack.c.h.b16 %v431
    %v518 = vunpack.c.l.b16 %v432
    %v519 = vunpack.c.h.b16 %v432
    %v520 = vunpack.c.l.b16 %v433
    %v521 = vunpack.c.h.b16 %v433
    %v522 = vunpack.c.l.b16 %v434
    %v523 = vunpack.c.h.b16 %v434
    %v524 = vunpack.c.l.b16 %v435
    %v525 = vunpack.c.h.b16 %v435
    %v526 = vunpack.c.l.b16 %v436
    %v527 = vunpack.c.h.b16 %v436
    %v528 = vunpack.c.l.b16 %v437
    %v529 = vunpack.c.h.b16 %v437
    %v530 = vunpack.c.l.b16 %v438
    %v531 = vunpack.c.h.b16 %v438
    %v532 = vunpack.c.l.b16 %v439
    %v533 = vunpack.c.h.b16 %v439
    %v534 = vunpack.c.l.b16 %v440
    %v535 = vunpack.c.h.b16 %v440
    %v536 = vunpack.c.l.b16 %v441
    %v537 = vunpack.c.h.b16 %v441
    %v538 = vpack.c.b16 %v478, %v474
    %v539 = vpack.c.b16 %v479, %v475
    %v540 = vpack.c.b16 %v480, %v476
    %v541 = vpack.c.b16 %v481, %v477
    %v542 = vpack.c.b16 %v486, %v482
    %v543 = vpack.c.b16 %v487, %v483
    %v544 = vpack.c.b16 %v488, %v484
    %v545 = vpack.c.b16 %v489, %v485
    %v546 = vpack.c.b16 %v494, %v490
    %v547 = vpack.c.b16 %v495, %v491
    %v548 = vpack.c.b16 %v496, %v492
    %v549 = vpack.c.b16 %v497, %v493
    %v550 = vpack.c.b16 %v502, %v498
    %v551 = vpack.c.b16 %v503, %v499
    %v552 = vpack.c.b16 %v504, %v500
    %v553 = vpack.c.b16 %v505, %v501
    %v554 = vpack.c.b16 %v510, %v506
    %v555 = vpack.c.b16 %v511, %v507
    %v556 = vpack.c.b16 %v512, %v508
    %v557 = vpack.c.b16 %v513, %v509
    %v558 = vpack.c.b16 %v518, %v514
    %v559 = vpack.c.b16 %v519, %v515
    %v560 = vpack.c.b16 %v520, %v516
    %v561 = vpack.c.b16 %v521, %v517
    %v562 = vpack.c.b16 %v526, %v522
    %v563 = vpack.c.b16 %v527, %v523
    %v564 = vpack.c.b16 %v528, %v524
    %v565 = vpack.c.b16 %v529, %v525
    %v566 = vpack.c.b16 %v534, %v530
    %v567 = vpack.c.b16 %v535, %v531
    %v568 = vpack.c.b16 %v536, %v532
    %v569 = vpack.c.b16 %v537, %v533
    %602 = vmatpush.bf16.msra.mxu0 %v566
    %603 = vmatpush.bf16.msra.mxu0 %v562
    %604 = vmatpush.bf16.msra.mxu0 %v558
    %605 = vmatpush.bf16.msra.mxu0 %v554
    %606 = vmatpush.bf16.msra.mxu0 %v550
    %607 = vmatpush.bf16.msra.mxu0 %v546
    %608 = vmatpush.bf16.msra.mxu0 %v542
    %609 = vmatpush.bf16.msra.mxu0 %v538
    %610 = vmatmul.bf16.gmra.mxu0 %v300
    %v611 = vpop.f32.mrf.mxu0
    %v612 = vadd.f32 0.0, %v611
    %v613 = vpop.f32.mrf.mxu0
    %614 = vdwg.mxu0
    %615 = vmatpush.bf16.msra.mxu0 %v567
    %616 = vmatpush.bf16.msra.mxu0 %v563
    %617 = vmatpush.bf16.msra.mxu0 %v559
    %618 = vmatpush.bf16.msra.mxu0 %v555
    %619 = vmatpush.bf16.msra.mxu0 %v551
    %620 = vmatpush.bf16.msra.mxu0 %v547
    %621 = vmatpush.bf16.msra.mxu0 %v543
    %622 = vmatpush.bf16.msra.mxu0 %v539
    %623 = vmatmul.bf16.gmra.mxu0 %v300
    %v624 = vpop.f32.mrf.mxu0
    %v625 = vadd.f32 0.0, %v624
    %v626 = vpop.f32.mrf.mxu0
    %627 = vdwg.mxu0
    %628 = vmatpush.bf16.msra.mxu0 %v568
    %629 = vmatpush.bf16.msra.mxu0 %v564
    %630 = vmatpush.bf16.msra.mxu0 %v560
    %631 = vmatpush.bf16.msra.mxu0 %v556
    %632 = vmatpush.bf16.msra.mxu0 %v552
    %633 = vmatpush.bf16.msra.mxu0 %v548
    %634 = vmatpush.bf16.msra.mxu0 %v544
    %635 = vmatpush.bf16.msra.mxu0 %v540
    %636 = vmatmul.bf16.gmra.mxu0 %v300
    %v637 = vpop.f32.mrf.mxu0
    %v638 = vadd.f32 0.0, %v637
    %v639 = vpop.f32.mrf.mxu0
    %640 = vdwg.mxu0
    %641 = vmatpush.bf16.msra.mxu0 %v569
    %642 = vmatpush.bf16.msra.mxu0 %v565
    %643 = vmatpush.bf16.msra.mxu0 %v561
    %644 = vmatpush.bf16.msra.mxu0 %v557
    %645 = vmatpush.bf16.msra.mxu0 %v553
    %646 = vmatpush.bf16.msra.mxu0 %v549
    %647 = vmatpush.bf16.msra.mxu0 %v545
    %648 = vmatpush.bf16.msra.mxu0 %v541
    %649 = vmatmul.bf16.gmra.mxu0 %v300
    %v650 = vpop.f32.mrf.mxu0
    %v651 = vadd.f32 0.0, %v650
    %v652 = vpop.f32.mrf.mxu0
    %653 = vdwg.mxu0
    %v654 = vadd.f32 %v406, %v612
    %v655 = vadd.f32 %v407, %v625
    %v656 = vadd.f32 %v408, %v638
    %v657 = vadd.f32 %v409, %v651
    %v658 = vmul.f32 %v654, 0.5
    %v659 = vtanh.pop %v658
    %v660 = vadd.f32 %v659, 1.0
    %v661 = vmul.f32 %v660, 0.5
    %v662 = vmul.f32 %v655, 0.5
    %v663 = vtanh.pop %v662
    %v664 = vadd.f32 %v663, 1.0
    %v665 = vmul.f32 %v664, 0.5
    %v666 = vtanh.pop %v656
    %v667 = vmul.f32 %v657, 0.5
    %v668 = vtanh.pop %v667
    %v669 = vadd.f32 %v668, 1.0
    %v670 = vmul.f32 %v669, 0.5
    %v671 = vmul.f32 %v665, %v297
    %v672 = vmul.f32 %v661, %v666
    %v673 = vadd.f32 %v671, %v672
    %v674 = vtanh.pop %v673
    %v675 = vmul.f32 %v670, %v674
    %v676 = vpack.c.bf16 %v675, %v675
    %v678 = vrot.slane %v676, 3
    %v681 = vsel %vm303, %v676, %v678
    %v683 = vsel %vm308, %v676, %v678
    %v685 = vrot.slane %v683, 1
    %v686 = vsel %vm312, %v676, %v678
    %v688 = vrot.slane %v686, 2
    %v689 = vsel %vm316, %v676, %v678
    %v691 = vrot.slane %v689, 3
    %v692 = vunpack.i.l.s16 %v681
    %v693 = vunpack.i.h.s16 %v681
    %v694 = vunpack.i.l.s16 %v685
    %v695 = vunpack.i.h.s16 %v685
    %v696 = vunpack.i.l.s16 %v688
    %v697 = vunpack.i.h.s16 %v688
    %v698 = vunpack.i.l.s16 %v691
    %v699 = vunpack.i.h.s16 %v691
    %v700 = vpack.i.b16 %v692, %v692
    %v701 = vpack.i.b16 %v693, %v693
    %v702 = vpack.i.b16 %v694, %v694
    %v703 = vpack.i.b16 %v695, %v695
    %v704 = vpack.i.b16 %v696, %v696
    %v705 = vpack.i.b16 %v697, %v697
    %v706 = vpack.i.b16 %v698, %v698
    %v707 = vpack.i.b16 %v699, %v699
    %v709 = vunpack.c.l.s4 286326784
    %v710 = vunpack.c.0.s8 %v709
    %v711 = vperm.slane %v700, %v710
    %v713 = vunpack.c.l.s4 286326784
    %v714 = vunpack.c.0.s8 %v713
    %v715 = vperm.slane %v701, %v714
    %v717 = vunpack.c.l.s4 286326784
    %v718 = vunpack.c.0.s8 %v717
    %v719 = vperm.slane %v702, %v718
    %v721 = vunpack.c.l.s4 286326784
    %v722 = vunpack.c.0.s8 %v721
    %v723 = vperm.slane %v703, %v722
    %v725 = vunpack.c.l.s4 286326784
    %v726 = vunpack.c.0.s8 %v725
    %v727 = vperm.slane %v704, %v726
    %v729 = vunpack.c.l.s4 286326784
    %v730 = vunpack.c.0.s8 %v729
    %v731 = vperm.slane %v705, %v730
    %v733 = vunpack.c.l.s4 286326784
    %v734 = vunpack.c.0.s8 %v733
    %v735 = vperm.slane %v706, %v734
    %v737 = vunpack.c.l.s4 286326784
    %v738 = vunpack.c.0.s8 %v737
    %v739 = vperm.slane %v707, %v738
    %vm748 = vsmask.f32 7938
    %vm749 = vmand %vm376, %vm748
    %v750 = vld [vmem:[%s2] sm:$0x1]
    %v751 = vsel %vm749, %v711, %v750
    %752 = vst [vmem:[%s2] sm:$0x1] %v751
    %v753 = vld [vmem:[%s2 + $0x4] sm:$0x1]
    %v754 = vsel %vm749, %v715, %v753
    %755 = vst [vmem:[%s2 + $0x4] sm:$0x1] %v754
    %v756 = vld [vmem:[%s2 + $0x8] sm:$0x1]
    %v757 = vsel %vm749, %v719, %v756
    %758 = vst [vmem:[%s2 + $0x8] sm:$0x1] %v757
    %v759 = vld [vmem:[%s2 + $0xc] sm:$0x1]
    %v760 = vsel %vm749, %v723, %v759
    %761 = vst [vmem:[%s2 + $0xc] sm:$0x1] %v760
    %v762 = vld [vmem:[%s2 + $0x10] sm:$0x1]
    %v763 = vsel %vm749, %v727, %v762
    %764 = vst [vmem:[%s2 + $0x10] sm:$0x1] %v763
    %v765 = vld [vmem:[%s2 + $0x14] sm:$0x1]
    %v766 = vsel %vm749, %v731, %v765
    %767 = vst [vmem:[%s2 + $0x14] sm:$0x1] %v766
    %v768 = vld [vmem:[%s2 + $0x18] sm:$0x1]
    %v769 = vsel %vm749, %v735, %v768
    %770 = vst [vmem:[%s2 + $0x18] sm:$0x1] %v769
    %v771 = vld [vmem:[%s2 + $0x1c] sm:$0x1]
    %v772 = vsel %vm749, %v739, %v771
    %773 = vst [vmem:[%s2 + $0x1c] sm:$0x1] %v772
    %s774 = scalar_lea.vmem %s0, 32
    %v775 = vld [vmem:[%s774] sm:$0xff]
    %v776 = vld [vmem:[%s774 + $0x8] sm:$0xff]
    %v777 = vunpack.c.l.bf16 %v775
    %v778 = vunpack.c.h.bf16 %v775
    %v779 = vunpack.c.l.bf16 %v776
    %v780 = vunpack.c.h.bf16 %v776
    %v781 = vld [vmem:[#allocation2] sm:$0xff]
    %v782 = vld [vmem:[#allocation2 + $0x8] sm:$0xff]
    %v783 = vld [vmem:[#allocation2 + $0x10] sm:$0xff]
    %v784 = vld [vmem:[#allocation2 + $0x18] sm:$0xff]
    %v785 = vld [vmem:[#allocation2 + $0x20] sm:$0xff]
    %v786 = vld [vmem:[#allocation2 + $0x28] sm:$0xff]
    %v787 = vld [vmem:[#allocation2 + $0x30] sm:$0xff]
    %v788 = vld [vmem:[#allocation2 + $0x38] sm:$0xff]
    %v789 = vld [vmem:[#allocation2 + $0x40] sm:$0xff]
    %v790 = vld [vmem:[#allocation2 + $0x48] sm:$0xff]
    %v791 = vld [vmem:[#allocation2 + $0x50] sm:$0xff]
    %v792 = vld [vmem:[#allocation2 + $0x58] sm:$0xff]
    %v793 = vld [vmem:[#allocation2 + $0x60] sm:$0xff]
    %v794 = vld [vmem:[#allocation2 + $0x68] sm:$0xff]
    %v795 = vld [vmem:[#allocation2 + $0x70] sm:$0xff]
    %v796 = vld [vmem:[#allocation2 + $0x78] sm:$0xff]
    %v797 = vld [vmem:[#allocation2 + $0x80] sm:$0xff]
    %v798 = vld [vmem:[#allocation2 + $0x88] sm:$0xff]
    %v799 = vld [vmem:[#allocation2 + $0x90] sm:$0xff]
    %v800 = vld [vmem:[#allocation2 + $0x98] sm:$0xff]
    %v801 = vld [vmem:[#allocation2 + $0xa0] sm:$0xff]
    %v802 = vld [vmem:[#allocation2 + $0xa8] sm:$0xff]
    %v803 = vld [vmem:[#allocation2 + $0xb0] sm:$0xff]
    %v804 = vld [vmem:[#allocation2 + $0xb8] sm:$0xff]
    %v805 = vld [vmem:[#allocation2 + $0xc0] sm:$0xff]
    %v806 = vld [vmem:[#allocation2 + $0xc8] sm:$0xff]
    %v807 = vld [vmem:[#allocation2 + $0xd0] sm:$0xff]
    %v808 = vld [vmem:[#allocation2 + $0xd8] sm:$0xff]
    %v809 = vld [vmem:[#allocation2 + $0xe0] sm:$0xff]
    %v810 = vld [vmem:[#allocation2 + $0xe8] sm:$0xff]
    %v811 = vld [vmem:[#allocation2 + $0xf0] sm:$0xff]
    %v812 = vld [vmem:[#allocation2 + $0xf8] sm:$0xff]
    %v845 = vunpack.c.l.b16 %v781
    %v846 = vunpack.c.h.b16 %v781
    %v847 = vunpack.c.l.b16 %v782
    %v848 = vunpack.c.h.b16 %v782
    %v849 = vunpack.c.l.b16 %v783
    %v850 = vunpack.c.h.b16 %v783
    %v851 = vunpack.c.l.b16 %v784
    %v852 = vunpack.c.h.b16 %v784
    %v853 = vunpack.c.l.b16 %v785
    %v854 = vunpack.c.h.b16 %v785
    %v855 = vunpack.c.l.b16 %v786
    %v856 = vunpack.c.h.b16 %v786
    %v857 = vunpack.c.l.b16 %v787
    %v858 = vunpack.c.h.b16 %v787
    %v859 = vunpack.c.l.b16 %v788
    %v860 = vunpack.c.h.b16 %v788
    %v861 = vunpack.c.l.b16 %v789
    %v862 = vunpack.c.h.b16 %v789
    %v863 = vunpack.c.l.b16 %v790
    %v864 = vunpack.c.h.b16 %v790
    %v865 = vunpack.c.l.b16 %v791
    %v866 = vunpack.c.h.b16 %v791
    %v867 = vunpack.c.l.b16 %v792
    %v868 = vunpack.c.h.b16 %v792
    %v869 = vunpack.c.l.b16 %v793
    %v870 = vunpack.c.h.b16 %v793
    %v871 = vunpack.c.l.b16 %v794
    %v872 = vunpack.c.h.b16 %v794
    %v873 = vunpack.c.l.b16 %v795
    %v874 = vunpack.c.h.b16 %v795
    %v875 = vunpack.c.l.b16 %v796
    %v876 = vunpack.c.h.b16 %v796
    %v877 = vunpack.c.l.b16 %v797
    %v878 = vunpack.c.h.b16 %v797
    %v879 = vunpack.c.l.b16 %v798
    %v880 = vunpack.c.h.b16 %v798
    %v881 = vunpack.c.l.b16 %v799
    %v882 = vunpack.c.h.b16 %v799
    %v883 = vunpack.c.l.b16 %v800
    %v884 = vunpack.c.h.b16 %v800
    %v885 = vunpack.c.l.b16 %v801
    %v886 = vunpack.c.h.b16 %v801
    %v887 = vunpack.c.l.b16 %v802
    %v888 = vunpack.c.h.b16 %v802
    %v889 = vunpack.c.l.b16 %v803
    %v890 = vunpack.c.h.b16 %v803
    %v891 = vunpack.c.l.b16 %v804
    %v892 = vunpack.c.h.b16 %v804
    %v893 = vunpack.c.l.b16 %v805
    %v894 = vunpack.c.h.b16 %v805
    %v895 = vunpack.c.l.b16 %v806
    %v896 = vunpack.c.h.b16 %v806
    %v897 = vunpack.c.l.b16 %v807
    %v898 = vunpack.c.h.b16 %v807
    %v899 = vunpack.c.l.b16 %v808
    %v900 = vunpack.c.h.b16 %v808
    %v901 = vunpack.c.l.b16 %v809
    %v902 = vunpack.c.h.b16 %v809
    %v903 = vunpack.c.l.b16 %v810
    %v904 = vunpack.c.h.b16 %v810
    %v905 = vunpack.c.l.b16 %v811
    %v906 = vunpack.c.h.b16 %v811
    %v907 = vunpack.c.l.b16 %v812
    %v908 = vunpack.c.h.b16 %v812
    %v909 = vpack.c.b16 %v849, %v845
    %v910 = vpack.c.b16 %v850, %v846
    %v911 = vpack.c.b16 %v851, %v847
    %v912 = vpack.c.b16 %v852, %v848
    %v913 = vpack.c.b16 %v857, %v853
    %v914 = vpack.c.b16 %v858, %v854
    %v915 = vpack.c.b16 %v859, %v855
    %v916 = vpack.c.b16 %v860, %v856
    %v917 = vpack.c.b16 %v865, %v861
    %v918 = vpack.c.b16 %v866, %v862
    %v919 = vpack.c.b16 %v867, %v863
    %v920 = vpack.c.b16 %v868, %v864
    %v921 = vpack.c.b16 %v873, %v869
    %v922 = vpack.c.b16 %v874, %v870
    %v923 = vpack.c.b16 %v875, %v871
    %v924 = vpack.c.b16 %v876, %v872
    %v925 = vpack.c.b16 %v881, %v877
    %v926 = vpack.c.b16 %v882, %v878
    %v927 = vpack.c.b16 %v883, %v879
    %v928 = vpack.c.b16 %v884, %v880
    %v929 = vpack.c.b16 %v889, %v885
    %v930 = vpack.c.b16 %v890, %v886
    %v931 = vpack.c.b16 %v891, %v887
    %v932 = vpack.c.b16 %v892, %v888
    %v933 = vpack.c.b16 %v897, %v893
    %v934 = vpack.c.b16 %v898, %v894
    %v935 = vpack.c.b16 %v899, %v895
    %v936 = vpack.c.b16 %v900, %v896
    %v937 = vpack.c.b16 %v905, %v901
    %v938 = vpack.c.b16 %v906, %v902
    %v939 = vpack.c.b16 %v907, %v903
    %v940 = vpack.c.b16 %v908, %v904
    %973 = vmatpush.bf16.msra.mxu0 %v937
    %974 = vmatpush.bf16.msra.mxu0 %v933
    %975 = vmatpush.bf16.msra.mxu0 %v929
    %976 = vmatpush.bf16.msra.mxu0 %v925
    %977 = vmatpush.bf16.msra.mxu0 %v921
    %978 = vmatpush.bf16.msra.mxu0 %v917
    %979 = vmatpush.bf16.msra.mxu0 %v913
    %980 = vmatpush.bf16.msra.mxu0 %v909
    %981 = vmatmul.bf16.gmra.mxu0 %v676
    %v982 = vpop.f32.mrf.mxu0
    %v983 = vadd.f32 0.0, %v982
    %v984 = vpop.f32.mrf.mxu0
    %985 = vdwg.mxu0
    %986 = vmatpush.bf16.msra.mxu0 %v938
    %987 = vmatpush.bf16.msra.mxu0 %v934
    %988 = vmatpush.bf16.msra.mxu0 %v930
    %989 = vmatpush.bf16.msra.mxu0 %v926
    %990 = vmatpush.bf16.msra.mxu0 %v922
    %991 = vmatpush.bf16.msra.mxu0 %v918
    %992 = vmatpush.bf16.msra.mxu0 %v914
    %993 = vmatpush.bf16.msra.mxu0 %v910
    %994 = vmatmul.bf16.gmra.mxu0 %v676
    %v995 = vpop.f32.mrf.mxu0
    %v996 = vadd.f32 0.0, %v995
    %v997 = vpop.f32.mrf.mxu0
    %998 = vdwg.mxu0
    %999 = vmatpush.bf16.msra.mxu0 %v939
    %1000 = vmatpush.bf16.msra.mxu0 %v935
    %1001 = vmatpush.bf16.msra.mxu0 %v931
    %1002 = vmatpush.bf16.msra.mxu0 %v927
    %1003 = vmatpush.bf16.msra.mxu0 %v923
    %1004 = vmatpush.bf16.msra.mxu0 %v919
    %1005 = vmatpush.bf16.msra.mxu0 %v915
    %1006 = vmatpush.bf16.msra.mxu0 %v911
    %1007 = vmatmul.bf16.gmra.mxu0 %v676
    %v1008 = vpop.f32.mrf.mxu0
    %v1009 = vadd.f32 0.0, %v1008
    %v1010 = vpop.f32.mrf.mxu0
    %1011 = vdwg.mxu0
    %1012 = vmatpush.bf16.msra.mxu0 %v940
    %1013 = vmatpush.bf16.msra.mxu0 %v936
    %1014 = vmatpush.bf16.msra.mxu0 %v932
    %1015 = vmatpush.bf16.msra.mxu0 %v928
    %1016 = vmatpush.bf16.msra.mxu0 %v924
    %1017 = vmatpush.bf16.msra.mxu0 %v920
    %1018 = vmatpush.bf16.msra.mxu0 %v916
    %1019 = vmatpush.bf16.msra.mxu0 %v912
    %1020 = vmatmul.bf16.gmra.mxu0 %v676
    %v1021 = vpop.f32.mrf.mxu0
    %v1022 = vadd.f32 0.0, %v1021
    %v1023 = vpop.f32.mrf.mxu0
    %1024 = vdwg.mxu0
    %v1025 = vadd.f32 %v777, %v983
    %v1026 = vadd.f32 %v778, %v996
    %v1027 = vadd.f32 %v779, %v1009
    %v1028 = vadd.f32 %v780, %v1022
    %v1029 = vmul.f32 %v1025, 0.5
    %v1030 = vtanh.pop %v1029
    %v1031 = vadd.f32 %v1030, 1.0
    %v1032 = vmul.f32 %v1031, 0.5
    %v1033 = vmul.f32 %v1026, 0.5
    %v1034 = vtanh.pop %v1033
    %v1035 = vadd.f32 %v1034, 1.0
    %v1036 = vmul.f32 %v1035, 0.5
    %v1037 = vtanh.pop %v1027
    %v1038 = vmul.f32 %v1028, 0.5
    %v1039 = vtanh.pop %v1038
    %v1040 = vadd.f32 %v1039, 1.0
    %v1041 = vmul.f32 %v1040, 0.5
    %v1042 = vmul.f32 %v1036, %v673
    %v1043 = vmul.f32 %v1032, %v1037
    %v1044 = vadd.f32 %v1042, %v1043
    %v1045 = vtanh.pop %v1044
    %v1046 = vmul.f32 %v1041, %v1045
    %v1047 = vpack.c.bf16 %v1046, %v1046
    %v1049 = vrot.slane %v1047, 3
    %v1052 = vsel %vm303, %v1047, %v1049
    %v1054 = vsel %vm308, %v1047, %v1049
    %v1056 = vrot.slane %v1054, 1
    %v1057 = vsel %vm312, %v1047, %v1049
    %v1059 = vrot.slane %v1057, 2
    %v1060 = vsel %vm316, %v1047, %v1049
    %v1062 = vrot.slane %v1060, 3
    %v1063 = vunpack.i.l.s16 %v1052
    %v1064 = vunpack.i.h.s16 %v1052
    %v1065 = vunpack.i.l.s16 %v1056
    %v1066 = vunpack.i.h.s16 %v1056
    %v1067 = vunpack.i.l.s16 %v1059
    %v1068 = vunpack.i.h.s16 %v1059
    %v1069 = vunpack.i.l.s16 %v1062
    %v1070 = vunpack.i.h.s16 %v1062
    %v1071 = vpack.i.b16 %v1063, %v1063
    %v1072 = vpack.i.b16 %v1064, %v1064
    %v1073 = vpack.i.b16 %v1065, %v1065
    %v1074 = vpack.i.b16 %v1066, %v1066
    %v1075 = vpack.i.b16 %v1067, %v1067
    %v1076 = vpack.i.b16 %v1068, %v1068
    %v1077 = vpack.i.b16 %v1069, %v1069
    %v1078 = vpack.i.b16 %v1070, %v1070
    %v1080 = vunpack.c.l.s4 286326784
    %v1081 = vunpack.c.0.s8 %v1080
    %v1082 = vperm.slane %v1071, %v1081
    %v1084 = vunpack.c.l.s4 286326784
    %v1085 = vunpack.c.0.s8 %v1084
    %v1086 = vperm.slane %v1072, %v1085
    %v1088 = vunpack.c.l.s4 286326784
    %v1089 = vunpack.c.0.s8 %v1088
    %v1090 = vperm.slane %v1073, %v1089
    %v1092 = vunpack.c.l.s4 286326784
    %v1093 = vunpack.c.0.s8 %v1092
    %v1094 = vperm.slane %v1074, %v1093
    %v1096 = vunpack.c.l.s4 286326784
    %v1097 = vunpack.c.0.s8 %v1096
    %v1098 = vperm.slane %v1075, %v1097
    %v1100 = vunpack.c.l.s4 286326784
    %v1101 = vunpack.c.0.s8 %v1100
    %v1102 = vperm.slane %v1076, %v1101
    %v1104 = vunpack.c.l.s4 286326784
    %v1105 = vunpack.c.0.s8 %v1104
    %v1106 = vperm.slane %v1077, %v1105
    %v1108 = vunpack.c.l.s4 286326784
    %v1109 = vunpack.c.0.s8 %v1108
    %v1110 = vperm.slane %v1078, %v1109
    %vm1119 = vcmask 1041409
    %vm1120 = vsmask.f32 1280
    %vm1121 = vmand %vm1119, %vm1120
    %v1122 = vld [vmem:[%s2] sm:$0x2]
    %v1123 = vsel %vm1121, %v1082, %v1122
    %1124 = vst [vmem:[%s2] sm:$0x2] %v1123
    %v1125 = vld [vmem:[%s2 + $0x4] sm:$0x2]
    %v1126 = vsel %vm1121, %v1086, %v1125
    %1127 = vst [vmem:[%s2 + $0x4] sm:$0x2] %v1126
    %v1128 = vld [vmem:[%s2 + $0x8] sm:$0x2]
    %v1129 = vsel %vm1121, %v1090, %v1128
    %1130 = vst [vmem:[%s2 + $0x8] sm:$0x2] %v1129
    %v1131 = vld [vmem:[%s2 + $0xc] sm:$0x2]
    %v1132 = vsel %vm1121, %v1094, %v1131
    %1133 = vst [vmem:[%s2 + $0xc] sm:$0x2] %v1132
    %v1134 = vld [vmem:[%s2 + $0x10] sm:$0x2]
    %v1135 = vsel %vm1121, %v1098, %v1134
    %1136 = vst [vmem:[%s2 + $0x10] sm:$0x2] %v1135
    %v1137 = vld [vmem:[%s2 + $0x14] sm:$0x2]
    %v1138 = vsel %vm1121, %v1102, %v1137
    %1139 = vst [vmem:[%s2 + $0x14] sm:$0x2] %v1138
    %v1140 = vld [vmem:[%s2 + $0x18] sm:$0x2]
    %v1141 = vsel %vm1121, %v1106, %v1140
    %1142 = vst [vmem:[%s2 + $0x18] sm:$0x2] %v1141
    %v1143 = vld [vmem:[%s2 + $0x1c] sm:$0x2]
    %v1144 = vsel %vm1121, %v1110, %v1143
    %1145 = vst [vmem:[%s2 + $0x1c] sm:$0x2] %v1144
    %s1146 = scalar_lea.vmem %s0, 48
    %v1147 = vld [vmem:[%s1146] sm:$0xff]
    %v1148 = vld [vmem:[%s1146 + $0x8] sm:$0xff]
    %v1149 = vunpack.c.l.bf16 %v1147
    %v1150 = vunpack.c.h.bf16 %v1147
    %v1151 = vunpack.c.l.bf16 %v1148
    %v1152 = vunpack.c.h.bf16 %v1148
    %v1153 = vld [vmem:[#allocation2] sm:$0xff]
    %v1154 = vld [vmem:[#allocation2 + $0x8] sm:$0xff]
    %v1155 = vld [vmem:[#allocation2 + $0x10] sm:$0xff]
    %v1156 = vld [vmem:[#allocation2 + $0x18] sm:$0xff]
    %v1157 = vld [vmem:[#allocation2 + $0x20] sm:$0xff]
    %v1158 = vld [vmem:[#allocation2 + $0x28] sm:$0xff]
    %v1159 = vld [vmem:[#allocation2 + $0x30] sm:$0xff]
    %v1160 = vld [vmem:[#allocation2 + $0x38] sm:$0xff]
    %v1161 = vld [vmem:[#allocation2 + $0x40] sm:$0xff]
    %v1162 = vld [vmem:[#allocation2 + $0x48] sm:$0xff]
    %v1163 = vld [vmem:[#allocation2 + $0x50] sm:$0xff]
    %v1164 = vld [vmem:[#allocation2 + $0x58] sm:$0xff]
    %v1165 = vld [vmem:[#allocation2 + $0x60] sm:$0xff]
    %v1166 = vld [vmem:[#allocation2 + $0x68] sm:$0xff]
    %v1167 = vld [vmem:[#allocation2 + $0x70] sm:$0xff]
    %v1168 = vld [vmem:[#allocation2 + $0x78] sm:$0xff]
    %v1169 = vld [vmem:[#allocation2 + $0x80] sm:$0xff]
    %v1170 = vld [vmem:[#allocation2 + $0x88] sm:$0xff]
    %v1171 = vld [vmem:[#allocation2 + $0x90] sm:$0xff]
    %v1172 = vld [vmem:[#allocation2 + $0x98] sm:$0xff]
    %v1173 = vld [vmem:[#allocation2 + $0xa0] sm:$0xff]
    %v1174 = vld [vmem:[#allocation2 + $0xa8] sm:$0xff]
    %v1175 = vld [vmem:[#allocation2 + $0xb0] sm:$0xff]
    %v1176 = vld [vmem:[#allocation2 + $0xb8] sm:$0xff]
    %v1177 = vld [vmem:[#allocation2 + $0xc0] sm:$0xff]
    %v1178 = vld [vmem:[#allocation2 + $0xc8] sm:$0xff]
    %v1179 = vld [vmem:[#allocation2 + $0xd0] sm:$0xff]
    %v1180 = vld [vmem:[#allocation2 + $0xd8] sm:$0xff]
    %v1181 = vld [vmem:[#allocation2 + $0xe0] sm:$0xff]
    %v1182 = vld [vmem:[#allocation2 + $0xe8] sm:$0xff]
    %v1183 = vld [vmem:[#allocation2 + $0xf0] sm:$0xff]
    %v1184 = vld [vmem:[#allocation2 + $0xf8] sm:$0xff]
    %v1217 = vunpack.c.l.b16 %v1153
    %v1218 = vunpack.c.h.b16 %v1153
    %v1219 = vunpack.c.l.b16 %v1154
    %v1220 = vunpack.c.h.b16 %v1154
    %v1221 = vunpack.c.l.b16 %v1155
    %v1222 = vunpack.c.h.b16 %v1155
    %v1223 = vunpack.c.l.b16 %v1156
    %v1224 = vunpack.c.h.b16 %v1156
    %v1225 = vunpack.c.l.b16 %v1157
    %v1226 = vunpack.c.h.b16 %v1157
    %v1227 = vunpack.c.l.b16 %v1158
    %v1228 = vunpack.c.h.b16 %v1158
    %v1229 = vunpack.c.l.b16 %v1159
    %v1230 = vunpack.c.h.b16 %v1159
    %v1231 = vunpack.c.l.b16 %v1160
    %v1232 = vunpack.c.h.b16 %v1160
    %v1233 = vunpack.c.l.b16 %v1161
    %v1234 = vunpack.c.h.b16 %v1161
    %v1235 = vunpack.c.l.b16 %v1162
    %v1236 = vunpack.c.h.b16 %v1162
    %v1237 = vunpack.c.l.b16 %v1163
    %v1238 = vunpack.c.h.b16 %v1163
    %v1239 = vunpack.c.l.b16 %v1164
    %v1240 = vunpack.c.h.b16 %v1164
    %v1241 = vunpack.c.l.b16 %v1165
    %v1242 = vunpack.c.h.b16 %v1165
    %v1243 = vunpack.c.l.b16 %v1166
    %v1244 = vunpack.c.h.b16 %v1166
    %v1245 = vunpack.c.l.b16 %v1167
    %v1246 = vunpack.c.h.b16 %v1167
    %v1247 = vunpack.c.l.b16 %v1168
    %v1248 = vunpack.c.h.b16 %v1168
    %v1249 = vunpack.c.l.b16 %v1169
    %v1250 = vunpack.c.h.b16 %v1169
    %v1251 = vunpack.c.l.b16 %v1170
    %v1252 = vunpack.c.h.b16 %v1170
    %v1253 = vunpack.c.l.b16 %v1171
    %v1254 = vunpack.c.h.b16 %v1171
    %v1255 = vunpack.c.l.b16 %v1172
    %v1256 = vunpack.c.h.b16 %v1172
    %v1257 = vunpack.c.l.b16 %v1173
    %v1258 = vunpack.c.h.b16 %v1173
    %v1259 = vunpack.c.l.b16 %v1174
    %v1260 = vunpack.c.h.b16 %v1174
    %v1261 = vunpack.c.l.b16 %v1175
    %v1262 = vunpack.c.h.b16 %v1175
    %v1263 = vunpack.c.l.b16 %v1176
    %v1264 = vunpack.c.h.b16 %v1176
    %v1265 = vunpack.c.l.b16 %v1177
    %v1266 = vunpack.c.h.b16 %v1177
    %v1267 = vunpack.c.l.b16 %v1178
    %v1268 = vunpack.c.h.b16 %v1178
    %v1269 = vunpack.c.l.b16 %v1179
    %v1270 = vunpack.c.h.b16 %v1179
    %v1271 = vunpack.c.l.b16 %v1180
    %v1272 = vunpack.c.h.b16 %v1180
    %v1273 = vunpack.c.l.b16 %v1181
    %v1274 = vunpack.c.h.b16 %v1181
    %v1275 = vunpack.c.l.b16 %v1182
    %v1276 = vunpack.c.h.b16 %v1182
    %v1277 = vunpack.c.l.b16 %v1183
    %v1278 = vunpack.c.h.b16 %v1183
    %v1279 = vunpack.c.l.b16 %v1184
    %v1280 = vunpack.c.h.b16 %v1184
    %v1281 = vpack.c.b16 %v1221, %v1217
    %v1282 = vpack.c.b16 %v1222, %v1218
    %v1283 = vpack.c.b16 %v1223, %v1219
    %v1284 = vpack.c.b16 %v1224, %v1220
    %v1285 = vpack.c.b16 %v1229, %v1225
    %v1286 = vpack.c.b16 %v1230, %v1226
    %v1287 = vpack.c.b16 %v1231, %v1227
    %v1288 = vpack.c.b16 %v1232, %v1228
    %v1289 = vpack.c.b16 %v1237, %v1233
    %v1290 = vpack.c.b16 %v1238, %v1234
    %v1291 = vpack.c.b16 %v1239, %v1235
    %v1292 = vpack.c.b16 %v1240, %v1236
    %v1293 = vpack.c.b16 %v1245, %v1241
    %v1294 = vpack.c.b16 %v1246, %v1242
    %v1295 = vpack.c.b16 %v1247, %v1243
    %v1296 = vpack.c.b16 %v1248, %v1244
    %v1297 = vpack.c.b16 %v1253, %v1249
    %v1298 = vpack.c.b16 %v1254, %v1250
    %v1299 = vpack.c.b16 %v1255, %v1251
    %v1300 = vpack.c.b16 %v1256, %v1252
    %v1301 = vpack.c.b16 %v1261, %v1257
    %v1302 = vpack.c.b16 %v1262, %v1258
    %v1303 = vpack.c.b16 %v1263, %v1259
    %v1304 = vpack.c.b16 %v1264, %v1260
    %v1305 = vpack.c.b16 %v1269, %v1265
    %v1306 = vpack.c.b16 %v1270, %v1266
    %v1307 = vpack.c.b16 %v1271, %v1267
    %v1308 = vpack.c.b16 %v1272, %v1268
    %v1309 = vpack.c.b16 %v1277, %v1273
    %v1310 = vpack.c.b16 %v1278, %v1274
    %v1311 = vpack.c.b16 %v1279, %v1275
    %v1312 = vpack.c.b16 %v1280, %v1276
    %1345 = vmatpush.bf16.msra.mxu0 %v1309
    %1346 = vmatpush.bf16.msra.mxu0 %v1305
    %1347 = vmatpush.bf16.msra.mxu0 %v1301
    %1348 = vmatpush.bf16.msra.mxu0 %v1297
    %1349 = vmatpush.bf16.msra.mxu0 %v1293
    %1350 = vmatpush.bf16.msra.mxu0 %v1289
    %1351 = vmatpush.bf16.msra.mxu0 %v1285
    %1352 = vmatpush.bf16.msra.mxu0 %v1281
    %1353 = vmatmul.bf16.gmra.mxu0 %v1047
    %v1354 = vpop.f32.mrf.mxu0
    %v1355 = vadd.f32 0.0, %v1354
    %v1356 = vpop.f32.mrf.mxu0
    %1357 = vdwg.mxu0
    %1358 = vmatpush.bf16.msra.mxu0 %v1310
    %1359 = vmatpush.bf16.msra.mxu0 %v1306
    %1360 = vmatpush.bf16.msra.mxu0 %v1302
    %1361 = vmatpush.bf16.msra.mxu0 %v1298
    %1362 = vmatpush.bf16.msra.mxu0 %v1294
    %1363 = vmatpush.bf16.msra.mxu0 %v1290
    %1364 = vmatpush.bf16.msra.mxu0 %v1286
    %1365 = vmatpush.bf16.msra.mxu0 %v1282
    %1366 = vmatmul.bf16.gmra.mxu0 %v1047
    %v1367 = vpop.f32.mrf.mxu0
    %v1368 = vadd.f32 0.0, %v1367
    %v1369 = vpop.f32.mrf.mxu0
    %1370 = vdwg.mxu0
    %1371 = vmatpush.bf16.msra.mxu0 %v1311
    %1372 = vmatpush.bf16.msra.mxu0 %v1307
    %1373 = vmatpush.bf16.msra.mxu0 %v1303
    %1374 = vmatpush.bf16.msra.mxu0 %v1299
    %1375 = vmatpush.bf16.msra.mxu0 %v1295
    %1376 = vmatpush.bf16.msra.mxu0 %v1291
    %1377 = vmatpush.bf16.msra.mxu0 %v1287
    %1378 = vmatpush.bf16.msra.mxu0 %v1283
    %1379 = vmatmul.bf16.gmra.mxu0 %v1047
    %v1380 = vpop.f32.mrf.mxu0
    %v1381 = vadd.f32 0.0, %v1380
    %v1382 = vpop.f32.mrf.mxu0
    %1383 = vdwg.mxu0
    %1384 = vmatpush.bf16.msra.mxu0 %v1312
    %1385 = vmatpush.bf16.msra.mxu0 %v1308
    %1386 = vmatpush.bf16.msra.mxu0 %v1304
    %1387 = vmatpush.bf16.msra.mxu0 %v1300
    %1388 = vmatpush.bf16.msra.mxu0 %v1296
    %1389 = vmatpush.bf16.msra.mxu0 %v1292
    %1390 = vmatpush.bf16.msra.mxu0 %v1288
    %1391 = vmatpush.bf16.msra.mxu0 %v1284
    %1392 = vmatmul.bf16.gmra.mxu0 %v1047
    %v1393 = vpop.f32.mrf.mxu0
    %v1394 = vadd.f32 0.0, %v1393
    %v1395 = vpop.f32.mrf.mxu0
    %1396 = vdwg.mxu0
    %v1397 = vadd.f32 %v1149, %v1355
    %v1398 = vadd.f32 %v1150, %v1368
    %v1399 = vadd.f32 %v1151, %v1381
    %v1400 = vadd.f32 %v1152, %v1394
    %v1401 = vmul.f32 %v1397, 0.5
    %v1402 = vtanh.pop %v1401
    %v1403 = vadd.f32 %v1402, 1.0
    %v1404 = vmul.f32 %v1403, 0.5
    %v1405 = vmul.f32 %v1398, 0.5
    %v1406 = vtanh.pop %v1405
    %v1407 = vadd.f32 %v1406, 1.0
    %v1408 = vmul.f32 %v1407, 0.5
    %v1409 = vtanh.pop %v1399
    %v1410 = vmul.f32 %v1400, 0.5
    %v1411 = vtanh.pop %v1410
    %v1412 = vadd.f32 %v1411, 1.0
    %v1413 = vmul.f32 %v1412, 0.5
    %v1414 = vmul.f32 %v1408, %v1044
    %v1415 = vmul.f32 %v1404, %v1409
    %v1416 = vadd.f32 %v1414, %v1415
    %v1417 = vtanh.pop %v1416
    %v1418 = vmul.f32 %v1413, %v1417
    %v1419 = vpack.c.bf16 %v1418, %v1418
    %v1421 = vrot.slane %v1419, 3
    %v1424 = vsel %vm303, %v1419, %v1421
    %v1426 = vsel %vm308, %v1419, %v1421
    %v1428 = vrot.slane %v1426, 1
    %v1429 = vsel %vm312, %v1419, %v1421
    %v1431 = vrot.slane %v1429, 2
    %v1432 = vsel %vm316, %v1419, %v1421
    %v1434 = vrot.slane %v1432, 3
    %v1435 = vunpack.i.l.s16 %v1424
    %v1436 = vunpack.i.h.s16 %v1424
    %v1437 = vunpack.i.l.s16 %v1428
    %v1438 = vunpack.i.h.s16 %v1428
    %v1439 = vunpack.i.l.s16 %v1431
    %v1440 = vunpack.i.h.s16 %v1431
    %v1441 = vunpack.i.l.s16 %v1434
    %v1442 = vunpack.i.h.s16 %v1434
    %v1443 = vpack.i.b16 %v1435, %v1435
    %v1444 = vpack.i.b16 %v1436, %v1436
    %v1445 = vpack.i.b16 %v1437, %v1437
    %v1446 = vpack.i.b16 %v1438, %v1438
    %v1447 = vpack.i.b16 %v1439, %v1439
    %v1448 = vpack.i.b16 %v1440, %v1440
    %v1449 = vpack.i.b16 %v1441, %v1441
    %v1450 = vpack.i.b16 %v1442, %v1442
    %v1452 = vunpack.c.l.s4 286326784
    %v1453 = vunpack.c.0.s8 %v1452
    %v1454 = vperm.slane %v1443, %v1453
    %v1456 = vunpack.c.l.s4 286326784
    %v1457 = vunpack.c.0.s8 %v1456
    %v1458 = vperm.slane %v1444, %v1457
    %v1460 = vunpack.c.l.s4 286326784
    %v1461 = vunpack.c.0.s8 %v1460
    %v1462 = vperm.slane %v1445, %v1461
    %v1464 = vunpack.c.l.s4 286326784
    %v1465 = vunpack.c.0.s8 %v1464
    %v1466 = vperm.slane %v1446, %v1465
    %v1468 = vunpack.c.l.s4 286326784
    %v1469 = vunpack.c.0.s8 %v1468
    %v1470 = vperm.slane %v1447, %v1469
    %v1472 = vunpack.c.l.s4 286326784
    %v1473 = vunpack.c.0.s8 %v1472
    %v1474 = vperm.slane %v1448, %v1473
    %v1476 = vunpack.c.l.s4 286326784
    %v1477 = vunpack.c.0.s8 %v1476
    %v1478 = vperm.slane %v1449, %v1477
    %v1480 = vunpack.c.l.s4 286326784
    %v1481 = vunpack.c.0.s8 %v1480
    %v1482 = vperm.slane %v1450, %v1481
    %vm1491 = vsmask.f32 7942
    %vm1492 = vmand %vm1119, %vm1491
    %v1493 = vld [vmem:[%s2] sm:$0x2]
    %v1494 = vsel %vm1492, %v1454, %v1493
    %1495 = vst [vmem:[%s2] sm:$0x2] %v1494
    %v1496 = vld [vmem:[%s2 + $0x4] sm:$0x2]
    %v1497 = vsel %vm1492, %v1458, %v1496
    %1498 = vst [vmem:[%s2 + $0x4] sm:$0x2] %v1497
    %v1499 = vld [vmem:[%s2 + $0x8] sm:$0x2]
    %v1500 = vsel %vm1492, %v1462, %v1499
    %1501 = vst [vmem:[%s2 + $0x8] sm:$0x2] %v1500
    %v1502 = vld [vmem:[%s2 + $0xc] sm:$0x2]
    %v1503 = vsel %vm1492, %v1466, %v1502
    %1504 = vst [vmem:[%s2 + $0xc] sm:$0x2] %v1503
    %v1505 = vld [vmem:[%s2 + $0x10] sm:$0x2]
    %v1506 = vsel %vm1492, %v1470, %v1505
    %1507 = vst [vmem:[%s2 + $0x10] sm:$0x2] %v1506
    %v1508 = vld [vmem:[%s2 + $0x14] sm:$0x2]
    %v1509 = vsel %vm1492, %v1474, %v1508
    %1510 = vst [vmem:[%s2 + $0x14] sm:$0x2] %v1509
    %v1511 = vld [vmem:[%s2 + $0x18] sm:$0x2]
    %v1512 = vsel %vm1492, %v1478, %v1511
    %1513 = vst [vmem:[%s2 + $0x18] sm:$0x2] %v1512
    %v1514 = vld [vmem:[%s2 + $0x1c] sm:$0x2]
    %v1515 = vsel %vm1492, %v1482, %v1514
    %1516 = vst [vmem:[%s2 + $0x1c] sm:$0x2] %v1515
    %s1517 = scalar_lea.vmem %s0, 64
    %v1518 = vld [vmem:[%s1517] sm:$0xff]
    %v1519 = vld [vmem:[%s1517 + $0x8] sm:$0xff]
    %v1520 = vunpack.c.l.bf16 %v1518
    %v1521 = vunpack.c.h.bf16 %v1518
    %v1522 = vunpack.c.l.bf16 %v1519
    %v1523 = vunpack.c.h.bf16 %v1519
    %v1524 = vld [vmem:[#allocation2] sm:$0xff]
    %v1525 = vld [vmem:[#allocation2 + $0x8] sm:$0xff]
    %v1526 = vld [vmem:[#allocation2 + $0x10] sm:$0xff]
    %v1527 = vld [vmem:[#allocation2 + $0x18] sm:$0xff]
    %v1528 = vld [vmem:[#allocation2 + $0x20] sm:$0xff]
    %v1529 = vld [vmem:[#allocation2 + $0x28] sm:$0xff]
    %v1530 = vld [vmem:[#allocation2 + $0x30] sm:$0xff]
    %v1531 = vld [vmem:[#allocation2 + $0x38] sm:$0xff]
    %v1532 = vld [vmem:[#allocation2 + $0x40] sm:$0xff]
    %v1533 = vld [vmem:[#allocation2 + $0x48] sm:$0xff]
    %v1534 = vld [vmem:[#allocation2 + $0x50] sm:$0xff]
    %v1535 = vld [vmem:[#allocation2 + $0x58] sm:$0xff]
    %v1536 = vld [vmem:[#allocation2 + $0x60] sm:$0xff]
    %v1537 = vld [vmem:[#allocation2 + $0x68] sm:$0xff]
    %v1538 = vld [vmem:[#allocation2 + $0x70] sm:$0xff]
    %v1539 = vld [vmem:[#allocation2 + $0x78] sm:$0xff]
    %v1540 = vld [vmem:[#allocation2 + $0x80] sm:$0xff]
    %v1541 = vld [vmem:[#allocation2 + $0x88] sm:$0xff]
    %v1542 = vld [vmem:[#allocation2 + $0x90] sm:$0xff]
    %v1543 = vld [vmem:[#allocation2 + $0x98] sm:$0xff]
    %v1544 = vld [vmem:[#allocation2 + $0xa0] sm:$0xff]
    %v1545 = vld [vmem:[#allocation2 + $0xa8] sm:$0xff]
    %v1546 = vld [vmem:[#allocation2 + $0xb0] sm:$0xff]
    %v1547 = vld [vmem:[#allocation2 + $0xb8] sm:$0xff]
    %v1548 = vld [vmem:[#allocation2 + $0xc0] sm:$0xff]
    %v1549 = vld [vmem:[#allocation2 + $0xc8] sm:$0xff]
    %v1550 = vld [vmem:[#allocation2 + $0xd0] sm:$0xff]
    %v1551 = vld [vmem:[#allocation2 + $0xd8] sm:$0xff]
    %v1552 = vld [vmem:[#allocation2 + $0xe0] sm:$0xff]
    %v1553 = vld [vmem:[#allocation2 + $0xe8] sm:$0xff]
    %v1554 = vld [vmem:[#allocation2 + $0xf0] sm:$0xff]
    %v1555 = vld [vmem:[#allocation2 + $0xf8] sm:$0xff]
    %v1588 = vunpack.c.l.b16 %v1524
    %v1589 = vunpack.c.h.b16 %v1524
    %v1590 = vunpack.c.l.b16 %v1525
    %v1591 = vunpack.c.h.b16 %v1525
    %v1592 = vunpack.c.l.b16 %v1526
    %v1593 = vunpack.c.h.b16 %v1526
    %v1594 = vunpack.c.l.b16 %v1527
    %v1595 = vunpack.c.h.b16 %v1527
    %v1596 = vunpack.c.l.b16 %v1528
    %v1597 = vunpack.c.h.b16 %v1528
    %v1598 = vunpack.c.l.b16 %v1529
    %v1599 = vunpack.c.h.b16 %v1529
    %v1600 = vunpack.c.l.b16 %v1530
    %v1601 = vunpack.c.h.b16 %v1530
    %v1602 = vunpack.c.l.b16 %v1531
    %v1603 = vunpack.c.h.b16 %v1531
    %v1604 = vunpack.c.l.b16 %v1532
    %v1605 = vunpack.c.h.b16 %v1532
    %v1606 = vunpack.c.l.b16 %v1533
    %v1607 = vunpack.c.h.b16 %v1533
    %v1608 = vunpack.c.l.b16 %v1534
    %v1609 = vunpack.c.h.b16 %v1534
    %v1610 = vunpack.c.l.b16 %v1535
    %v1611 = vunpack.c.h.b16 %v1535
    %v1612 = vunpack.c.l.b16 %v1536
    %v1613 = vunpack.c.h.b16 %v1536
    %v1614 = vunpack.c.l.b16 %v1537
    %v1615 = vunpack.c.h.b16 %v1537
    %v1616 = vunpack.c.l.b16 %v1538
    %v1617 = vunpack.c.h.b16 %v1538
    %v1618 = vunpack.c.l.b16 %v1539
    %v1619 = vunpack.c.h.b16 %v1539
    %v1620 = vunpack.c.l.b16 %v1540
    %v1621 = vunpack.c.h.b16 %v1540
    %v1622 = vunpack.c.l.b16 %v1541
    %v1623 = vunpack.c.h.b16 %v1541
    %v1624 = vunpack.c.l.b16 %v1542
    %v1625 = vunpack.c.h.b16 %v1542
    %v1626 = vunpack.c.l.b16 %v1543
    %v1627 = vunpack.c.h.b16 %v1543
    %v1628 = vunpack.c.l.b16 %v1544
    %v1629 = vunpack.c.h.b16 %v1544
    %v1630 = vunpack.c.l.b16 %v1545
    %v1631 = vunpack.c.h.b16 %v1545
    %v1632 = vunpack.c.l.b16 %v1546
    %v1633 = vunpack.c.h.b16 %v1546
    %v1634 = vunpack.c.l.b16 %v1547
    %v1635 = vunpack.c.h.b16 %v1547
    %v1636 = vunpack.c.l.b16 %v1548
    %v1637 = vunpack.c.h.b16 %v1548
    %v1638 = vunpack.c.l.b16 %v1549
    %v1639 = vunpack.c.h.b16 %v1549
    %v1640 = vunpack.c.l.b16 %v1550
    %v1641 = vunpack.c.h.b16 %v1550
    %v1642 = vunpack.c.l.b16 %v1551
    %v1643 = vunpack.c.h.b16 %v1551
    %v1644 = vunpack.c.l.b16 %v1552
    %v1645 = vunpack.c.h.b16 %v1552
    %v1646 = vunpack.c.l.b16 %v1553
    %v1647 = vunpack.c.h.b16 %v1553
    %v1648 = vunpack.c.l.b16 %v1554
    %v1649 = vunpack.c.h.b16 %v1554
    %v1650 = vunpack.c.l.b16 %v1555
    %v1651 = vunpack.c.h.b16 %v1555
    %v1652 = vpack.c.b16 %v1592, %v1588
    %v1653 = vpack.c.b16 %v1593, %v1589
    %v1654 = vpack.c.b16 %v1594, %v1590
    %v1655 = vpack.c.b16 %v1595, %v1591
    %v1656 = vpack.c.b16 %v1600, %v1596
    %v1657 = vpack.c.b16 %v1601, %v1597
    %v1658 = vpack.c.b16 %v1602, %v1598
    %v1659 = vpack.c.b16 %v1603, %v1599
    %v1660 = vpack.c.b16 %v1608, %v1604
    %v1661 = vpack.c.b16 %v1609, %v1605
    %v1662 = vpack.c.b16 %v1610, %v1606
    %v1663 = vpack.c.b16 %v1611, %v1607
    %v1664 = vpack.c.b16 %v1616, %v1612
    %v1665 = vpack.c.b16 %v1617, %v1613
    %v1666 = vpack.c.b16 %v1618, %v1614
    %v1667 = vpack.c.b16 %v1619, %v1615
    %v1668 = vpack.c.b16 %v1624, %v1620
    %v1669 = vpack.c.b16 %v1625, %v1621
    %v1670 = vpack.c.b16 %v1626, %v1622
    %v1671 = vpack.c.b16 %v1627, %v1623
    %v1672 = vpack.c.b16 %v1632, %v1628
    %v1673 = vpack.c.b16 %v1633, %v1629
    %v1674 = vpack.c.b16 %v1634, %v1630
    %v1675 = vpack.c.b16 %v1635, %v1631
    %v1676 = vpack.c.b16 %v1640, %v1636
    %v1677 = vpack.c.b16 %v1641, %v1637
    %v1678 = vpack.c.b16 %v1642, %v1638
    %v1679 = vpack.c.b16 %v1643, %v1639
    %v1680 = vpack.c.b16 %v1648, %v1644
    %v1681 = vpack.c.b16 %v1649, %v1645
    %v1682 = vpack.c.b16 %v1650, %v1646
    %v1683 = vpack.c.b16 %v1651, %v1647
    %1716 = vmatpush.bf16.msra.mxu0 %v1680
    %1717 = vmatpush.bf16.msra.mxu0 %v1676
    %1718 = vmatpush.bf16.msra.mxu0 %v1672
    %1719 = vmatpush.bf16.msra.mxu0 %v1668
    %1720 = vmatpush.bf16.msra.mxu0 %v1664
    %1721 = vmatpush.bf16.msra.mxu0 %v1660
    %1722 = vmatpush.bf16.msra.mxu0 %v1656
    %1723 = vmatpush.bf16.msra.mxu0 %v1652
    %1724 = vmatmul.bf16.gmra.mxu0 %v1419
    %v1725 = vpop.f32.mrf.mxu0
    %v1726 = vadd.f32 0.0, %v1725
    %v1727 = vpop.f32.mrf.mxu0
    %1728 = vdwg.mxu0
    %1729 = vmatpush.bf16.msra.mxu0 %v1681
    %1730 = vmatpush.bf16.msra.mxu0 %v1677
    %1731 = vmatpush.bf16.msra.mxu0 %v1673
    %1732 = vmatpush.bf16.msra.mxu0 %v1669
    %1733 = vmatpush.bf16.msra.mxu0 %v1665
    %1734 = vmatpush.bf16.msra.mxu0 %v1661
    %1735 = vmatpush.bf16.msra.mxu0 %v1657
    %1736 = vmatpush.bf16.msra.mxu0 %v1653
    %1737 = vmatmul.bf16.gmra.mxu0 %v1419
    %v1738 = vpop.f32.mrf.mxu0
    %v1739 = vadd.f32 0.0, %v1738
    %v1740 = vpop.f32.mrf.mxu0
    %1741 = vdwg.mxu0
    %1742 = vmatpush.bf16.msra.mxu0 %v1682
    %1743 = vmatpush.bf16.msra.mxu0 %v1678
    %1744 = vmatpush.bf16.msra.mxu0 %v1674
    %1745 = vmatpush.bf16.msra.mxu0 %v1670
    %1746 = vmatpush.bf16.msra.mxu0 %v1666
    %1747 = vmatpush.bf16.msra.mxu0 %v1662
    %1748 = vmatpush.bf16.msra.mxu0 %v1658
    %1749 = vmatpush.bf16.msra.mxu0 %v1654
    %1750 = vmatmul.bf16.gmra.mxu0 %v1419
    %v1751 = vpop.f32.mrf.mxu0
    %v1752 = vadd.f32 0.0, %v1751
    %v1753 = vpop.f32.mrf.mxu0
    %1754 = vdwg.mxu0
    %1755 = vmatpush.bf16.msra.mxu0 %v1683
    %1756 = vmatpush.bf16.msra.mxu0 %v1679
    %1757 = vmatpush.bf16.msra.mxu0 %v1675
    %1758 = vmatpush.bf16.msra.mxu0 %v1671
    %1759 = vmatpush.bf16.msra.mxu0 %v1667
    %1760 = vmatpush.bf16.msra.mxu0 %v1663
    %1761 = vmatpush.bf16.msra.mxu0 %v1659
    %1762 = vmatpush.bf16.msra.mxu0 %v1655
    %1763 = vmatmul.bf16.gmra.mxu0 %v1419
    %v1764 = vpop.f32.mrf.mxu0
    %v1765 = vadd.f32 0.0, %v1764
    %v1766 = vpop.f32.mrf.mxu0
    %1767 = vdwg.mxu0
    %v1768 = vadd.f32 %v1520, %v1726
    %v1769 = vadd.f32 %v1521, %v1739
    %v1770 = vadd.f32 %v1522, %v1752
    %v1771 = vadd.f32 %v1523, %v1765
    %v1772 = vmul.f32 %v1768, 0.5
    %v1773 = vtanh.pop %v1772
    %v1774 = vadd.f32 %v1773, 1.0
    %v1775 = vmul.f32 %v1774, 0.5
    %v1776 = vmul.f32 %v1769, 0.5
    %v1777 = vtanh.pop %v1776
    %v1778 = vadd.f32 %v1777, 1.0
    %v1779 = vmul.f32 %v1778, 0.5
    %v1780 = vtanh.pop %v1770
    %v1781 = vmul.f32 %v1771, 0.5
    %v1782 = vtanh.pop %v1781
    %v1783 = vadd.f32 %v1782, 1.0
    %v1784 = vmul.f32 %v1783, 0.5
    %v1785 = vmul.f32 %v1779, %v1416
    %v1786 = vmul.f32 %v1775, %v1780
    %v1787 = vadd.f32 %v1785, %v1786
    %v1788 = vtanh.pop %v1787
    %v1789 = vmul.f32 %v1784, %v1788
    %v1790 = vpack.c.bf16 %v1789, %v1789
    %v1792 = vrot.slane %v1790, 3
    %v1795 = vsel %vm303, %v1790, %v1792
    %v1797 = vsel %vm308, %v1790, %v1792
    %v1799 = vrot.slane %v1797, 1
    %v1800 = vsel %vm312, %v1790, %v1792
    %v1802 = vrot.slane %v1800, 2
    %v1803 = vsel %vm316, %v1790, %v1792
    %v1805 = vrot.slane %v1803, 3
    %v1806 = vunpack.i.l.s16 %v1795
    %v1807 = vunpack.i.h.s16 %v1795
    %v1808 = vunpack.i.l.s16 %v1799
    %v1809 = vunpack.i.h.s16 %v1799
    %v1810 = vunpack.i.l.s16 %v1802
    %v1811 = vunpack.i.h.s16 %v1802
    %v1812 = vunpack.i.l.s16 %v1805
    %v1813 = vunpack.i.h.s16 %v1805
    %v1814 = vpack.i.b16 %v1806, %v1806
    %v1815 = vpack.i.b16 %v1807, %v1807
    %v1816 = vpack.i.b16 %v1808, %v1808
    %v1817 = vpack.i.b16 %v1809, %v1809
    %v1818 = vpack.i.b16 %v1810, %v1810
    %v1819 = vpack.i.b16 %v1811, %v1811
    %v1820 = vpack.i.b16 %v1812, %v1812
    %v1821 = vpack.i.b16 %v1813, %v1813
    %v1823 = vunpack.c.l.s4 286326784
    %v1824 = vunpack.c.0.s8 %v1823
    %v1825 = vperm.slane %v1814, %v1824
    %v1827 = vunpack.c.l.s4 286326784
    %v1828 = vunpack.c.0.s8 %v1827
    %v1829 = vperm.slane %v1815, %v1828
    %v1831 = vunpack.c.l.s4 286326784
    %v1832 = vunpack.c.0.s8 %v1831
    %v1833 = vperm.slane %v1816, %v1832
    %v1835 = vunpack.c.l.s4 286326784
    %v1836 = vunpack.c.0.s8 %v1835
    %v1837 = vperm.slane %v1817, %v1836
    %v1839 = vunpack.c.l.s4 286326784
    %v1840 = vunpack.c.0.s8 %v1839
    %v1841 = vperm.slane %v1818, %v1840
    %v1843 = vunpack.c.l.s4 286326784
    %v1844 = vunpack.c.0.s8 %v1843
    %v1845 = vperm.slane %v1819, %v1844
    %v1847 = vunpack.c.l.s4 286326784
    %v1848 = vunpack.c.0.s8 %v1847
    %v1849 = vperm.slane %v1820, %v1848
    %v1851 = vunpack.c.l.s4 286326784
    %v1852 = vunpack.c.0.s8 %v1851
    %v1853 = vperm.slane %v1821, %v1852
    %vm1862 = vcmask 1042434
    %vm1863 = vsmask.f32 2304
    %vm1864 = vmand %vm1862, %vm1863
    %v1865 = vld [vmem:[%s2] sm:$0x4]
    %v1866 = vsel %vm1864, %v1825, %v1865
    %1867 = vst [vmem:[%s2] sm:$0x4] %v1866
    %v1868 = vld [vmem:[%s2 + $0x4] sm:$0x4]
    %v1869 = vsel %vm1864, %v1829, %v1868
    %1870 = vst [vmem:[%s2 + $0x4] sm:$0x4] %v1869
    %v1871 = vld [vmem:[%s2 + $0x8] sm:$0x4]
    %v1872 = vsel %vm1864, %v1833, %v1871
    %1873 = vst [vmem:[%s2 + $0x8] sm:$0x4] %v1872
    %v1874 = vld [vmem:[%s2 + $0xc] sm:$0x4]
    %v1875 = vsel %vm1864, %v1837, %v1874
    %1876 = vst [vmem:[%s2 + $0xc] sm:$0x4] %v1875
    %v1877 = vld [vmem:[%s2 + $0x10] sm:$0x4]
    %v1878 = vsel %vm1864, %v1841, %v1877
    %1879 = vst [vmem:[%s2 + $0x10] sm:$0x4] %v1878
    %v1880 = vld [vmem:[%s2 + $0x14] sm:$0x4]
    %v1881 = vsel %vm1864, %v1845, %v1880
    %1882 = vst [vmem:[%s2 + $0x14] sm:$0x4] %v1881
    %v1883 = vld [vmem:[%s2 + $0x18] sm:$0x4]
    %v1884 = vsel %vm1864, %v1849, %v1883
    %1885 = vst [vmem:[%s2 + $0x18] sm:$0x4] %v1884
    %v1886 = vld [vmem:[%s2 + $0x1c] sm:$0x4]
    %v1887 = vsel %vm1864, %v1853, %v1886
    %1888 = vst [vmem:[%s2 + $0x1c] sm:$0x4] %v1887
    %s1889 = scalar_lea.vmem %s0, 80
    %v1890 = vld [vmem:[%s1889] sm:$0xff]
    %v1891 = vld [vmem:[%s1889 + $0x8] sm:$0xff]
    %v1892 = vunpack.c.l.bf16 %v1890
    %v1893 = vunpack.c.h.bf16 %v1890
    %v1894 = vunpack.c.l.bf16 %v1891
    %v1895 = vunpack.c.h.bf16 %v1891
    %v1896 = vld [vmem:[#allocation2] sm:$0xff]
    %v1897 = vld [vmem:[#allocation2 + $0x8] sm:$0xff]
    %v1898 = vld [vmem:[#allocation2 + $0x10] sm:$0xff]
    %v1899 = vld [vmem:[#allocation2 + $0x18] sm:$0xff]
    %v1900 = vld [vmem:[#allocation2 + $0x20] sm:$0xff]
    %v1901 = vld [vmem:[#allocation2 + $0x28] sm:$0xff]
    %v1902 = vld [vmem:[#allocation2 + $0x30] sm:$0xff]
    %v1903 = vld [vmem:[#allocation2 + $0x38] sm:$0xff]
    %v1904 = vld [vmem:[#allocation2 + $0x40] sm:$0xff]
    %v1905 = vld [vmem:[#allocation2 + $0x48] sm:$0xff]
    %v1906 = vld [vmem:[#allocation2 + $0x50] sm:$0xff]
    %v1907 = vld [vmem:[#allocation2 + $0x58] sm:$0xff]
    %v1908 = vld [vmem:[#allocation2 + $0x60] sm:$0xff]
    %v1909 = vld [vmem:[#allocation2 + $0x68] sm:$0xff]
    %v1910 = vld [vmem:[#allocation2 + $0x70] sm:$0xff]
    %v1911 = vld [vmem:[#allocation2 + $0x78] sm:$0xff]
    %v1912 = vld [vmem:[#allocation2 + $0x80] sm:$0xff]
    %v1913 = vld [vmem:[#allocation2 + $0x88] sm:$0xff]
    %v1914 = vld [vmem:[#allocation2 + $0x90] sm:$0xff]
    %v1915 = vld [vmem:[#allocation2 + $0x98] sm:$0xff]
    %v1916 = vld [vmem:[#allocation2 + $0xa0] sm:$0xff]
    %v1917 = vld [vmem:[#allocation2 + $0xa8] sm:$0xff]
    %v1918 = vld [vmem:[#allocation2 + $0xb0] sm:$0xff]
    %v1919 = vld [vmem:[#allocation2 + $0xb8] sm:$0xff]
    %v1920 = vld [vmem:[#allocation2 + $0xc0] sm:$0xff]
    %v1921 = vld [vmem:[#allocation2 + $0xc8] sm:$0xff]
    %v1922 = vld [vmem:[#allocation2 + $0xd0] sm:$0xff]
    %v1923 = vld [vmem:[#allocation2 + $0xd8] sm:$0xff]
    %v1924 = vld [vmem:[#allocation2 + $0xe0] sm:$0xff]
    %v1925 = vld [vmem:[#allocation2 + $0xe8] sm:$0xff]
    %v1926 = vld [vmem:[#allocation2 + $0xf0] sm:$0xff]
    %v1927 = vld [vmem:[#allocation2 + $0xf8] sm:$0xff]
    %v1960 = vunpack.c.l.b16 %v1896
    %v1961 = vunpack.c.h.b16 %v1896
    %v1962 = vunpack.c.l.b16 %v1897
    %v1963 = vunpack.c.h.b16 %v1897
    %v1964 = vunpack.c.l.b16 %v1898
    %v1965 = vunpack.c.h.b16 %v1898
    %v1966 = vunpack.c.l.b16 %v1899
    %v1967 = vunpack.c.h.b16 %v1899
    %v1968 = vunpack.c.l.b16 %v1900
    %v1969 = vunpack.c.h.b16 %v1900
    %v1970 = vunpack.c.l.b16 %v1901
    %v1971 = vunpack.c.h.b16 %v1901
    %v1972 = vunpack.c.l.b16 %v1902
    %v1973 = vunpack.c.h.b16 %v1902
    %v1974 = vunpack.c.l.b16 %v1903
    %v1975 = vunpack.c.h.b16 %v1903
    %v1976 = vunpack.c.l.b16 %v1904
    %v1977 = vunpack.c.h.b16 %v1904
    %v1978 = vunpack.c.l.b16 %v1905
    %v1979 = vunpack.c.h.b16 %v1905
    %v1980 = vunpack.c.l.b16 %v1906
    %v1981 = vunpack.c.h.b16 %v1906
    %v1982 = vunpack.c.l.b16 %v1907
    %v1983 = vunpack.c.h.b16 %v1907
    %v1984 = vunpack.c.l.b16 %v1908
    %v1985 = vunpack.c.h.b16 %v1908
    %v1986 = vunpack.c.l.b16 %v1909
    %v1987 = vunpack.c.h.b16 %v1909
    %v1988 = vunpack.c.l.b16 %v1910
    %v1989 = vunpack.c.h.b16 %v1910
    %v1990 = vunpack.c.l.b16 %v1911
    %v1991 = vunpack.c.h.b16 %v1911
    %v1992 = vunpack.c.l.b16 %v1912
    %v1993 = vunpack.c.h.b16 %v1912
    %v1994 = vunpack.c.l.b16 %v1913
    %v1995 = vunpack.c.h.b16 %v1913
    %v1996 = vunpack.c.l.b16 %v1914
    %v1997 = vunpack.c.h.b16 %v1914
    %v1998 = vunpack.c.l.b16 %v1915
    %v1999 = vunpack.c.h.b16 %v1915
    %v2000 = vunpack.c.l.b16 %v1916
    %v2001 = vunpack.c.h.b16 %v1916
    %v2002 = vunpack.c.l.b16 %v1917
    %v2003 = vunpack.c.h.b16 %v1917
    %v2004 = vunpack.c.l.b16 %v1918
    %v2005 = vunpack.c.h.b16 %v1918
    %v2006 = vunpack.c.l.b16 %v1919
    %v2007 = vunpack.c.h.b16 %v1919
    %v2008 = vunpack.c.l.b16 %v1920
    %v2009 = vunpack.c.h.b16 %v1920
    %v2010 = vunpack.c.l.b16 %v1921
    %v2011 = vunpack.c.h.b16 %v1921
    %v2012 = vunpack.c.l.b16 %v1922
    %v2013 = vunpack.c.h.b16 %v1922
    %v2014 = vunpack.c.l.b16 %v1923
    %v2015 = vunpack.c.h.b16 %v1923
    %v2016 = vunpack.c.l.b16 %v1924
    %v2017 = vunpack.c.h.b16 %v1924
    %v2018 = vunpack.c.l.b16 %v1925
    %v2019 = vunpack.c.h.b16 %v1925
    %v2020 = vunpack.c.l.b16 %v1926
    %v2021 = vunpack.c.h.b16 %v1926
    %v2022 = vunpack.c.l.b16 %v1927
    %v2023 = vunpack.c.h.b16 %v1927
    %v2024 = vpack.c.b16 %v1964, %v1960
    %v2025 = vpack.c.b16 %v1965, %v1961
    %v2026 = vpack.c.b16 %v1966, %v1962
    %v2027 = vpack.c.b16 %v1967, %v1963
    %v2028 = vpack.c.b16 %v1972, %v1968
    %v2029 = vpack.c.b16 %v1973, %v1969
    %v2030 = vpack.c.b16 %v1974, %v1970
    %v2031 = vpack.c.b16 %v1975, %v1971
    %v2032 = vpack.c.b16 %v1980, %v1976
    %v2033 = vpack.c.b16 %v1981, %v1977
    %v2034 = vpack.c.b16 %v1982, %v1978
    %v2035 = vpack.c.b16 %v1983, %v1979
    %v2036 = vpack.c.b16 %v1988, %v1984
    %v2037 = vpack.c.b16 %v1989, %v1985
    %v2038 = vpack.c.b16 %v1990, %v1986
    %v2039 = vpack.c.b16 %v1991, %v1987
    %v2040 = vpack.c.b16 %v1996, %v1992
    %v2041 = vpack.c.b16 %v1997, %v1993
    %v2042 = vpack.c.b16 %v1998, %v1994
    %v2043 = vpack.c.b16 %v1999, %v1995
    %v2044 = vpack.c.b16 %v2004, %v2000
    %v2045 = vpack.c.b16 %v2005, %v2001
    %v2046 = vpack.c.b16 %v2006, %v2002
    %v2047 = vpack.c.b16 %v2007, %v2003
    %v2048 = vpack.c.b16 %v2012, %v2008
    %v2049 = vpack.c.b16 %v2013, %v2009
    %v2050 = vpack.c.b16 %v2014, %v2010
    %v2051 = vpack.c.b16 %v2015, %v2011
    %v2052 = vpack.c.b16 %v2020, %v2016
    %v2053 = vpack.c.b16 %v2021, %v2017
    %v2054 = vpack.c.b16 %v2022, %v2018
    %v2055 = vpack.c.b16 %v2023, %v2019
    %2088 = vmatpush.bf16.msra.mxu0 %v2052
    %2089 = vmatpush.bf16.msra.mxu0 %v2048
    %2090 = vmatpush.bf16.msra.mxu0 %v2044
    %2091 = vmatpush.bf16.msra.mxu0 %v2040
    %2092 = vmatpush.bf16.msra.mxu0 %v2036
    %2093 = vmatpush.bf16.msra.mxu0 %v2032
    %2094 = vmatpush.bf16.msra.mxu0 %v2028
    %2095 = vmatpush.bf16.msra.mxu0 %v2024
    %2096 = vmatmul.bf16.gmra.mxu0 %v1790
    %v2097 = vpop.f32.mrf.mxu0
    %v2098 = vadd.f32 0.0, %v2097
    %v2099 = vpop.f32.mrf.mxu0
    %2100 = vdwg.mxu0
    %2101 = vmatpush.bf16.msra.mxu0 %v2053
    %2102 = vmatpush.bf16.msra.mxu0 %v2049
    %2103 = vmatpush.bf16.msra.mxu0 %v2045
    %2104 = vmatpush.bf16.msra.mxu0 %v2041
    %2105 = vmatpush.bf16.msra.mxu0 %v2037
    %2106 = vmatpush.bf16.msra.mxu0 %v2033
    %2107 = vmatpush.bf16.msra.mxu0 %v2029
    %2108 = vmatpush.bf16.msra.mxu0 %v2025
    %2109 = vmatmul.bf16.gmra.mxu0 %v1790
    %v2110 = vpop.f32.mrf.mxu0
    %v2111 = vadd.f32 0.0, %v2110
    %v2112 = vpop.f32.mrf.mxu0
    %2113 = vdwg.mxu0
    %2114 = vmatpush.bf16.msra.mxu0 %v2054
    %2115 = vmatpush.bf16.msra.mxu0 %v2050
    %2116 = vmatpush.bf16.msra.mxu0 %v2046
    %2117 = vmatpush.bf16.msra.mxu0 %v2042
    %2118 = vmatpush.bf16.msra.mxu0 %v2038
    %2119 = vmatpush.bf16.msra.mxu0 %v2034
    %2120 = vmatpush.bf16.msra.mxu0 %v2030
    %2121 = vmatpush.bf16.msra.mxu0 %v2026
    %2122 = vmatmul.bf16.gmra.mxu0 %v1790
    %v2123 = vpop.f32.mrf.mxu0
    %v2124 = vadd.f32 0.0, %v2123
    %v2125 = vpop.f32.mrf.mxu0
    %2126 = vdwg.mxu0
    %2127 = vmatpush.bf16.msra.mxu0 %v2055
    %2128 = vmatpush.bf16.msra.mxu0 %v2051
    %2129 = vmatpush.bf16.msra.mxu0 %v2047
    %2130 = vmatpush.bf16.msra.mxu0 %v2043
    %2131 = vmatpush.bf16.msra.mxu0 %v2039
    %2132 = vmatpush.bf16.msra.mxu0 %v2035
    %2133 = vmatpush.bf16.msra.mxu0 %v2031
    %2134 = vmatpush.bf16.msra.mxu0 %v2027
    %2135 = vmatmul.bf16.gmra.mxu0 %v1790
    %v2136 = vpop.f32.mrf.mxu0
    %v2137 = vadd.f32 0.0, %v2136
    %v2138 = vpop.f32.mrf.mxu0
    %2139 = vdwg.mxu0
    %v2140 = vadd.f32 %v1892, %v2098
    %v2141 = vadd.f32 %v1893, %v2111
    %v2142 = vadd.f32 %v1894, %v2124
    %v2143 = vadd.f32 %v1895, %v2137
    %v2144 = vmul.f32 %v2140, 0.5
    %v2145 = vtanh.pop %v2144
    %v2146 = vadd.f32 %v2145, 1.0
    %v2147 = vmul.f32 %v2146, 0.5
    %v2148 = vmul.f32 %v2141, 0.5
    %v2149 = vtanh.pop %v2148
    %v2150 = vadd.f32 %v2149, 1.0
    %v2151 = vmul.f32 %v2150, 0.5
    %v2152 = vtanh.pop %v2142
    %v2153 = vmul.f32 %v2143, 0.5
    %v2154 = vtanh.pop %v2153
    %v2155 = vadd.f32 %v2154, 1.0
    %v2156 = vmul.f32 %v2155, 0.5
    %v2157 = vmul.f32 %v2151, %v1787
    %v2158 = vmul.f32 %v2147, %v2152
    %v2159 = vadd.f32 %v2157, %v2158
    %v2160 = vtanh.pop %v2159
    %v2161 = vmul.f32 %v2156, %v2160
    %v2162 = vpack.c.bf16 %v2161, %v2161
    %v2164 = vrot.slane %v2162, 3
    %v2167 = vsel %vm303, %v2162, %v2164
    %v2169 = vsel %vm308, %v2162, %v2164
    %v2171 = vrot.slane %v2169, 1
    %v2172 = vsel %vm312, %v2162, %v2164
    %v2174 = vrot.slane %v2172, 2
    %v2175 = vsel %vm316, %v2162, %v2164
    %v2177 = vrot.slane %v2175, 3
    %v2178 = vunpack.i.l.s16 %v2167
    %v2179 = vunpack.i.h.s16 %v2167
    %v2180 = vunpack.i.l.s16 %v2171
    %v2181 = vunpack.i.h.s16 %v2171
    %v2182 = vunpack.i.l.s16 %v2174
    %v2183 = vunpack.i.h.s16 %v2174
    %v2184 = vunpack.i.l.s16 %v2177
    %v2185 = vunpack.i.h.s16 %v2177
    %v2186 = vpack.i.b16 %v2178, %v2178
    %v2187 = vpack.i.b16 %v2179, %v2179
    %v2188 = vpack.i.b16 %v2180, %v2180
    %v2189 = vpack.i.b16 %v2181, %v2181
    %v2190 = vpack.i.b16 %v2182, %v2182
    %v2191 = vpack.i.b16 %v2183, %v2183
    %v2192 = vpack.i.b16 %v2184, %v2184
    %v2193 = vpack.i.b16 %v2185, %v2185
    %v2195 = vunpack.c.l.s4 286326784
    %v2196 = vunpack.c.0.s8 %v2195
    %v2197 = vperm.slane %v2186, %v2196
    %v2199 = vunpack.c.l.s4 286326784
    %v2200 = vunpack.c.0.s8 %v2199
    %v2201 = vperm.slane %v2187, %v2200
    %v2203 = vunpack.c.l.s4 286326784
    %v2204 = vunpack.c.0.s8 %v2203
    %v2205 = vperm.slane %v2188, %v2204
    %v2207 = vunpack.c.l.s4 286326784
    %v2208 = vunpack.c.0.s8 %v2207
    %v2209 = vperm.slane %v2189, %v2208
    %v2211 = vunpack.c.l.s4 286326784
    %v2212 = vunpack.c.0.s8 %v2211
    %v2213 = vperm.slane %v2190, %v2212
    %v2215 = vunpack.c.l.s4 286326784
    %v2216 = vunpack.c.0.s8 %v2215
    %v2217 = vperm.slane %v2191, %v2216
    %v2219 = vunpack.c.l.s4 286326784
    %v2220 = vunpack.c.0.s8 %v2219
    %v2221 = vperm.slane %v2192, %v2220
    %v2223 = vunpack.c.l.s4 286326784
    %v2224 = vunpack.c.0.s8 %v2223
    %v2225 = vperm.slane %v2193, %v2224
    %vm2234 = vsmask.f32 7946
    %vm2235 = vmand %vm1862, %vm2234
    %v2236 = vld [vmem:[%s2] sm:$0x4]
    %v2237 = vsel %vm2235, %v2197, %v2236
    %2238 = vst [vmem:[%s2] sm:$0x4] %v2237
    %v2239 = vld [vmem:[%s2 + $0x4] sm:$0x4]
    %v2240 = vsel %vm2235, %v2201, %v2239
    %2241 = vst [vmem:[%s2 + $0x4] sm:$0x4] %v2240
    %v2242 = vld [vmem:[%s2 + $0x8] sm:$0x4]
    %v2243 = vsel %vm2235, %v2205, %v2242
    %2244 = vst [vmem:[%s2 + $0x8] sm:$0x4] %v2243
    %v2245 = vld [vmem:[%s2 + $0xc] sm:$0x4]
    %v2246 = vsel %vm2235, %v2209, %v2245
    %2247 = vst [vmem:[%s2 + $0xc] sm:$0x4] %v2246
    %v2248 = vld [vmem:[%s2 + $0x10] sm:$0x4]
    %v2249 = vsel %vm2235, %v2213, %v2248
    %2250 = vst [vmem:[%s2 + $0x10] sm:$0x4] %v2249
    %v2251 = vld [vmem:[%s2 + $0x14] sm:$0x4]
    %v2252 = vsel %vm2235, %v2217, %v2251
    %2253 = vst [vmem:[%s2 + $0x14] sm:$0x4] %v2252
    %v2254 = vld [vmem:[%s2 + $0x18] sm:$0x4]
    %v2255 = vsel %vm2235, %v2221, %v2254
    %2256 = vst [vmem:[%s2 + $0x18] sm:$0x4] %v2255
    %v2257 = vld [vmem:[%s2 + $0x1c] sm:$0x4]
    %v2258 = vsel %vm2235, %v2225, %v2257
    %2259 = vst [vmem:[%s2 + $0x1c] sm:$0x4] %v2258
    %s2260 = scalar_lea.vmem %s0, 96
    %v2261 = vld [vmem:[%s2260] sm:$0xff]
    %v2262 = vld [vmem:[%s2260 + $0x8] sm:$0xff]
    %v2263 = vunpack.c.l.bf16 %v2261
    %v2264 = vunpack.c.h.bf16 %v2261
    %v2265 = vunpack.c.l.bf16 %v2262
    %v2266 = vunpack.c.h.bf16 %v2262
    %v2267 = vld [vmem:[#allocation2] sm:$0xff]
    %v2268 = vld [vmem:[#allocation2 + $0x8] sm:$0xff]
    %v2269 = vld [vmem:[#allocation2 + $0x10] sm:$0xff]
    %v2270 = vld [vmem:[#allocation2 + $0x18] sm:$0xff]
    %v2271 = vld [vmem:[#allocation2 + $0x20] sm:$0xff]
    %v2272 = vld [vmem:[#allocation2 + $0x28] sm:$0xff]
    %v2273 = vld [vmem:[#allocation2 + $0x30] sm:$0xff]
    %v2274 = vld [vmem:[#allocation2 + $0x38] sm:$0xff]
    %v2275 = vld [vmem:[#allocation2 + $0x40] sm:$0xff]
    %v2276 = vld [vmem:[#allocation2 + $0x48] sm:$0xff]
    %v2277 = vld [vmem:[#allocation2 + $0x50] sm:$0xff]
    %v2278 = vld [vmem:[#allocation2 + $0x58] sm:$0xff]
    %v2279 = vld [vmem:[#allocation2 + $0x60] sm:$0xff]
    %v2280 = vld [vmem:[#allocation2 + $0x68] sm:$0xff]
    %v2281 = vld [vmem:[#allocation2 + $0x70] sm:$0xff]
    %v2282 = vld [vmem:[#allocation2 + $0x78] sm:$0xff]
    %v2283 = vld [vmem:[#allocation2 + $0x80] sm:$0xff]
    %v2284 = vld [vmem:[#allocation2 + $0x88] sm:$0xff]
    %v2285 = vld [vmem:[#allocation2 + $0x90] sm:$0xff]
    %v2286 = vld [vmem:[#allocation2 + $0x98] sm:$0xff]
    %v2287 = vld [vmem:[#allocation2 + $0xa0] sm:$0xff]
    %v2288 = vld [vmem:[#allocation2 + $0xa8] sm:$0xff]
    %v2289 = vld [vmem:[#allocation2 + $0xb0] sm:$0xff]
    %v2290 = vld [vmem:[#allocation2 + $0xb8] sm:$0xff]
    %v2291 = vld [vmem:[#allocation2 + $0xc0] sm:$0xff]
    %v2292 = vld [vmem:[#allocation2 + $0xc8] sm:$0xff]
    %v2293 = vld [vmem:[#allocation2 + $0xd0] sm:$0xff]
    %v2294 = vld [vmem:[#allocation2 + $0xd8] sm:$0xff]
    %v2295 = vld [vmem:[#allocation2 + $0xe0] sm:$0xff]
    %v2296 = vld [vmem:[#allocation2 + $0xe8] sm:$0xff]
    %v2297 = vld [vmem:[#allocation2 + $0xf0] sm:$0xff]
    %v2298 = vld [vmem:[#allocation2 + $0xf8] sm:$0xff]
    %v2331 = vunpack.c.l.b16 %v2267
    %v2332 = vunpack.c.h.b16 %v2267
    %v2333 = vunpack.c.l.b16 %v2268
    %v2334 = vunpack.c.h.b16 %v2268
    %v2335 = vunpack.c.l.b16 %v2269
    %v2336 = vunpack.c.h.b16 %v2269
    %v2337 = vunpack.c.l.b16 %v2270
    %v2338 = vunpack.c.h.b16 %v2270
    %v2339 = vunpack.c.l.b16 %v2271
    %v2340 = vunpack.c.h.b16 %v2271
    %v2341 = vunpack.c.l.b16 %v2272
    %v2342 = vunpack.c.h.b16 %v2272
    %v2343 = vunpack.c.l.b16 %v2273
    %v2344 = vunpack.c.h.b16 %v2273
    %v2345 = vunpack.c.l.b16 %v2274
    %v2346 = vunpack.c.h.b16 %v2274
    %v2347 = vunpack.c.l.b16 %v2275
    %v2348 = vunpack.c.h.b16 %v2275
    %v2349 = vunpack.c.l.b16 %v2276
    %v2350 = vunpack.c.h.b16 %v2276
    %v2351 = vunpack.c.l.b16 %v2277
    %v2352 = vunpack.c.h.b16 %v2277
    %v2353 = vunpack.c.l.b16 %v2278
    %v2354 = vunpack.c.h.b16 %v2278
    %v2355 = vunpack.c.l.b16 %v2279
    %v2356 = vunpack.c.h.b16 %v2279
    %v2357 = vunpack.c.l.b16 %v2280
    %v2358 = vunpack.c.h.b16 %v2280
    %v2359 = vunpack.c.l.b16 %v2281
    %v2360 = vunpack.c.h.b16 %v2281
    %v2361 = vunpack.c.l.b16 %v2282
    %v2362 = vunpack.c.h.b16 %v2282
    %v2363 = vunpack.c.l.b16 %v2283
    %v2364 = vunpack.c.h.b16 %v2283
    %v2365 = vunpack.c.l.b16 %v2284
    %v2366 = vunpack.c.h.b16 %v2284
    %v2367 = vunpack.c.l.b16 %v2285
    %v2368 = vunpack.c.h.b16 %v2285
    %v2369 = vunpack.c.l.b16 %v2286
    %v2370 = vunpack.c.h.b16 %v2286
    %v2371 = vunpack.c.l.b16 %v2287
    %v2372 = vunpack.c.h.b16 %v2287
    %v2373 = vunpack.c.l.b16 %v2288
    %v2374 = vunpack.c.h.b16 %v2288
    %v2375 = vunpack.c.l.b16 %v2289
    %v2376 = vunpack.c.h.b16 %v2289
    %v2377 = vunpack.c.l.b16 %v2290
    %v2378 = vunpack.c.h.b16 %v2290
    %v2379 = vunpack.c.l.b16 %v2291
    %v2380 = vunpack.c.h.b16 %v2291
    %v2381 = vunpack.c.l.b16 %v2292
    %v2382 = vunpack.c.h.b16 %v2292
    %v2383 = vunpack.c.l.b16 %v2293
    %v2384 = vunpack.c.h.b16 %v2293
    %v2385 = vunpack.c.l.b16 %v2294
    %v2386 = vunpack.c.h.b16 %v2294
    %v2387 = vunpack.c.l.b16 %v2295
    %v2388 = vunpack.c.h.b16 %v2295
    %v2389 = vunpack.c.l.b16 %v2296
    %v2390 = vunpack.c.h.b16 %v2296
    %v2391 = vunpack.c.l.b16 %v2297
    %v2392 = vunpack.c.h.b16 %v2297
    %v2393 = vunpack.c.l.b16 %v2298
    %v2394 = vunpack.c.h.b16 %v2298
    %v2395 = vpack.c.b16 %v2335, %v2331
    %v2396 = vpack.c.b16 %v2336, %v2332
    %v2397 = vpack.c.b16 %v2337, %v2333
    %v2398 = vpack.c.b16 %v2338, %v2334
    %v2399 = vpack.c.b16 %v2343, %v2339
    %v2400 = vpack.c.b16 %v2344, %v2340
    %v2401 = vpack.c.b16 %v2345, %v2341
    %v2402 = vpack.c.b16 %v2346, %v2342
    %v2403 = vpack.c.b16 %v2351, %v2347
    %v2404 = vpack.c.b16 %v2352, %v2348
    %v2405 = vpack.c.b16 %v2353, %v2349
    %v2406 = vpack.c.b16 %v2354, %v2350
    %v2407 = vpack.c.b16 %v2359, %v2355
    %v2408 = vpack.c.b16 %v2360, %v2356
    %v2409 = vpack.c.b16 %v2361, %v2357
    %v2410 = vpack.c.b16 %v2362, %v2358
    %v2411 = vpack.c.b16 %v2367, %v2363
    %v2412 = vpack.c.b16 %v2368, %v2364
    %v2413 = vpack.c.b16 %v2369, %v2365
    %v2414 = vpack.c.b16 %v2370, %v2366
    %v2415 = vpack.c.b16 %v2375, %v2371
    %v2416 = vpack.c.b16 %v2376, %v2372
    %v2417 = vpack.c.b16 %v2377, %v2373
    %v2418 = vpack.c.b16 %v2378, %v2374
    %v2419 = vpack.c.b16 %v2383, %v2379
    %v2420 = vpack.c.b16 %v2384, %v2380
    %v2421 = vpack.c.b16 %v2385, %v2381
    %v2422 = vpack.c.b16 %v2386, %v2382
    %v2423 = vpack.c.b16 %v2391, %v2387
    %v2424 = vpack.c.b16 %v2392, %v2388
    %v2425 = vpack.c.b16 %v2393, %v2389
    %v2426 = vpack.c.b16 %v2394, %v2390
    %2459 = vmatpush.bf16.msra.mxu0 %v2423
    %2460 = vmatpush.bf16.msra.mxu0 %v2419
    %2461 = vmatpush.bf16.msra.mxu0 %v2415
    %2462 = vmatpush.bf16.msra.mxu0 %v2411
    %2463 = vmatpush.bf16.msra.mxu0 %v2407
    %2464 = vmatpush.bf16.msra.mxu0 %v2403
    %2465 = vmatpush.bf16.msra.mxu0 %v2399
    %2466 = vmatpush.bf16.msra.mxu0 %v2395
    %2467 = vmatmul.bf16.gmra.mxu0 %v2162
    %v2468 = vpop.f32.mrf.mxu0
    %v2469 = vadd.f32 0.0, %v2468
    %v2470 = vpop.f32.mrf.mxu0
    %2471 = vdwg.mxu0
    %2472 = vmatpush.bf16.msra.mxu0 %v2424
    %2473 = vmatpush.bf16.msra.mxu0 %v2420
    %2474 = vmatpush.bf16.msra.mxu0 %v2416
    %2475 = vmatpush.bf16.msra.mxu0 %v2412
    %2476 = vmatpush.bf16.msra.mxu0 %v2408
    %2477 = vmatpush.bf16.msra.mxu0 %v2404
    %2478 = vmatpush.bf16.msra.mxu0 %v2400
    %2479 = vmatpush.bf16.msra.mxu0 %v2396
    %2480 = vmatmul.bf16.gmra.mxu0 %v2162
    %v2481 = vpop.f32.mrf.mxu0
    %v2482 = vadd.f32 0.0, %v2481
    %v2483 = vpop.f32.mrf.mxu0
    %2484 = vdwg.mxu0
    %2485 = vmatpush.bf16.msra.mxu0 %v2425
    %2486 = vmatpush.bf16.msra.mxu0 %v2421
    %2487 = vmatpush.bf16.msra.mxu0 %v2417
    %2488 = vmatpush.bf16.msra.mxu0 %v2413
    %2489 = vmatpush.bf16.msra.mxu0 %v2409
    %2490 = vmatpush.bf16.msra.mxu0 %v2405
    %2491 = vmatpush.bf16.msra.mxu0 %v2401
    %2492 = vmatpush.bf16.msra.mxu0 %v2397
    %2493 = vmatmul.bf16.gmra.mxu0 %v2162
    %v2494 = vpop.f32.mrf.mxu0
    %v2495 = vadd.f32 0.0, %v2494
    %v2496 = vpop.f32.mrf.mxu0
    %2497 = vdwg.mxu0
    %2498 = vmatpush.bf16.msra.mxu0 %v2426
    %2499 = vmatpush.bf16.msra.mxu0 %v2422
    %2500 = vmatpush.bf16.msra.mxu0 %v2418
    %2501 = vmatpush.bf16.msra.mxu0 %v2414
    %2502 = vmatpush.bf16.msra.mxu0 %v2410
    %2503 = vmatpush.bf16.msra.mxu0 %v2406
    %2504 = vmatpush.bf16.msra.mxu0 %v2402
    %2505 = vmatpush.bf16.msra.mxu0 %v2398
    %2506 = vmatmul.bf16.gmra.mxu0 %v2162
    %v2507 = vpop.f32.mrf.mxu0
    %v2508 = vadd.f32 0.0, %v2507
    %v2509 = vpop.f32.mrf.mxu0
    %2510 = vdwg.mxu0
    %v2511 = vadd.f32 %v2263, %v2469
    %v2512 = vadd.f32 %v2264, %v2482
    %v2513 = vadd.f32 %v2265, %v2495
    %v2514 = vadd.f32 %v2266, %v2508
    %v2515 = vmul.f32 %v2511, 0.5
    %v2516 = vtanh.pop %v2515
    %v2517 = vadd.f32 %v2516, 1.0
    %v2518 = vmul.f32 %v2517, 0.5
    %v2519 = vmul.f32 %v2512, 0.5
    %v2520 = vtanh.pop %v2519
    %v2521 = vadd.f32 %v2520, 1.0
    %v2522 = vmul.f32 %v2521, 0.5
    %v2523 = vtanh.pop %v2513
    %v2524 = vmul.f32 %v2514, 0.5
    %v2525 = vtanh.pop %v2524
    %v2526 = vadd.f32 %v2525, 1.0
    %v2527 = vmul.f32 %v2526, 0.5
    %v2528 = vmul.f32 %v2522, %v2159
    %v2529 = vmul.f32 %v2518, %v2523
    %v2530 = vadd.f32 %v2528, %v2529
    %v2531 = vtanh.pop %v2530
    %v2532 = vmul.f32 %v2527, %v2531
    %v2533 = vpack.c.bf16 %v2532, %v2532
    %v2535 = vrot.slane %v2533, 3
    %v2538 = vsel %vm303, %v2533, %v2535
    %v2540 = vsel %vm308, %v2533, %v2535
    %v2542 = vrot.slane %v2540, 1
    %v2543 = vsel %vm312, %v2533, %v2535
    %v2545 = vrot.slane %v2543, 2
    %v2546 = vsel %vm316, %v2533, %v2535
    %v2548 = vrot.slane %v2546, 3
    %v2549 = vunpack.i.l.s16 %v2538
    %v2550 = vunpack.i.h.s16 %v2538
    %v2551 = vunpack.i.l.s16 %v2542
    %v2552 = vunpack.i.h.s16 %v2542
    %v2553 = vunpack.i.l.s16 %v2545
    %v2554 = vunpack.i.h.s16 %v2545
    %v2555 = vunpack.i.l.s16 %v2548
    %v2556 = vunpack.i.h.s16 %v2548
    %v2557 = vpack.i.b16 %v2549, %v2549
    %v2558 = vpack.i.b16 %v2550, %v2550
    %v2559 = vpack.i.b16 %v2551, %v2551
    %v2560 = vpack.i.b16 %v2552, %v2552
    %v2561 = vpack.i.b16 %v2553, %v2553
    %v2562 = vpack.i.b16 %v2554, %v2554
    %v2563 = vpack.i.b16 %v2555, %v2555
    %v2564 = vpack.i.b16 %v2556, %v2556
    %v2566 = vunpack.c.l.s4 286326784
    %v2567 = vunpack.c.0.s8 %v2566
    %v2568 = vperm.slane %v2557, %v2567
    %v2570 = vunpack.c.l.s4 286326784
    %v2571 = vunpack.c.0.s8 %v2570
    %v2572 = vperm.slane %v2558, %v2571
    %v2574 = vunpack.c.l.s4 286326784
    %v2575 = vunpack.c.0.s8 %v2574
    %v2576 = vperm.slane %v2559, %v2575
    %v2578 = vunpack.c.l.s4 286326784
    %v2579 = vunpack.c.0.s8 %v2578
    %v2580 = vperm.slane %v2560, %v2579
    %v2582 = vunpack.c.l.s4 286326784
    %v2583 = vunpack.c.0.s8 %v2582
    %v2584 = vperm.slane %v2561, %v2583
    %v2586 = vunpack.c.l.s4 286326784
    %v2587 = vunpack.c.0.s8 %v2586
    %v2588 = vperm.slane %v2562, %v2587
    %v2590 = vunpack.c.l.s4 286326784
    %v2591 = vunpack.c.0.s8 %v2590
    %v2592 = vperm.slane %v2563, %v2591
    %v2594 = vunpack.c.l.s4 286326784
    %v2595 = vunpack.c.0.s8 %v2594
    %v2596 = vperm.slane %v2564, %v2595
    %vm2605 = vcmask 1043459
    %vm2606 = vsmask.f32 3328
    %vm2607 = vmand %vm2605, %vm2606
    %v2608 = vld [vmem:[%s2] sm:$0x8]
    %v2609 = vsel %vm2607, %v2568, %v2608
    %2610 = vst [vmem:[%s2] sm:$0x8] %v2609
    %v2611 = vld [vmem:[%s2 + $0x4] sm:$0x8]
    %v2612 = vsel %vm2607, %v2572, %v2611
    %2613 = vst [vmem:[%s2 + $0x4] sm:$0x8] %v2612
    %v2614 = vld [vmem:[%s2 + $0x8] sm:$0x8]
    %v2615 = vsel %vm2607, %v2576, %v2614
    %2616 = vst [vmem:[%s2 + $0x8] sm:$0x8] %v2615
    %v2617 = vld [vmem:[%s2 + $0xc] sm:$0x8]
    %v2618 = vsel %vm2607, %v2580, %v2617
    %2619 = vst [vmem:[%s2 + $0xc] sm:$0x8] %v2618
    %v2620 = vld [vmem:[%s2 + $0x10] sm:$0x8]
    %v2621 = vsel %vm2607, %v2584, %v2620
    %2622 = vst [vmem:[%s2 + $0x10] sm:$0x8] %v2621
    %v2623 = vld [vmem:[%s2 + $0x14] sm:$0x8]
    %v2624 = vsel %vm2607, %v2588, %v2623
    %2625 = vst [vmem:[%s2 + $0x14] sm:$0x8] %v2624
    %v2626 = vld [vmem:[%s2 + $0x18] sm:$0x8]
    %v2627 = vsel %vm2607, %v2592, %v2626
    %2628 = vst [vmem:[%s2 + $0x18] sm:$0x8] %v2627
    %v2629 = vld [vmem:[%s2 + $0x1c] sm:$0x8]
    %v2630 = vsel %vm2607, %v2596, %v2629
    %2631 = vst [vmem:[%s2 + $0x1c] sm:$0x8] %v2630
    %s2632 = scalar_lea.vmem %s0, 112
    %v2633 = vld [vmem:[%s2632] sm:$0xff]
    %v2634 = vld [vmem:[%s2632 + $0x8] sm:$0xff]
    %v2635 = vunpack.c.l.bf16 %v2633
    %v2636 = vunpack.c.h.bf16 %v2633
    %v2637 = vunpack.c.l.bf16 %v2634
    %v2638 = vunpack.c.h.bf16 %v2634
    %v2639 = vld [vmem:[#allocation2] sm:$0xff]
    %v2640 = vld [vmem:[#allocation2 + $0x8] sm:$0xff]
    %v2641 = vld [vmem:[#allocation2 + $0x10] sm:$0xff]
    %v2642 = vld [vmem:[#allocation2 + $0x18] sm:$0xff]
    %v2643 = vld [vmem:[#allocation2 + $0x20] sm:$0xff]
    %v2644 = vld [vmem:[#allocation2 + $0x28] sm:$0xff]
    %v2645 = vld [vmem:[#allocation2 + $0x30] sm:$0xff]
    %v2646 = vld [vmem:[#allocation2 + $0x38] sm:$0xff]
    %v2647 = vld [vmem:[#allocation2 + $0x40] sm:$0xff]
    %v2648 = vld [vmem:[#allocation2 + $0x48] sm:$0xff]
    %v2649 = vld [vmem:[#allocation2 + $0x50] sm:$0xff]
    %v2650 = vld [vmem:[#allocation2 + $0x58] sm:$0xff]
    %v2651 = vld [vmem:[#allocation2 + $0x60] sm:$0xff]
    %v2652 = vld [vmem:[#allocation2 + $0x68] sm:$0xff]
    %v2653 = vld [vmem:[#allocation2 + $0x70] sm:$0xff]
    %v2654 = vld [vmem:[#allocation2 + $0x78] sm:$0xff]
    %v2655 = vld [vmem:[#allocation2 + $0x80] sm:$0xff]
    %v2656 = vld [vmem:[#allocation2 + $0x88] sm:$0xff]
    %v2657 = vld [vmem:[#allocation2 + $0x90] sm:$0xff]
    %v2658 = vld [vmem:[#allocation2 + $0x98] sm:$0xff]
    %v2659 = vld [vmem:[#allocation2 + $0xa0] sm:$0xff]
    %v2660 = vld [vmem:[#allocation2 + $0xa8] sm:$0xff]
    %v2661 = vld [vmem:[#allocation2 + $0xb0] sm:$0xff]
    %v2662 = vld [vmem:[#allocation2 + $0xb8] sm:$0xff]
    %v2663 = vld [vmem:[#allocation2 + $0xc0] sm:$0xff]
    %v2664 = vld [vmem:[#allocation2 + $0xc8] sm:$0xff]
    %v2665 = vld [vmem:[#allocation2 + $0xd0] sm:$0xff]
    %v2666 = vld [vmem:[#allocation2 + $0xd8] sm:$0xff]
    %v2667 = vld [vmem:[#allocation2 + $0xe0] sm:$0xff]
    %v2668 = vld [vmem:[#allocation2 + $0xe8] sm:$0xff]
    %v2669 = vld [vmem:[#allocation2 + $0xf0] sm:$0xff]
    %v2670 = vld [vmem:[#allocation2 + $0xf8] sm:$0xff]
    %v2703 = vunpack.c.l.b16 %v2639
    %v2704 = vunpack.c.h.b16 %v2639
    %v2705 = vunpack.c.l.b16 %v2640
    %v2706 = vunpack.c.h.b16 %v2640
    %v2707 = vunpack.c.l.b16 %v2641
    %v2708 = vunpack.c.h.b16 %v2641
    %v2709 = vunpack.c.l.b16 %v2642
    %v2710 = vunpack.c.h.b16 %v2642
    %v2711 = vunpack.c.l.b16 %v2643
    %v2712 = vunpack.c.h.b16 %v2643
    %v2713 = vunpack.c.l.b16 %v2644
    %v2714 = vunpack.c.h.b16 %v2644
    %v2715 = vunpack.c.l.b16 %v2645
    %v2716 = vunpack.c.h.b16 %v2645
    %v2717 = vunpack.c.l.b16 %v2646
    %v2718 = vunpack.c.h.b16 %v2646
    %v2719 = vunpack.c.l.b16 %v2647
    %v2720 = vunpack.c.h.b16 %v2647
    %v2721 = vunpack.c.l.b16 %v2648
    %v2722 = vunpack.c.h.b16 %v2648
    %v2723 = vunpack.c.l.b16 %v2649
    %v2724 = vunpack.c.h.b16 %v2649
    %v2725 = vunpack.c.l.b16 %v2650
    %v2726 = vunpack.c.h.b16 %v2650
    %v2727 = vunpack.c.l.b16 %v2651
    %v2728 = vunpack.c.h.b16 %v2651
    %v2729 = vunpack.c.l.b16 %v2652
    %v2730 = vunpack.c.h.b16 %v2652
    %v2731 = vunpack.c.l.b16 %v2653
    %v2732 = vunpack.c.h.b16 %v2653
    %v2733 = vunpack.c.l.b16 %v2654
    %v2734 = vunpack.c.h.b16 %v2654
    %v2735 = vunpack.c.l.b16 %v2655
    %v2736 = vunpack.c.h.b16 %v2655
    %v2737 = vunpack.c.l.b16 %v2656
    %v2738 = vunpack.c.h.b16 %v2656
    %v2739 = vunpack.c.l.b16 %v2657
    %v2740 = vunpack.c.h.b16 %v2657
    %v2741 = vunpack.c.l.b16 %v2658
    %v2742 = vunpack.c.h.b16 %v2658
    %v2743 = vunpack.c.l.b16 %v2659
    %v2744 = vunpack.c.h.b16 %v2659
    %v2745 = vunpack.c.l.b16 %v2660
    %v2746 = vunpack.c.h.b16 %v2660
    %v2747 = vunpack.c.l.b16 %v2661
    %v2748 = vunpack.c.h.b16 %v2661
    %v2749 = vunpack.c.l.b16 %v2662
    %v2750 = vunpack.c.h.b16 %v2662
    %v2751 = vunpack.c.l.b16 %v2663
    %v2752 = vunpack.c.h.b16 %v2663
    %v2753 = vunpack.c.l.b16 %v2664
    %v2754 = vunpack.c.h.b16 %v2664
    %v2755 = vunpack.c.l.b16 %v2665
    %v2756 = vunpack.c.h.b16 %v2665
    %v2757 = vunpack.c.l.b16 %v2666
    %v2758 = vunpack.c.h.b16 %v2666
    %v2759 = vunpack.c.l.b16 %v2667
    %v2760 = vunpack.c.h.b16 %v2667
    %v2761 = vunpack.c.l.b16 %v2668
    %v2762 = vunpack.c.h.b16 %v2668
    %v2763 = vunpack.c.l.b16 %v2669
    %v2764 = vunpack.c.h.b16 %v2669
    %v2765 = vunpack.c.l.b16 %v2670
    %v2766 = vunpack.c.h.b16 %v2670
    %v2767 = vpack.c.b16 %v2707, %v2703
    %v2768 = vpack.c.b16 %v2708, %v2704
    %v2769 = vpack.c.b16 %v2709, %v2705
    %v2770 = vpack.c.b16 %v2710, %v2706
    %v2771 = vpack.c.b16 %v2715, %v2711
    %v2772 = vpack.c.b16 %v2716, %v2712
    %v2773 = vpack.c.b16 %v2717, %v2713
    %v2774 = vpack.c.b16 %v2718, %v2714
    %v2775 = vpack.c.b16 %v2723, %v2719
    %v2776 = vpack.c.b16 %v2724, %v2720
    %v2777 = vpack.c.b16 %v2725, %v2721
    %v2778 = vpack.c.b16 %v2726, %v2722
    %v2779 = vpack.c.b16 %v2731, %v2727
    %v2780 = vpack.c.b16 %v2732, %v2728
    %v2781 = vpack.c.b16 %v2733, %v2729
    %v2782 = vpack.c.b16 %v2734, %v2730
    %v2783 = vpack.c.b16 %v2739, %v2735
    %v2784 = vpack.c.b16 %v2740, %v2736
    %v2785 = vpack.c.b16 %v2741, %v2737
    %v2786 = vpack.c.b16 %v2742, %v2738
    %v2787 = vpack.c.b16 %v2747, %v2743
    %v2788 = vpack.c.b16 %v2748, %v2744
    %v2789 = vpack.c.b16 %v2749, %v2745
    %v2790 = vpack.c.b16 %v2750, %v2746
    %v2791 = vpack.c.b16 %v2755, %v2751
    %v2792 = vpack.c.b16 %v2756, %v2752
    %v2793 = vpack.c.b16 %v2757, %v2753
    %v2794 = vpack.c.b16 %v2758, %v2754
    %v2795 = vpack.c.b16 %v2763, %v2759
    %v2796 = vpack.c.b16 %v2764, %v2760
    %v2797 = vpack.c.b16 %v2765, %v2761
    %v2798 = vpack.c.b16 %v2766, %v2762
    %2831 = vmatpush.bf16.msra.mxu0 %v2795
    %2832 = vmatpush.bf16.msra.mxu0 %v2791
    %2833 = vmatpush.bf16.msra.mxu0 %v2787
    %2834 = vmatpush.bf16.msra.mxu0 %v2783
    %2835 = vmatpush.bf16.msra.mxu0 %v2779
    %2836 = vmatpush.bf16.msra.mxu0 %v2775
    %2837 = vmatpush.bf16.msra.mxu0 %v2771
    %2838 = vmatpush.bf16.msra.mxu0 %v2767
    %2839 = vmatmul.bf16.gmra.mxu0 %v2533
    %v2840 = vpop.f32.mrf.mxu0
    %v2841 = vadd.f32 0.0, %v2840
    %v2842 = vpop.f32.mrf.mxu0
    %2843 = vdwg.mxu0
    %2844 = vmatpush.bf16.msra.mxu0 %v2796
    %2845 = vmatpush.bf16.msra.mxu0 %v2792
    %2846 = vmatpush.bf16.msra.mxu0 %v2788
    %2847 = vmatpush.bf16.msra.mxu0 %v2784
    %2848 = vmatpush.bf16.msra.mxu0 %v2780
    %2849 = vmatpush.bf16.msra.mxu0 %v2776
    %2850 = vmatpush.bf16.msra.mxu0 %v2772
    %2851 = vmatpush.bf16.msra.mxu0 %v2768
    %2852 = vmatmul.bf16.gmra.mxu0 %v2533
    %v2853 = vpop.f32.mrf.mxu0
    %v2854 = vadd.f32 0.0, %v2853
    %v2855 = vpop.f32.mrf.mxu0
    %2856 = vdwg.mxu0
    %2857 = vmatpush.bf16.msra.mxu0 %v2797
    %2858 = vmatpush.bf16.msra.mxu0 %v2793
    %2859 = vmatpush.bf16.msra.mxu0 %v2789
    %2860 = vmatpush.bf16.msra.mxu0 %v2785
    %2861 = vmatpush.bf16.msra.mxu0 %v2781
    %2862 = vmatpush.bf16.msra.mxu0 %v2777
    %2863 = vmatpush.bf16.msra.mxu0 %v2773
    %2864 = vmatpush.bf16.msra.mxu0 %v2769
    %2865 = vmatmul.bf16.gmra.mxu0 %v2533
    %v2866 = vpop.f32.mrf.mxu0
    %v2867 = vadd.f32 0.0, %v2866
    %v2868 = vpop.f32.mrf.mxu0
    %2869 = vdwg.mxu0
    %2870 = vmatpush.bf16.msra.mxu0 %v2798
    %2871 = vmatpush.bf16.msra.mxu0 %v2794
    %2872 = vmatpush.bf16.msra.mxu0 %v2790
    %2873 = vmatpush.bf16.msra.mxu0 %v2786
    %2874 = vmatpush.bf16.msra.mxu0 %v2782
    %2875 = vmatpush.bf16.msra.mxu0 %v2778
    %2876 = vmatpush.bf16.msra.mxu0 %v2774
    %2877 = vmatpush.bf16.msra.mxu0 %v2770
    %2878 = vmatmul.bf16.gmra.mxu0 %v2533
    %v2879 = vpop.f32.mrf.mxu0
    %v2880 = vadd.f32 0.0, %v2879
    %v2881 = vpop.f32.mrf.mxu0
    %2882 = vdwg.mxu0
    %v2883 = vadd.f32 %v2635, %v2841
    %v2884 = vadd.f32 %v2636, %v2854
    %v2885 = vadd.f32 %v2637, %v2867
    %v2886 = vadd.f32 %v2638, %v2880
    %v2887 = vmul.f32 %v2883, 0.5
    %v2888 = vtanh.pop %v2887
    %v2889 = vadd.f32 %v2888, 1.0
    %v2890 = vmul.f32 %v2889, 0.5
    %v2891 = vmul.f32 %v2884, 0.5
    %v2892 = vtanh.pop %v2891
    %v2893 = vadd.f32 %v2892, 1.0
    %v2894 = vmul.f32 %v2893, 0.5
    %v2895 = vtanh.pop %v2885
    %v2896 = vmul.f32 %v2886, 0.5
    %v2897 = vtanh.pop %v2896
    %v2898 = vadd.f32 %v2897, 1.0
    %v2899 = vmul.f32 %v2898, 0.5
    %v2900 = vmul.f32 %v2894, %v2530
    %v2901 = vmul.f32 %v2890, %v2895
    %v2902 = vadd.f32 %v2900, %v2901
    %v2903 = vtanh.pop %v2902
    %v2904 = vmul.f32 %v2899, %v2903
    %v2905 = vpack.c.bf16 %v2904, %v2904
    %v2907 = vrot.slane %v2905, 3
    %v2910 = vsel %vm303, %v2905, %v2907
    %v2912 = vsel %vm308, %v2905, %v2907
    %v2914 = vrot.slane %v2912, 1
    %v2915 = vsel %vm312, %v2905, %v2907
    %v2917 = vrot.slane %v2915, 2
    %v2918 = vsel %vm316, %v2905, %v2907
    %v2920 = vrot.slane %v2918, 3
    %v2921 = vunpack.i.l.s16 %v2910
    %v2922 = vunpack.i.h.s16 %v2910
    %v2923 = vunpack.i.l.s16 %v2914
    %v2924 = vunpack.i.h.s16 %v2914
    %v2925 = vunpack.i.l.s16 %v2917
    %v2926 = vunpack.i.h.s16 %v2917
    %v2927 = vunpack.i.l.s16 %v2920
    %v2928 = vunpack.i.h.s16 %v2920
    %v2929 = vpack.i.b16 %v2921, %v2921
    %v2930 = vpack.i.b16 %v2922, %v2922
    %v2931 = vpack.i.b16 %v2923, %v2923
    %v2932 = vpack.i.b16 %v2924, %v2924
    %v2933 = vpack.i.b16 %v2925, %v2925
    %v2934 = vpack.i.b16 %v2926, %v2926
    %v2935 = vpack.i.b16 %v2927, %v2927
    %v2936 = vpack.i.b16 %v2928, %v2928
    %v2938 = vunpack.c.l.s4 286326784
    %v2939 = vunpack.c.0.s8 %v2938
    %v2940 = vperm.slane %v2929, %v2939
    %v2942 = vunpack.c.l.s4 286326784
    %v2943 = vunpack.c.0.s8 %v2942
    %v2944 = vperm.slane %v2930, %v2943
    %v2946 = vunpack.c.l.s4 286326784
    %v2947 = vunpack.c.0.s8 %v2946
    %v2948 = vperm.slane %v2931, %v2947
    %v2950 = vunpack.c.l.s4 286326784
    %v2951 = vunpack.c.0.s8 %v2950
    %v2952 = vperm.slane %v2932, %v2951
    %v2954 = vunpack.c.l.s4 286326784
    %v2955 = vunpack.c.0.s8 %v2954
    %v2956 = vperm.slane %v2933, %v2955
    %v2958 = vunpack.c.l.s4 286326784
    %v2959 = vunpack.c.0.s8 %v2958
    %v2960 = vperm.slane %v2934, %v2959
    %v2962 = vunpack.c.l.s4 286326784
    %v2963 = vunpack.c.0.s8 %v2962
    %v2964 = vperm.slane %v2935, %v2963
    %v2966 = vunpack.c.l.s4 286326784
    %v2967 = vunpack.c.0.s8 %v2966
    %v2968 = vperm.slane %v2936, %v2967
    %vm2977 = vsmask.f32 7950
    %vm2978 = vmand %vm2605, %vm2977
    %v2979 = vld [vmem:[%s2] sm:$0x8]
    %v2980 = vsel %vm2978, %v2940, %v2979
    %2981 = vst [vmem:[%s2] sm:$0x8] %v2980
    %v2982 = vld [vmem:[%s2 + $0x4] sm:$0x8]
    %v2983 = vsel %vm2978, %v2944, %v2982
    %2984 = vst [vmem:[%s2 + $0x4] sm:$0x8] %v2983
    %v2985 = vld [vmem:[%s2 + $0x8] sm:$0x8]
    %v2986 = vsel %vm2978, %v2948, %v2985
    %2987 = vst [vmem:[%s2 + $0x8] sm:$0x8] %v2986
    %v2988 = vld [vmem:[%s2 + $0xc] sm:$0x8]
    %v2989 = vsel %vm2978, %v2952, %v2988
    %2990 = vst [vmem:[%s2 + $0xc] sm:$0x8] %v2989
    %v2991 = vld [vmem:[%s2 + $0x10] sm:$0x8]
    %v2992 = vsel %vm2978, %v2956, %v2991
    %2993 = vst [vmem:[%s2 + $0x10] sm:$0x8] %v2992
    %v2994 = vld [vmem:[%s2 + $0x14] sm:$0x8]
    %v2995 = vsel %vm2978, %v2960, %v2994
    %2996 = vst [vmem:[%s2 + $0x14] sm:$0x8] %v2995
    %v2997 = vld [vmem:[%s2 + $0x18] sm:$0x8]
    %v2998 = vsel %vm2978, %v2964, %v2997
    %2999 = vst [vmem:[%s2 + $0x18] sm:$0x8] %v2998
    %v3000 = vld [vmem:[%s2 + $0x1c] sm:$0x8]
    %v3001 = vsel %vm2978, %v2968, %v3000
    %3002 = vst [vmem:[%s2 + $0x1c] sm:$0x8] %v3001
    // Predicated region
    $region14: #{_decoder_forward.4} parent=1 // pred_check
      _
    $region15: #{_decoder_forward.4} parent=1 // pred_check_branch
      %3004 = sbr.rel (0) target = $region17
    $region16: #{_decoder_forward.4} parent=1 // pred_region
      _
    $region17: #{_decoder_forward.4} parent=1 // pred_fallthru
      _
    // Predicated region
    $region18: #{_decoder_forward.4} parent=1 // pred_check
      _
    $region19: #{_decoder_forward.4} parent=1 // pred_check_branch
      %3006 = sbr.rel (0) target = $region21
    $region20: #{_decoder_forward.4} parent=1 // pred_region
      _
    $region21: #{_decoder_forward.4} parent=1 // pred_fallthru
      _
    %3007 = vsyncpa [#allocation3], 1

</llo_original>
